<compile_context>
chip_gen: v7x
topology: tpu7x:2x2x1
jax: 0.10.0
libtpu: 0.0.40
codegen_flags: <defaults>
</compile_context>

<pallas_src>
import jax
import jax.numpy as jnp
from jax.experimental import pallas as pl
from jax.experimental.pallas import tpu as pltpu

# Hyper-parameters implied by the module.
VOCAB = 100
VOCAB_PAD = 128            # one-hot lane width padded to a full 128-lane vreg
EMBED_DIM = 300            # embed_dim
SENT_LEN = 8               # sentence_length (Linear(16, 2) => 2 * L == 16)
KH = 4                     # conv kernel height
NUM_CLASSES = 2
T_OUT = SENT_LEN - KH + 1  # conv output length along time = 5
C_OUT = SENT_LEN           # conv out-channels per branch = 8
C2 = 2 * C_OUT             # fused (concat) out-channels = 16


def _round_up(x, m):
    return (x + m - 1) // m * m


def cnn_nlp_kernel(tok_ref, wf_ref, bc_ref, wl_ref, bl_ref, out_ref):
    """One grid step processes TB batch samples.

    tok_ref : (TB, L)         int32  token ids
    wf_ref  : (VPAD, KH*C2)   bf16   embedding table folded into conv weights
    bc_ref  : (1, C2)         f32    fused conv bias (branch1 ++ branch2)
    wl_ref  : (2, C2)         f32    linear weight (PyTorch (out,in) layout)
    bl_ref  : (2, 1)          f32    linear bias
    out_ref : (2, TB)         f32    logits, transposed (lane-dense store)
    """
    tb, seq = tok_ref.shape
    vpad = wf_ref.shape[0]
    c2 = bc_ref.shape[1]
    kh_taps = wf_ref.shape[1] // c2
    t_out = seq - kh_taps + 1

    tok = tok_ref[...]                                           # (TB, L) int32
    wf = wf_ref[...]                                             # (128, 64) bf16
    vocab_ids = jax.lax.broadcasted_iota(jnp.int32, (tb, vpad), 1)

    # Embedding gather + all KH conv taps fused into one MXU matmul per time
    # step:  ys[t][b, kh*C2 + c] = Wf[tok[b, t], kh*C2 + c].
    # Token ids >= VOCAB hit zero-padded rows of Wf (zero embedding) rather
    # than erroring like nn.Embedding would.
    ys = []
    for t in range(seq):                                         # static, L = 8
        onehot = jnp.where(vocab_ids == tok[:, t:t + 1], 1.0, 0.0)  # f32 build
        onehot = onehot.astype(jnp.bfloat16)                     # MXU operand
        ys.append(jnp.dot(onehot, wf, preferred_element_type=jnp.float32))

    # Hoisted bias broadcast (JAX does not CSE broadcast_in_dim).
    bias = jnp.broadcast_to(bc_ref[...], (tb, c2))               # (TB, C2)

    # Tap sums + bias + ReLU + max-pool over time.  Every slice below is a
    # contiguous 2-D lane-range slice of a (TB, 64) tile (no strided gathers).
    pooled = None
    for t in range(t_out):                                       # static, 5
        s = ys[t][:, 0:c2]
        for kh in range(1, kh_taps):
            s = s + ys[t + kh][:, kh * c2:(kh + 1) * c2]
        s = jnp.maximum(s + bias, 0.0)
        pooled = s if pooled is None else jnp.maximum(pooled, s)

    # nn.Dropout is identity at inference time.
    # Linear(16, 2) computed transposed ((2,16) x (TB,16)^T) so the output
    # store is lane-dense: (2, TB) with TB >= 128 lanes.
    logits_t = jax.lax.dot_general(
        wl_ref[...], pooled, (((1,), (1,)), ((), ())),
        preferred_element_type=jnp.float32) + bl_ref[...]
    out_ref[...] = logits_t


def cnn_nlp_forward(tokens, emb_table, w_conv1, b_conv1, w_conv2, b_conv2,
                    w_lin, b_lin, *, block_b=512):
    B, L = tokens.shape
    assert L == SENT_LEN and tuple(w_lin.shape) == (NUM_CLASSES, C2), \
        "Linear(16, 2) in the module implies sentence_length == 8"

    # Batch tile: multiple of 128 (lane-dense transposed output block), capped
    # at ceil(B/2) so the 'parallel' grid keeps >= 2 steps for v7x megacore
    # whenever the batch allows it.  Per-sample VMEM temporaries are ~10 KiB,
    # so block_b up to ~2048 fits comfortably under the 48 MiB limit below.
    tb = min(block_b, max((B + 1) // 2, 1))
    tb = _round_up(max(tb, 1), 128)
    b_pad = _round_up(B, tb)
    grid = (b_pad // tb,)

    tok = tokens.astype(jnp.int32)
    if b_pad != B:
        tok = jnp.pad(tok, ((0, b_pad - B), (0, 0)))   # pad rows use token 0

    # --- fold the embedding table into the conv weights (wrapper, fp32) -----
    w_cat = jnp.concatenate([w_conv1, w_conv2], axis=0)          # (C2,1,KH,D)
    w_cat = jnp.transpose(w_cat[:, 0, :, :], (1, 2, 0))          # (KH, D, C2)
    wf = jnp.einsum('vd,kdc->vkc', emb_table.astype(jnp.float32), w_cat)
    wf = wf.reshape(VOCAB, KH * C2)                              # (V, KH*C2)
    wf = jnp.pad(wf, ((0, VOCAB_PAD - VOCAB), (0, 0)))           # (128, 64)
    wf = wf.astype(jnp.bfloat16)
    bc = jnp.concatenate([b_conv1, b_conv2]).reshape(1, C2).astype(jnp.float32)
    wl = w_lin.astype(jnp.float32)                               # (2, 16)
    bl = b_lin.reshape(NUM_CLASSES, 1).astype(jnp.float32)       # (2, 1)

    out = pl.pallas_call(
        cnn_nlp_kernel,
        out_shape=jax.ShapeDtypeStruct((NUM_CLASSES, b_pad), jnp.float32),
        grid_spec=pltpu.PrefetchScalarGridSpec(
            num_scalar_prefetch=0,
            grid=grid,
            in_specs=[
                pl.BlockSpec((tb, SENT_LEN), lambda i: (i, 0)),
                pl.BlockSpec((VOCAB_PAD, KH * C2), lambda i: (0, 0)),
                pl.BlockSpec((1, C2), lambda i: (0, 0)),
                pl.BlockSpec((NUM_CLASSES, C2), lambda i: (0, 0)),
                pl.BlockSpec((NUM_CLASSES, 1), lambda i: (0, 0)),
            ],
            out_specs=pl.BlockSpec((NUM_CLASSES, tb), lambda i: (0, i)),
        ),
        compiler_params=pltpu.CompilerParams(
            dimension_semantics=("parallel",),
            vmem_limit_bytes=48 * 1024 * 1024),
    )(tok, wf, bc, wl, bl)
    # (2, B_pad) -> (B, 2)
    return out[:, :B].T


def reference_forward(tokens, emb_table, w_conv1, b_conv1, w_conv2, b_conv2,
                      w_lin, b_lin):
    """Pure-JAX fp32 reference mirroring the PyTorch forward (eval mode)."""
    emb = jnp.take(emb_table, tokens, axis=0)                    # (B, L, D)

    def block(w, b):
        outs = []
        for t in range(T_OUT):
            win = emb[:, t:t + KH, :]                            # (B, KH, D)
            outs.append(jnp.einsum('bkd,ckd->bc', win, w[:, 0]) + b)
        conv = jnp.stack(outs, axis=2)                           # (B, C, T)
        act = jnp.maximum(conv, 0.0)
        return jnp.max(act, axis=2)                              # (B, C)

    feat = jnp.concatenate([block(w_conv1, b_conv1),
                            block(w_conv2, b_conv2)], axis=1)
    return feat @ w_lin.T + b_lin


if __name__ == "__main__":
    key = jax.random.PRNGKey(0)
    k_tok, k_emb, k_w1, k_b1, k_w2, k_b2, k_wl, k_bl = jax.random.split(key, 8)

    B = 200  # not a multiple of the 128-sample tile -> exercises padding
    tokens = jax.random.randint(k_tok, (B, SENT_LEN), 0, VOCAB, dtype=jnp.int32)

    # Deterministic synthetic parameters (module __init__ shapes).
    emb_table = jax.random.normal(k_emb, (VOCAB, EMBED_DIM), jnp.float32) * 0.1
    w_conv1 = jax.random.normal(k_w1, (C_OUT, 1, KH, EMBED_DIM), jnp.float32) * 0.05
    b_conv1 = jax.random.normal(k_b1, (C_OUT,), jnp.float32) * 0.05
    w_conv2 = jax.random.normal(k_w2, (C_OUT, 1, KH, EMBED_DIM), jnp.float32) * 0.05
    b_conv2 = jax.random.normal(k_b2, (C_OUT,), jnp.float32) * 0.05
    w_lin = jax.random.normal(k_wl, (NUM_CLASSES, C2), jnp.float32) * 0.1
    b_lin = jax.random.normal(k_bl, (NUM_CLASSES,), jnp.float32) * 0.1

    # block_b=128 -> TB=128, grid=(2,): exercises multi-step batch tiling.
    logits = cnn_nlp_forward(tokens, emb_table, w_conv1, b_conv1,
                             w_conv2, b_conv2, w_lin, b_lin, block_b=128)
    logits = jax.block_until_ready(logits)

    ref = reference_forward(tokens, emb_table, w_conv1, b_conv1,
                            w_conv2, b_conv2, w_lin, b_lin)
    assert logits.shape == (B, NUM_CLASSES)
    # Folded conv weights are fed to the MXU in bf16 (fp32 accumulation) ->
    # compare at bf16-level tolerance.
    err = float(jnp.max(jnp.abs(logits - ref)))
    assert jnp.allclose(logits, ref, atol=1e-2, rtol=1e-2), err

    # TODO(synk): nn.Dropout(keep_prob) is implemented as identity (eval mode);
    # training-mode stochastic masking would need pltpu.prng_* in the kernel.
    print("KERNEL_OK")
</pallas_src>

<mosaic_0001>
module attributes {stable_mosaic.version = 11 : i64} {
  func.func @cnn_nlp_kernel(%arg0: i32, %arg1: memref<128x8xi32, #tpu.memory_space<vmem>>, %arg2: memref<128x64xbf16, #tpu.memory_space<vmem>>, %arg3: memref<1x16xf32, #tpu.memory_space<vmem>>, %arg4: memref<2x16xf32, #tpu.memory_space<vmem>>, %arg5: memref<2x1xf32, #tpu.memory_space<vmem>>, %arg6: memref<2x128xf32, #tpu.memory_space<vmem>>) attributes {dimension_semantics = [#tpu.dimension_semantics<parallel>], iteration_bounds = array<i64: 2>, scalar_prefetch = 0 : i64, scratch_operands = 0 : i64, tpu.core_type = #tpu.core_type<tc>, window_params = [{transform_indices = @transform_0, window_bounds = array<i64: 128, 8>}, {pipeline_mode = #tpu.pipeline_mode<synchronous>, transform_indices = @transform_1, window_bounds = array<i64: 128, 64>}, {pipeline_mode = #tpu.pipeline_mode<synchronous>, transform_indices = @transform_2, window_bounds = array<i64: 1, 16>}, {pipeline_mode = #tpu.pipeline_mode<synchronous>, transform_indices = @transform_3, window_bounds = array<i64: 2, 16>}, {pipeline_mode = #tpu.pipeline_mode<synchronous>, transform_indices = @transform_4, window_bounds = array<i64: 2, 1>}, {transform_indices = @transform_5, window_bounds = array<i64: 2, 128>}]} {
    %c0 = arith.constant 0 : index
    %c0_0 = arith.constant 0 : index
    %0 = vector.load %arg1[%c0, %c0_0] : memref<128x8xi32, #tpu.memory_space<vmem>>, vector<128x8xi32>
    %c0_1 = arith.constant 0 : index
    %c0_2 = arith.constant 0 : index
    %1 = vector.load %arg2[%c0_1, %c0_2] : memref<128x64xbf16, #tpu.memory_space<vmem>>, vector<128x64xbf16>
    %2 = tpu.iota {dimensions = array<i32: 1>} : vector<128x128xi32>
    %3 = vector.extract_strided_slice %0 {offsets = [0, 0], sizes = [128, 1], strides = [1, 1]} : vector<128x8xi32> to vector<128x1xi32>
    %4 = vector.broadcast %3 : vector<128x1xi32> to vector<128x128xi32>
    %5 = arith.cmpi eq, %2, %4 : vector<128x128xi32>
    %cst = arith.constant 1.000000e+00 : f32
    %cst_3 = arith.constant 0.000000e+00 : f32
    %6 = vector.broadcast %cst : f32 to vector<128x128xf32>
    %7 = vector.broadcast %cst_3 : f32 to vector<128x128xf32>
    %8 = arith.select %5, %6, %7 : vector<128x128xi1>, vector<128x128xf32>
    %9 = arith.truncf %8 : vector<128x128xf32> to vector<128x128xbf16>
    %cst_4 = arith.constant dense<0.000000e+00> : vector<128x64xf32>
    %10 = tpu.matmul %9, %1, %cst_4 {dimension_numbers = #tpu.dot_dimension_numbers<[1], [0], [0], [1], [0, 0, 1, 1], [], []>} : vector<128x128xbf16>, vector<128x64xbf16>, vector<128x64xf32> -> vector<128x64xf32>
    %11 = vector.extract_strided_slice %0 {offsets = [0, 1], sizes = [128, 1], strides = [1, 1]} : vector<128x8xi32> to vector<128x1xi32>
    %12 = vector.broadcast %11 : vector<128x1xi32> to vector<128x128xi32>
    %13 = arith.cmpi eq, %2, %12 : vector<128x128xi32>
    %cst_5 = arith.constant 1.000000e+00 : f32
    %cst_6 = arith.constant 0.000000e+00 : f32
    %14 = vector.broadcast %cst_5 : f32 to vector<128x128xf32>
    %15 = vector.broadcast %cst_6 : f32 to vector<128x128xf32>
    %16 = arith.select %13, %14, %15 : vector<128x128xi1>, vector<128x128xf32>
    %17 = arith.truncf %16 : vector<128x128xf32> to vector<128x128xbf16>
    %cst_7 = arith.constant dense<0.000000e+00> : vector<128x64xf32>
    %18 = tpu.matmul %17, %1, %cst_7 {dimension_numbers = #tpu.dot_dimension_numbers<[1], [0], [0], [1], [0, 0, 1, 1], [], []>} : vector<128x128xbf16>, vector<128x64xbf16>, vector<128x64xf32> -> vector<128x64xf32>
    %19 = vector.extract_strided_slice %0 {offsets = [0, 2], sizes = [128, 1], strides = [1, 1]} : vector<128x8xi32> to vector<128x1xi32>
    %20 = vector.broadcast %19 : vector<128x1xi32> to vector<128x128xi32>
    %21 = arith.cmpi eq, %2, %20 : vector<128x128xi32>
    %cst_8 = arith.constant 1.000000e+00 : f32
    %cst_9 = arith.constant 0.000000e+00 : f32
    %22 = vector.broadcast %cst_8 : f32 to vector<128x128xf32>
    %23 = vector.broadcast %cst_9 : f32 to vector<128x128xf32>
    %24 = arith.select %21, %22, %23 : vector<128x128xi1>, vector<128x128xf32>
    %25 = arith.truncf %24 : vector<128x128xf32> to vector<128x128xbf16>
    %cst_10 = arith.constant dense<0.000000e+00> : vector<128x64xf32>
    %26 = tpu.matmul %25, %1, %cst_10 {dimension_numbers = #tpu.dot_dimension_numbers<[1], [0], [0], [1], [0, 0, 1, 1], [], []>} : vector<128x128xbf16>, vector<128x64xbf16>, vector<128x64xf32> -> vector<128x64xf32>
    %27 = vector.extract_strided_slice %0 {offsets = [0, 3], sizes = [128, 1], strides = [1, 1]} : vector<128x8xi32> to vector<128x1xi32>
    %28 = vector.broadcast %27 : vector<128x1xi32> to vector<128x128xi32>
    %29 = arith.cmpi eq, %2, %28 : vector<128x128xi32>
    %cst_11 = arith.constant 1.000000e+00 : f32
    %cst_12 = arith.constant 0.000000e+00 : f32
    %30 = vector.broadcast %cst_11 : f32 to vector<128x128xf32>
    %31 = vector.broadcast %cst_12 : f32 to vector<128x128xf32>
    %32 = arith.select %29, %30, %31 : vector<128x128xi1>, vector<128x128xf32>
    %33 = arith.truncf %32 : vector<128x128xf32> to vector<128x128xbf16>
    %cst_13 = arith.constant dense<0.000000e+00> : vector<128x64xf32>
    %34 = tpu.matmul %33, %1, %cst_13 {dimension_numbers = #tpu.dot_dimension_numbers<[1], [0], [0], [1], [0, 0, 1, 1], [], []>} : vector<128x128xbf16>, vector<128x64xbf16>, vector<128x64xf32> -> vector<128x64xf32>
    %35 = vector.extract_strided_slice %0 {offsets = [0, 4], sizes = [128, 1], strides = [1, 1]} : vector<128x8xi32> to vector<128x1xi32>
    %36 = vector.broadcast %35 : vector<128x1xi32> to vector<128x128xi32>
    %37 = arith.cmpi eq, %2, %36 : vector<128x128xi32>
    %cst_14 = arith.constant 1.000000e+00 : f32
    %cst_15 = arith.constant 0.000000e+00 : f32
    %38 = vector.broadcast %cst_14 : f32 to vector<128x128xf32>
    %39 = vector.broadcast %cst_15 : f32 to vector<128x128xf32>
    %40 = arith.select %37, %38, %39 : vector<128x128xi1>, vector<128x128xf32>
    %41 = arith.truncf %40 : vector<128x128xf32> to vector<128x128xbf16>
    %cst_16 = arith.constant dense<0.000000e+00> : vector<128x64xf32>
    %42 = tpu.matmul %41, %1, %cst_16 {dimension_numbers = #tpu.dot_dimension_numbers<[1], [0], [0], [1], [0, 0, 1, 1], [], []>} : vector<128x128xbf16>, vector<128x64xbf16>, vector<128x64xf32> -> vector<128x64xf32>
    %43 = vector.extract_strided_slice %0 {offsets = [0, 5], sizes = [128, 1], strides = [1, 1]} : vector<128x8xi32> to vector<128x1xi32>
    %44 = vector.broadcast %43 : vector<128x1xi32> to vector<128x128xi32>
    %45 = arith.cmpi eq, %2, %44 : vector<128x128xi32>
    %cst_17 = arith.constant 1.000000e+00 : f32
    %cst_18 = arith.constant 0.000000e+00 : f32
    %46 = vector.broadcast %cst_17 : f32 to vector<128x128xf32>
    %47 = vector.broadcast %cst_18 : f32 to vector<128x128xf32>
    %48 = arith.select %45, %46, %47 : vector<128x128xi1>, vector<128x128xf32>
    %49 = arith.truncf %48 : vector<128x128xf32> to vector<128x128xbf16>
    %cst_19 = arith.constant dense<0.000000e+00> : vector<128x64xf32>
    %50 = tpu.matmul %49, %1, %cst_19 {dimension_numbers = #tpu.dot_dimension_numbers<[1], [0], [0], [1], [0, 0, 1, 1], [], []>} : vector<128x128xbf16>, vector<128x64xbf16>, vector<128x64xf32> -> vector<128x64xf32>
    %51 = vector.extract_strided_slice %0 {offsets = [0, 6], sizes = [128, 1], strides = [1, 1]} : vector<128x8xi32> to vector<128x1xi32>
    %52 = vector.broadcast %51 : vector<128x1xi32> to vector<128x128xi32>
    %53 = arith.cmpi eq, %2, %52 : vector<128x128xi32>
    %cst_20 = arith.constant 1.000000e+00 : f32
    %cst_21 = arith.constant 0.000000e+00 : f32
    %54 = vector.broadcast %cst_20 : f32 to vector<128x128xf32>
    %55 = vector.broadcast %cst_21 : f32 to vector<128x128xf32>
    %56 = arith.select %53, %54, %55 : vector<128x128xi1>, vector<128x128xf32>
    %57 = arith.truncf %56 : vector<128x128xf32> to vector<128x128xbf16>
    %cst_22 = arith.constant dense<0.000000e+00> : vector<128x64xf32>
    %58 = tpu.matmul %57, %1, %cst_22 {dimension_numbers = #tpu.dot_dimension_numbers<[1], [0], [0], [1], [0, 0, 1, 1], [], []>} : vector<128x128xbf16>, vector<128x64xbf16>, vector<128x64xf32> -> vector<128x64xf32>
    %59 = vector.extract_strided_slice %0 {offsets = [0, 7], sizes = [128, 1], strides = [1, 1]} : vector<128x8xi32> to vector<128x1xi32>
    %60 = vector.broadcast %59 : vector<128x1xi32> to vector<128x128xi32>
    %61 = arith.cmpi eq, %2, %60 : vector<128x128xi32>
    %cst_23 = arith.constant 1.000000e+00 : f32
    %cst_24 = arith.constant 0.000000e+00 : f32
    %62 = vector.broadcast %cst_23 : f32 to vector<128x128xf32>
    %63 = vector.broadcast %cst_24 : f32 to vector<128x128xf32>
    %64 = arith.select %61, %62, %63 : vector<128x128xi1>, vector<128x128xf32>
    %65 = arith.truncf %64 : vector<128x128xf32> to vector<128x128xbf16>
    %cst_25 = arith.constant dense<0.000000e+00> : vector<128x64xf32>
    %66 = tpu.matmul %65, %1, %cst_25 {dimension_numbers = #tpu.dot_dimension_numbers<[1], [0], [0], [1], [0, 0, 1, 1], [], []>} : vector<128x128xbf16>, vector<128x64xbf16>, vector<128x64xf32> -> vector<128x64xf32>
    %c0_26 = arith.constant 0 : index
    %c0_27 = arith.constant 0 : index
    %67 = vector.load %arg3[%c0_26, %c0_27] : memref<1x16xf32, #tpu.memory_space<vmem>>, vector<1x16xf32>
    %68 = vector.shape_cast %67 : vector<1x16xf32> to vector<1x16xf32>
    %69 = vector.broadcast %68 : vector<1x16xf32> to vector<128x16xf32>
    %70 = vector.extract_strided_slice %10 {offsets = [0, 0], sizes = [128, 16], strides = [1, 1]} : vector<128x64xf32> to vector<128x16xf32>
    %71 = vector.extract_strided_slice %18 {offsets = [0, 16], sizes = [128, 16], strides = [1, 1]} : vector<128x64xf32> to vector<128x16xf32>
    %72 = arith.addf %70, %71 : vector<128x16xf32>
    %73 = vector.extract_strided_slice %26 {offsets = [0, 32], sizes = [128, 16], strides = [1, 1]} : vector<128x64xf32> to vector<128x16xf32>
    %74 = arith.addf %72, %73 : vector<128x16xf32>
    %75 = vector.extract_strided_slice %34 {offsets = [0, 48], sizes = [128, 16], strides = [1, 1]} : vector<128x64xf32> to vector<128x16xf32>
    %76 = arith.addf %74, %75 : vector<128x16xf32>
    %77 = arith.addf %76, %69 : vector<128x16xf32>
    %cst_28 = arith.constant 0.000000e+00 : f32
    %78 = vector.broadcast %cst_28 : f32 to vector<128x16xf32>
    %79 = arith.maximumf %77, %78 : vector<128x16xf32>
    %80 = vector.extract_strided_slice %18 {offsets = [0, 0], sizes = [128, 16], strides = [1, 1]} : vector<128x64xf32> to vector<128x16xf32>
    %81 = vector.extract_strided_slice %26 {offsets = [0, 16], sizes = [128, 16], strides = [1, 1]} : vector<128x64xf32> to vector<128x16xf32>
    %82 = arith.addf %80, %81 : vector<128x16xf32>
    %83 = vector.extract_strided_slice %34 {offsets = [0, 32], sizes = [128, 16], strides = [1, 1]} : vector<128x64xf32> to vector<128x16xf32>
    %84 = arith.addf %82, %83 : vector<128x16xf32>
    %85 = vector.extract_strided_slice %42 {offsets = [0, 48], sizes = [128, 16], strides = [1, 1]} : vector<128x64xf32> to vector<128x16xf32>
    %86 = arith.addf %84, %85 : vector<128x16xf32>
    %87 = arith.addf %86, %69 : vector<128x16xf32>
    %cst_29 = arith.constant 0.000000e+00 : f32
    %88 = vector.broadcast %cst_29 : f32 to vector<128x16xf32>
    %89 = arith.maximumf %87, %88 : vector<128x16xf32>
    %90 = arith.maximumf %79, %89 : vector<128x16xf32>
    %91 = vector.extract_strided_slice %26 {offsets = [0, 0], sizes = [128, 16], strides = [1, 1]} : vector<128x64xf32> to vector<128x16xf32>
    %92 = vector.extract_strided_slice %34 {offsets = [0, 16], sizes = [128, 16], strides = [1, 1]} : vector<128x64xf32> to vector<128x16xf32>
    %93 = arith.addf %91, %92 : vector<128x16xf32>
    %94 = vector.extract_strided_slice %42 {offsets = [0, 32], sizes = [128, 16], strides = [1, 1]} : vector<128x64xf32> to vector<128x16xf32>
    %95 = arith.addf %93, %94 : vector<128x16xf32>
    %96 = vector.extract_strided_slice %50 {offsets = [0, 48], sizes = [128, 16], strides = [1, 1]} : vector<128x64xf32> to vector<128x16xf32>
    %97 = arith.addf %95, %96 : vector<128x16xf32>
    %98 = arith.addf %97, %69 : vector<128x16xf32>
    %cst_30 = arith.constant 0.000000e+00 : f32
    %99 = vector.broadcast %cst_30 : f32 to vector<128x16xf32>
    %100 = arith.maximumf %98, %99 : vector<128x16xf32>
    %101 = arith.maximumf %90, %100 : vector<128x16xf32>
    %102 = vector.extract_strided_slice %34 {offsets = [0, 0], sizes = [128, 16], strides = [1, 1]} : vector<128x64xf32> to vector<128x16xf32>
    %103 = vector.extract_strided_slice %42 {offsets = [0, 16], sizes = [128, 16], strides = [1, 1]} : vector<128x64xf32> to vector<128x16xf32>
    %104 = arith.addf %102, %103 : vector<128x16xf32>
    %105 = vector.extract_strided_slice %50 {offsets = [0, 32], sizes = [128, 16], strides = [1, 1]} : vector<128x64xf32> to vector<128x16xf32>
    %106 = arith.addf %104, %105 : vector<128x16xf32>
    %107 = vector.extract_strided_slice %58 {offsets = [0, 48], sizes = [128, 16], strides = [1, 1]} : vector<128x64xf32> to vector<128x16xf32>
    %108 = arith.addf %106, %107 : vector<128x16xf32>
    %109 = arith.addf %108, %69 : vector<128x16xf32>
    %cst_31 = arith.constant 0.000000e+00 : f32
    %110 = vector.broadcast %cst_31 : f32 to vector<128x16xf32>
    %111 = arith.maximumf %109, %110 : vector<128x16xf32>
    %112 = arith.maximumf %101, %111 : vector<128x16xf32>
    %113 = vector.extract_strided_slice %42 {offsets = [0, 0], sizes = [128, 16], strides = [1, 1]} : vector<128x64xf32> to vector<128x16xf32>
    %114 = vector.extract_strided_slice %50 {offsets = [0, 16], sizes = [128, 16], strides = [1, 1]} : vector<128x64xf32> to vector<128x16xf32>
    %115 = arith.addf %113, %114 : vector<128x16xf32>
    %116 = vector.extract_strided_slice %58 {offsets = [0, 32], sizes = [128, 16], strides = [1, 1]} : vector<128x64xf32> to vector<128x16xf32>
    %117 = arith.addf %115, %116 : vector<128x16xf32>
    %118 = vector.extract_strided_slice %66 {offsets = [0, 48], sizes = [128, 16], strides = [1, 1]} : vector<128x64xf32> to vector<128x16xf32>
    %119 = arith.addf %117, %118 : vector<128x16xf32>
    %120 = arith.addf %119, %69 : vector<128x16xf32>
    %cst_32 = arith.constant 0.000000e+00 : f32
    %121 = vector.broadcast %cst_32 : f32 to vector<128x16xf32>
    %122 = arith.maximumf %120, %121 : vector<128x16xf32>
    %123 = arith.maximumf %112, %122 : vector<128x16xf32>
    %c0_33 = arith.constant 0 : index
    %c0_34 = arith.constant 0 : index
    %124 = vector.load %arg4[%c0_33, %c0_34] : memref<2x16xf32, #tpu.memory_space<vmem>>, vector<2x16xf32>
    %cst_35 = arith.constant dense<0.000000e+00> : vector<2x128xf32>
    %125 = tpu.matmul %124, %123, %cst_35 {dimension_numbers = #tpu.dot_dimension_numbers<[1], [1], [0], [0], [0, 0, 1, 0], [], []>} : vector<2x16xf32>, vector<128x16xf32>, vector<2x128xf32> -> vector<2x128xf32>
    %c0_36 = arith.constant 0 : index
    %c0_37 = arith.constant 0 : index
    %126 = vector.load %arg5[%c0_36, %c0_37] : memref<2x1xf32, #tpu.memory_space<vmem>>, vector<2x1xf32>
    %127 = vector.broadcast %126 : vector<2x1xf32> to vector<2x128xf32>
    %128 = arith.addf %125, %127 : vector<2x128xf32>
    %c0_38 = arith.constant 0 : index
    %c0_39 = arith.constant 0 : index
    %129 = vector.load %arg6[%c0_38, %c0_39] : memref<2x128xf32, #tpu.memory_space<vmem>>, vector<2x128xf32>
    tpu.vector_store %arg6[%c0_38, %c0_39], %128 {strides = array<i32>} : memref<2x128xf32, #tpu.memory_space<vmem>>, vector<2x128xf32>,
    return
  }
  func.func @transform_0(%arg0: i32) -> (i32, i32) {
    %c0_i32 = arith.constant 0 : i32
    %c0_i32_0 = arith.constant 0 : i32
    return %arg0, %c0_i32 : i32, i32
  }
  func.func @transform_1(%arg0: i32) -> (i32, i32) {
    %c0_i32 = arith.constant 0 : i32
    %c0_i32_0 = arith.constant 0 : i32
    %c0_i32_1 = arith.constant 0 : i32
    return %c0_i32, %c0_i32_0 : i32, i32
  }
  func.func @transform_2(%arg0: i32) -> (i32, i32) {
    %c0_i32 = arith.constant 0 : i32
    %c0_i32_0 = arith.constant 0 : i32
    %c0_i32_1 = arith.constant 0 : i32
    return %c0_i32, %c0_i32_0 : i32, i32
  }
  func.func @transform_3(%arg0: i32) -> (i32, i32) {
    %c0_i32 = arith.constant 0 : i32
    %c0_i32_0 = arith.constant 0 : i32
    %c0_i32_1 = arith.constant 0 : i32
    return %c0_i32, %c0_i32_0 : i32, i32
  }
  func.func @transform_4(%arg0: i32) -> (i32, i32) {
    %c0_i32 = arith.constant 0 : i32
    %c0_i32_0 = arith.constant 0 : i32
    %c0_i32_1 = arith.constant 0 : i32
    return %c0_i32, %c0_i32_0 : i32, i32
  }
  func.func @transform_5(%arg0: i32) -> (i32, i32) {
    %c0_i32 = arith.constant 0 : i32
    %c0_i32_0 = arith.constant 0 : i32
    return %c0_i32, %arg0 : i32, i32
  }
}

</mosaic_0001>

<llo_original>
// kernel: tpu_custom_call.1
$region0: #{tpu_custom_call.1}
  #allocation0 [shape = 'u32[]', space=smem, size = 0x4, offset = 0x4, fixed_abs, tag = 'smem constant byte address 0x4 - core index']
  #allocation1 [shape = 'u32[144,128]{1,0:T(1,128)}', space=vmem, size = 0x12000, scoped, tag = 'internal scratch']
  %s0 = inlined_call_operand.vmem [shape: s32[256,8], index: 0, kind: input, shape index: {}]
  %s1 = inlined_call_operand.vmem [shape: bf16[128,64], index: 1, kind: input, shape index: {}]
  %s2 = inlined_call_operand.vmem [shape: f32[1,16], index: 2, kind: input, shape index: {}]
  %s3 = inlined_call_operand.vmem [shape: f32[2,16], index: 3, kind: input, shape index: {}]
  %s4 = inlined_call_operand.vmem [shape: f32[2,1], index: 4, kind: input, shape index: {}]
  %s5 = inlined_call_operand.hbm [shape: f32[2,256], index: 5, kind: output, shape index: {}]
  %s6 = sld [smem:[#allocation0]]
  $region53: #{tpu_custom_call.1} parent=0
    _
  %s8 = ssub.s32 1, %s6
  %s9 = scalar_select 0, %s8, %s6
  $region1: #{tpu_custom_call.1} parent=0
    #allocation2 [shape = 'u8[2048]{0}', space=vmem, size = 0x800, scoped, tag = 'output window, operand 0']
    #allocation3 [shape = 's32[2]{0}', space=sflag, size = 0x8, scoped, tag = 'scoped memory for tpu_custom_call.1']
    %10 = vsyncpa [#allocation3], 0
    %s11 = scalar_lea.sflag [#allocation3], 1
    %12 = vsyncpa %s11, 0
    loop: start=0, step=1, limit=4
    $region2: #{tpu_custom_call.1} parent=1 // loop_pre_header
      _
    $region3: #{tpu_custom_call.1} parent=1 // loop_header
      %s14 = sphi 0, %s18
      %p15 = scmp.ge.s32.totalorder %s14, 4
      %s24 = sphi 0, %s26
      %s27 = sphi 0, %s24
      %s28 = sphi 0, %s27
      %s44 = sphi 0, %s28
      %s48 = sphi 0, %s48
      %s50 = sphi 0, %s48
      %s51 = sphi 0, %s50
      %s65 = sphi 0, %s51
      %s69 = sphi 0, %s69
      %s71 = sphi 0, %s69
      %s72 = sphi 0, %s71
      %s86 = sphi 0, %s72
      %s90 = sphi 0, %s90
      %s92 = sphi 0, %s90
      %s93 = sphi 0, %s92
      %s107 = sphi 0, %s93
      %s111 = sphi 0, %s111
      %s113 = sphi 0, %s111
      %s114 = sphi 0, %s113
      %s128 = sphi 0, %s114
      %s134 = sphi 0, %s136
      %s137 = sphi 0, %s134
      %s138 = sphi 0, %s137
      %s154 = sphi 0, %s138
    $region4: #{tpu_custom_call.1} parent=1 // loop_header_branch
      %17 = sbr.rel (%p15) target = $region8
    $region5: #{tpu_custom_call.1} parent=1 // loop_body
      %s19 = ssub.s32 %s14, 1
      %s20 = ssub.s32 %s14, 2
      %s21 = sadd.s32 %s14, 1
      %s22 = ssub.s32 %s14, %s21
      %p23 = scmp.eq.s32.totalorder %s22, 0
      %s25 = sadd.s32 %s24, 1
      %s26 = scalar_select %p23, %s24, %s25
      %p29 = pneg %p23
      %p30 = scmp.eq.s32.totalorder %s14, 1
      %p31 = por %p29, %p30
      %p32 = scmp.ne.s32.totalorder %s24, %s27
      %p33 = scmp.eq.s32.totalorder %s14, 0
      %p34 = por %p32, %p33
      %p35 = scmp.ne.s32.totalorder %s24, %s27
      %p36 = scmp.eq.s32.totalorder %s19, 1
      %p37 = por %p35, %p36
      %p38 = scmp.ne.s32.totalorder %s27, %s28
      %p39 = scmp.eq.s32.totalorder %s19, 0
      %p40 = por %p38, %p39
      %p41 = scmp.ne.s32.totalorder %s27, %s28
      %p42 = scmp.eq.s32.totalorder %s20, 1
      %p43 = por %p41, %p42
      %p45 = scmp.ne.s32.totalorder %s28, %s44
      %p46 = scmp.eq.s32.totalorder %s20, 0
      %p47 = por %p45, %p46
      %s49 = sadd.s32 %s48, 1
      %p52 = scmp.eq.s32.totalorder %s14, 1
      %p53 = scmp.ne.s32.totalorder %s48, %s50
      %p54 = scmp.eq.s32.totalorder %s14, 0
      %p55 = por %p53, %p54
      %p56 = scmp.ne.s32.totalorder %s48, %s50
      %p57 = scmp.eq.s32.totalorder %s19, 1
      %p58 = por %p56, %p57
      %p59 = scmp.ne.s32.totalorder %s50, %s51
      %p60 = scmp.eq.s32.totalorder %s19, 0
      %p61 = por %p59, %p60
      %p62 = scmp.ne.s32.totalorder %s50, %s51
      %p63 = scmp.eq.s32.totalorder %s20, 1
      %p64 = por %p62, %p63
      %p66 = scmp.ne.s32.totalorder %s51, %s65
      %p67 = scmp.eq.s32.totalorder %s20, 0
      %p68 = por %p66, %p67
      %s70 = sadd.s32 %s69, 1
      %p73 = scmp.eq.s32.totalorder %s14, 1
      %p74 = scmp.ne.s32.totalorder %s69, %s71
      %p75 = scmp.eq.s32.totalorder %s14, 0
      %p76 = por %p74, %p75
      %p77 = scmp.ne.s32.totalorder %s69, %s71
      %p78 = scmp.eq.s32.totalorder %s19, 1
      %p79 = por %p77, %p78
      %p80 = scmp.ne.s32.totalorder %s71, %s72
      %p81 = scmp.eq.s32.totalorder %s19, 0
      %p82 = por %p80, %p81
      %p83 = scmp.ne.s32.totalorder %s71, %s72
      %p84 = scmp.eq.s32.totalorder %s20, 1
      %p85 = por %p83, %p84
      %p87 = scmp.ne.s32.totalorder %s72, %s86
      %p88 = scmp.eq.s32.totalorder %s20, 0
      %p89 = por %p87, %p88
      %s91 = sadd.s32 %s90, 1
      %p94 = scmp.eq.s32.totalorder %s14, 1
      %p95 = scmp.ne.s32.totalorder %s90, %s92
      %p96 = scmp.eq.s32.totalorder %s14, 0
      %p97 = por %p95, %p96
      %p98 = scmp.ne.s32.totalorder %s90, %s92
      %p99 = scmp.eq.s32.totalorder %s19, 1
      %p100 = por %p98, %p99
      %p101 = scmp.ne.s32.totalorder %s92, %s93
      %p102 = scmp.eq.s32.totalorder %s19, 0
      %p103 = por %p101, %p102
      %p104 = scmp.ne.s32.totalorder %s92, %s93
      %p105 = scmp.eq.s32.totalorder %s20, 1
      %p106 = por %p104, %p105
      %p108 = scmp.ne.s32.totalorder %s93, %s107
      %p109 = scmp.eq.s32.totalorder %s20, 0
      %p110 = por %p108, %p109
      %s112 = sadd.s32 %s111, 1
      %p115 = scmp.eq.s32.totalorder %s14, 1
      %p116 = scmp.ne.s32.totalorder %s111, %s113
      %p117 = scmp.eq.s32.totalorder %s14, 0
      %p118 = por %p116, %p117
      %p119 = scmp.ne.s32.totalorder %s111, %s113
      %p120 = scmp.eq.s32.totalorder %s19, 1
      %p121 = por %p119, %p120
      %p122 = scmp.ne.s32.totalorder %s113, %s114
      %p123 = scmp.eq.s32.totalorder %s19, 0
      %p124 = por %p122, %p123
      %p125 = scmp.ne.s32.totalorder %s113, %s114
      %p126 = scmp.eq.s32.totalorder %s20, 1
      %p127 = por %p125, %p126
      %p129 = scmp.ne.s32.totalorder %s114, %s128
      %p130 = scmp.eq.s32.totalorder %s20, 0
      %p131 = por %p129, %p130
      %s132 = ssub.s32 %s14, %s21
      %p133 = scmp.eq.s32.totalorder %s132, 0
      %s135 = sadd.s32 %s134, 1
      %s136 = scalar_select %p133, %s134, %s135
      %p139 = pneg %p133
      %p140 = scmp.eq.s32.totalorder %s14, 1
      %p141 = por %p139, %p140
      %p142 = scmp.ne.s32.totalorder %s134, %s137
      %p143 = scmp.eq.s32.totalorder %s14, 0
      %p144 = por %p142, %p143
      %p145 = scmp.ne.s32.totalorder %s134, %s137
      %p146 = scmp.eq.s32.totalorder %s19, 1
      %p147 = por %p145, %p146
      %p148 = scmp.ne.s32.totalorder %s137, %s138
      %p149 = scmp.eq.s32.totalorder %s19, 0
      %p150 = por %p148, %p149
      %p151 = scmp.ne.s32.totalorder %s137, %s138
      %p152 = scmp.eq.s32.totalorder %s20, 1
      %p153 = por %p151, %p152
      %p155 = scmp.ne.s32.totalorder %s138, %s154
      %p156 = scmp.eq.s32.totalorder %s20, 0
      %p157 = por %p155, %p156
      %p158 = scmp.le.s32.totalorder 1, %s14
      %p159 = scmp.lt.s32.totalorder %s14, 3
      %p160 = pnand %p158, %p159
      %p161 = pneg %p160
      // Predicated region
      $region9: #{tpu_custom_call.1} parent=5 // pred_check
        _
      $region10: #{tpu_custom_call.1} parent=5 // pred_check_branch
        %163 = sbr.rel (%p160) target = $region12
      $region11: #{tpu_custom_call.1} parent=5 // pred_region
        %s164 = ssub.s32 %s14, 1
        // Predicated region
        $region13: #{tpu_custom_call.1} parent=11 // pred_check
          %p165 = pneg %p61
        $region14: #{tpu_custom_call.1} parent=11 // pred_check_branch
          %167 = sbr.rel (%p165) target = $region16
        $region15: #{tpu_custom_call.1} parent=11 // pred_region
          _
        $region16: #{tpu_custom_call.1} parent=11 // pred_fallthru
          _
        // Predicated region
        $region17: #{tpu_custom_call.1} parent=11 // pred_check
          %p168 = pneg %p82
        $region18: #{tpu_custom_call.1} parent=11 // pred_check_branch
          %170 = sbr.rel (%p168) target = $region20
        $region19: #{tpu_custom_call.1} parent=11 // pred_region
          _
        $region20: #{tpu_custom_call.1} parent=11 // pred_fallthru
          _
        // Predicated region
        $region21: #{tpu_custom_call.1} parent=11 // pred_check
          %p171 = pneg %p103
        $region22: #{tpu_custom_call.1} parent=11 // pred_check_branch
          %173 = sbr.rel (%p171) target = $region24
        $region23: #{tpu_custom_call.1} parent=11 // pred_region
          _
        $region24: #{tpu_custom_call.1} parent=11 // pred_fallthru
          _
        // Predicated region
        $region25: #{tpu_custom_call.1} parent=11 // pred_check
          %p174 = pneg %p124
        $region26: #{tpu_custom_call.1} parent=11 // pred_check_branch
          %176 = sbr.rel (%p174) target = $region28
        $region27: #{tpu_custom_call.1} parent=11 // pred_region
          _
        $region28: #{tpu_custom_call.1} parent=11 // pred_fallthru
          _
      $region12: #{tpu_custom_call.1} parent=5 // pred_fallthru
        _
      %p177 = scmp.lt.s32.totalorder %s14, 2
      // Predicated region
      $region29: #{tpu_custom_call.1} parent=5 // pred_check
        %p178 = pneg %p177
      $region30: #{tpu_custom_call.1} parent=5 // pred_check_branch
        %180 = sbr.rel (%p178) target = $region32
      $region31: #{tpu_custom_call.1} parent=5 // pred_region
        // Predicated region
        $region33: #{tpu_custom_call.1} parent=31 // pred_check
          %p181 = pneg %p34
        $region34: #{tpu_custom_call.1} parent=31 // pred_check_branch
          %183 = sbr.rel (%p181) target = $region36
        $region35: #{tpu_custom_call.1} parent=31 // pred_region
          %s184 = smul.u32 16, %s14
          %p185 = scmp.lt.s32.totalorder %s184, 31
          %s186 = scalar_select %p185, %s184, 31
          %s187 = smul.addr %s186, 8
          %s188 = scalar_lea.vmem %s0, %s187
          %s189 = smul.u32 16, %s14
        $region36: #{tpu_custom_call.1} parent=31 // pred_fallthru
          _
      $region32: #{tpu_custom_call.1} parent=5 // pred_fallthru
        _
      %p190 = scmp.le.s32.totalorder 1, %s14
      %p191 = scmp.lt.s32.totalorder %s14, 3
      %p192 = pnand %p190, %p191
      %p193 = pneg %p192
      // Predicated region
      $region37: #{tpu_custom_call.1} parent=5 // pred_check
        _
      $region38: #{tpu_custom_call.1} parent=5 // pred_check_branch
        %195 = sbr.rel (%p192) target = $region40
      $region39: #{tpu_custom_call.1} parent=5 // pred_region
        %s196 = ssub.s32 %s14, 1
        %s197 = smul.u32 16, %s19
        %p198 = scmp.lt.s32.totalorder %s197, 31
        %s199 = scalar_select %p198, %s197, 31
        %s200 = smul.addr %s199, 8
        %s201 = scalar_lea.vmem %s0, %s200
        %p202 = pneg %p40
        %p203 = pneg %p37
        %p204 = pneg %p61
        %p205 = pneg %p58
        %p206 = pneg %p82
        %p207 = pneg %p79
        %p208 = pneg %p103
        %p209 = pneg %p100
        %p210 = pneg %p124
        %p211 = pneg %p121
        %p212 = pneg %p150
        %p213 = pneg %p147
        %s214 = sand.u32 %s137, 1
        %s215 = scalar_lea.sflag [#allocation3], %s214
        %s216 = sand.u32 %s137, 1
        %s217 = smul.addr %s216, 2
        %s218 = scalar_lea.vmem [#allocation2], %s217
        %s219 = smul.u32 16, %s19
        %p220 = scmp.lt.s32.totalorder %s219, 31
        %s221 = scalar_select %p220, %s219, 31
        %s222 = smul.addr %s221, 8
        %s223 = scalar_lea.vmem %s0, %s222
        %s224 = smul.u32 16, %s19
        %v226 = vld [vmem:[%s223] sm:$0xff]
        %v227 = vld [vmem:[%s223 + $0x8] sm:$0xff]
        %v228 = vld [vmem:[%s223 + $0x10] sm:$0xff]
        %v229 = vld [vmem:[%s223 + $0x18] sm:$0xff]
        %v230 = vld [vmem:[%s223 + $0x20] sm:$0xff]
        %v231 = vld [vmem:[%s223 + $0x28] sm:$0xff]
        %v232 = vld [vmem:[%s223 + $0x30] sm:$0xff]
        %v233 = vld [vmem:[%s223 + $0x38] sm:$0xff]
        %v234 = vld [vmem:[%s223 + $0x40] sm:$0xff]
        %v235 = vld [vmem:[%s223 + $0x48] sm:$0xff]
        %v236 = vld [vmem:[%s223 + $0x50] sm:$0xff]
        %v237 = vld [vmem:[%s223 + $0x58] sm:$0xff]
        %v238 = vld [vmem:[%s223 + $0x60] sm:$0xff]
        %v239 = vld [vmem:[%s223 + $0x68] sm:$0xff]
        %v240 = vld [vmem:[%s223 + $0x70] sm:$0xff]
        %v241 = vld [vmem:[%s223 + $0x78] sm:$0xff]
        %v242 = vld [vmem:[%s1] sm:$0xf]
        %v243 = vld [vmem:[%s1 + $0x4] sm:$0xf]
        %v244 = vld [vmem:[%s1 + $0x8] sm:$0xf]
        %v245 = vld [vmem:[%s1 + $0xc] sm:$0xf]
        %v246 = vld [vmem:[%s1 + $0x10] sm:$0xf]
        %v247 = vld [vmem:[%s1 + $0x14] sm:$0xf]
        %v248 = vld [vmem:[%s1 + $0x18] sm:$0xf]
        %v249 = vld [vmem:[%s1 + $0x1c] sm:$0xf]
        %v250 = vld [vmem:[%s1 + $0x20] sm:$0xf]
        %v251 = vld [vmem:[%s1 + $0x24] sm:$0xf]
        %v252 = vld [vmem:[%s1 + $0x28] sm:$0xf]
        %v253 = vld [vmem:[%s1 + $0x2c] sm:$0xf]
        %v254 = vld [vmem:[%s1 + $0x30] sm:$0xf]
        %v255 = vld [vmem:[%s1 + $0x34] sm:$0xf]
        %v256 = vld [vmem:[%s1 + $0x38] sm:$0xf]
        %v257 = vld [vmem:[%s1 + $0x3c] sm:$0xf]
        %v258 = vlaneseq
        %v259 = vand.u32 %v258, 127
        %260 = vset.pattern.permute.xlu0 0
        %261 = vperm.xlu0 %260, %v226
        %v262 = vpop.permute.xlu0 %261
        %263 = vset.pattern.permute.xlu0 0
        %264 = vperm.xlu0 %263, %v227
        %v265 = vpop.permute.xlu0 %264
        %266 = vset.pattern.permute.xlu0 0
        %267 = vperm.xlu0 %266, %v228
        %v268 = vpop.permute.xlu0 %267
        %269 = vset.pattern.permute.xlu0 0
        %270 = vperm.xlu0 %269, %v229
        %v271 = vpop.permute.xlu0 %270
        %272 = vset.pattern.permute.xlu0 0
        %273 = vperm.xlu0 %272, %v230
        %v274 = vpop.permute.xlu0 %273
        %275 = vset.pattern.permute.xlu0 0
        %276 = vperm.xlu0 %275, %v231
        %v277 = vpop.permute.xlu0 %276
        %278 = vset.pattern.permute.xlu0 0
        %279 = vperm.xlu0 %278, %v232
        %v280 = vpop.permute.xlu0 %279
        %281 = vset.pattern.permute.xlu0 0
        %282 = vperm.xlu0 %281, %v233
        %v283 = vpop.permute.xlu0 %282
        %284 = vset.pattern.permute.xlu0 0
        %285 = vperm.xlu0 %284, %v234
        %v286 = vpop.permute.xlu0 %285
        %287 = vset.pattern.permute.xlu0 0
        %288 = vperm.xlu0 %287, %v235
        %v289 = vpop.permute.xlu0 %288
        %290 = vset.pattern.permute.xlu0 0
        %291 = vperm.xlu0 %290, %v236
        %v292 = vpop.permute.xlu0 %291
        %293 = vset.pattern.permute.xlu0 0
        %294 = vperm.xlu0 %293, %v237
        %v295 = vpop.permute.xlu0 %294
        %296 = vset.pattern.permute.xlu0 0
        %297 = vperm.xlu0 %296, %v238
        %v298 = vpop.permute.xlu0 %297
        %299 = vset.pattern.permute.xlu0 0
        %300 = vperm.xlu0 %299, %v239
        %v301 = vpop.permute.xlu0 %300
        %302 = vset.pattern.permute.xlu0 0
        %303 = vperm.xlu0 %302, %v240
        %v304 = vpop.permute.xlu0 %303
        %305 = vset.pattern.permute.xlu0 0
        %306 = vperm.xlu0 %305, %v241
        %v307 = vpop.permute.xlu0 %306
        %vm308 = vcmp.eq.s32.totalorder %v259, %v262
        %vm309 = vcmp.eq.s32.totalorder %v259, %v265
        %vm310 = vcmp.eq.s32.totalorder %v259, %v268
        %vm311 = vcmp.eq.s32.totalorder %v259, %v271
        %vm312 = vcmp.eq.s32.totalorder %v259, %v274
        %vm313 = vcmp.eq.s32.totalorder %v259, %v277
        %vm314 = vcmp.eq.s32.totalorder %v259, %v280
        %vm315 = vcmp.eq.s32.totalorder %v259, %v283
        %vm316 = vcmp.eq.s32.totalorder %v259, %v286
        %vm317 = vcmp.eq.s32.totalorder %v259, %v289
        %vm318 = vcmp.eq.s32.totalorder %v259, %v292
        %vm319 = vcmp.eq.s32.totalorder %v259, %v295
        %vm320 = vcmp.eq.s32.totalorder %v259, %v298
        %vm321 = vcmp.eq.s32.totalorder %v259, %v301
        %vm322 = vcmp.eq.s32.totalorder %v259, %v304
        %vm323 = vcmp.eq.s32.totalorder %v259, %v307
        %v324 = vsel %vm308, 1.0, 0.0
        %v325 = vsel %vm309, 1.0, 0.0
        %v326 = vsel %vm310, 1.0, 0.0
        %v327 = vsel %vm311, 1.0, 0.0
        %v328 = vsel %vm312, 1.0, 0.0
        %v329 = vsel %vm313, 1.0, 0.0
        %v330 = vsel %vm314, 1.0, 0.0
        %v331 = vsel %vm315, 1.0, 0.0
        %v332 = vsel %vm316, 1.0, 0.0
        %v333 = vsel %vm317, 1.0, 0.0
        %v334 = vsel %vm318, 1.0, 0.0
        %v335 = vsel %vm319, 1.0, 0.0
        %v336 = vsel %vm320, 1.0, 0.0
        %v337 = vsel %vm321, 1.0, 0.0
        %v338 = vsel %vm322, 1.0, 0.0
        %v339 = vsel %vm323, 1.0, 0.0
        %v340 = vpack.c.bf16 %v325, %v324
        %v341 = vpack.c.bf16 %v327, %v326
        %v342 = vpack.c.bf16 %v329, %v328
        %v343 = vpack.c.bf16 %v331, %v330
        %v344 = vpack.c.bf16 %v333, %v332
        %v345 = vpack.c.bf16 %v335, %v334
        %v346 = vpack.c.bf16 %v337, %v336
        %v347 = vpack.c.bf16 %v339, %v338
        %v364 = vunpack.c.l.b16 %v242
        %v365 = vunpack.c.l.b16 %v243
        %v366 = vunpack.c.l.b16 %v244
        %v367 = vunpack.c.l.b16 %v245
        %v368 = vunpack.c.l.b16 %v246
        %v369 = vunpack.c.l.b16 %v247
        %v370 = vunpack.c.l.b16 %v248
        %v371 = vunpack.c.l.b16 %v249
        %v372 = vunpack.c.l.b16 %v250
        %v373 = vunpack.c.l.b16 %v251
        %v374 = vunpack.c.l.b16 %v252
        %v375 = vunpack.c.l.b16 %v253
        %v376 = vunpack.c.l.b16 %v254
        %v377 = vunpack.c.l.b16 %v255
        %v378 = vunpack.c.l.b16 %v256
        %v379 = vunpack.c.l.b16 %v257
        %v380 = vpack.c.b16 %v365, %v364
        %v381 = vpack.c.b16 %v367, %v366
        %v382 = vpack.c.b16 %v369, %v368
        %v383 = vpack.c.b16 %v371, %v370
        %v384 = vpack.c.b16 %v373, %v372
        %v385 = vpack.c.b16 %v375, %v374
        %v386 = vpack.c.b16 %v377, %v376
        %v387 = vpack.c.b16 %v379, %v378
        %396 = vmatprep.subr.bf16.mxu0 0
        %397 = vmatpush1.bf16.msra.mxu0 %v380
        %398 = vmatprep.subr.bf16.mxu0 0
        %399 = vmatpush1.bf16.msra.mxu0 %v381
        %400 = vmatprep.subr.bf16.mxu0 0
        %401 = vmatpush1.bf16.msra.mxu0 %v382
        %402 = vmatprep.subr.bf16.mxu0 0
        %403 = vmatpush1.bf16.msra.mxu0 %v383
        %404 = vmatprep.subr.bf16.mxu0 0
        %405 = vmatpush1.bf16.msra.mxu0 %v384
        %406 = vmatprep.subr.bf16.mxu0 0
        %407 = vmatpush1.bf16.msra.mxu0 %v385
        %408 = vmatprep.subr.bf16.mxu0 0
        %409 = vmatpush1.bf16.msra.mxu0 %v386
        %410 = vmatprep.subr.bf16.mxu0 0
        %411 = vmatpush1.bf16.msra.mxu0 %v387
        %412 = vmatprep.subr.bf16.mxu0 0
        %413 = vmatpush1.bf16.msra.mxu0 0
        %414 = vmatprep.subr.bf16.mxu0 0
        %415 = vmatpush1.bf16.msra.mxu0 0
        %416 = vmatprep.subr.bf16.mxu0 0
        %417 = vmatpush1.bf16.msra.mxu0 0
        %418 = vmatprep.subr.bf16.mxu0 0
        %419 = vmatpush1.bf16.msra.mxu0 0
        %420 = vmatprep.subr.bf16.mxu0 0
        %421 = vmatpush1.bf16.msra.mxu0 0
        %422 = vmatprep.subr.bf16.mxu0 0
        %423 = vmatpush1.bf16.msra.mxu0 0
        %424 = vmatprep.subr.bf16.mxu0 0
        %425 = vmatpush1.bf16.msra.mxu0 0
        %426 = vmatprep.subr.bf16.mxu0 0
        %427 = vmatpush1.bf16.msra.mxu0 0
        %428 = vmatprep.mubr.bf16.mxu0 0
        %429 = vmatmul.mubr.bf16.gmra.mrb[0].mxu0 %v340
        %v430 = vpop.f32.mrb[0].mxu0
        %v431 = vadd.f32 0.0, %v430
        %v432 = vpop.f32.mrb[0].mxu0
        %v433 = vpop.f32.mrb[0].mxu0
        %v434 = vadd.f32 0.0, %v433
        %v435 = vpop.f32.mrb[0].mxu0
        %436 = vmatprep.mubr.bf16.mxu0 0
        %437 = vmatmul.mubr.bf16.gmra.mrb[0].mxu0 %v341
        %v438 = vpop.f32.mrb[0].mxu0
        %v439 = vadd.f32 0.0, %v438
        %v440 = vpop.f32.mrb[0].mxu0
        %v441 = vpop.f32.mrb[0].mxu0
        %v442 = vadd.f32 0.0, %v441
        %v443 = vpop.f32.mrb[0].mxu0
        %444 = vmatprep.mubr.bf16.mxu0 0
        %445 = vmatmul.mubr.bf16.gmra.mrb[0].mxu0 %v342
        %v446 = vpop.f32.mrb[0].mxu0
        %v447 = vadd.f32 0.0, %v446
        %v448 = vpop.f32.mrb[0].mxu0
        %v449 = vpop.f32.mrb[0].mxu0
        %v450 = vadd.f32 0.0, %v449
        %v451 = vpop.f32.mrb[0].mxu0
        %452 = vmatprep.mubr.bf16.mxu0 0
        %453 = vmatmul.mubr.bf16.gmra.mrb[0].mxu0 %v343
        %v454 = vpop.f32.mrb[0].mxu0
        %v455 = vadd.f32 0.0, %v454
        %v456 = vpop.f32.mrb[0].mxu0
        %v457 = vpop.f32.mrb[0].mxu0
        %v458 = vadd.f32 0.0, %v457
        %v459 = vpop.f32.mrb[0].mxu0
        %460 = vmatprep.mubr.bf16.mxu0 0
        %461 = vmatmul.mubr.bf16.gmra.mrb[0].mxu0 %v344
        %v462 = vpop.f32.mrb[0].mxu0
        %v463 = vadd.f32 0.0, %v462
        %v464 = vpop.f32.mrb[0].mxu0
        %v465 = vpop.f32.mrb[0].mxu0
        %v466 = vadd.f32 0.0, %v465
        %v467 = vpop.f32.mrb[0].mxu0
        %468 = vmatprep.mubr.bf16.mxu0 0
        %469 = vmatmul.mubr.bf16.gmra.mrb[0].mxu0 %v345
        %v470 = vpop.f32.mrb[0].mxu0
        %v471 = vadd.f32 0.0, %v470
        %v472 = vpop.f32.mrb[0].mxu0
        %v473 = vpop.f32.mrb[0].mxu0
        %v474 = vadd.f32 0.0, %v473
        %v475 = vpop.f32.mrb[0].mxu0
        %476 = vmatprep.mubr.bf16.mxu0 0
        %477 = vmatmul.mubr.bf16.gmra.mrb[0].mxu0 %v346
        %v478 = vpop.f32.mrb[0].mxu0
        %v479 = vadd.f32 0.0, %v478
        %v480 = vpop.f32.mrb[0].mxu0
        %v481 = vpop.f32.mrb[0].mxu0
        %v482 = vadd.f32 0.0, %v481
        %v483 = vpop.f32.mrb[0].mxu0
        %484 = vmatprep.mubr.bf16.mxu0 0
        %485 = vmatmul.mubr.bf16.gmra.mrb[0].mxu0 %v347
        %v486 = vpop.f32.mrb[0].mxu0
        %v487 = vadd.f32 0.0, %v486
        %v488 = vpop.f32.mrb[0].mxu0
        %v489 = vpop.f32.mrb[0].mxu0
        %v490 = vadd.f32 0.0, %v489
        %v491 = vpop.f32.mrb[0].mxu0
        %492 = vdwg.mxu0
        %493 = vset.pattern.permute.xlu0 1
        %494 = vperm.xlu0 %493, %v226
        %v495 = vpop.permute.xlu0 %494
        %496 = vset.pattern.permute.xlu0 1
        %497 = vperm.xlu0 %496, %v227
        %v498 = vpop.permute.xlu0 %497
        %499 = vset.pattern.permute.xlu0 1
        %500 = vperm.xlu0 %499, %v228
        %v501 = vpop.permute.xlu0 %500
        %502 = vset.pattern.permute.xlu0 1
        %503 = vperm.xlu0 %502, %v229
        %v504 = vpop.permute.xlu0 %503
        %505 = vset.pattern.permute.xlu0 1
        %506 = vperm.xlu0 %505, %v230
        %v507 = vpop.permute.xlu0 %506
        %508 = vset.pattern.permute.xlu0 1
        %509 = vperm.xlu0 %508, %v231
        %v510 = vpop.permute.xlu0 %509
        %511 = vset.pattern.permute.xlu0 1
        %512 = vperm.xlu0 %511, %v232
        %v513 = vpop.permute.xlu0 %512
        %514 = vset.pattern.permute.xlu0 1
        %515 = vperm.xlu0 %514, %v233
        %v516 = vpop.permute.xlu0 %515
        %517 = vset.pattern.permute.xlu0 1
        %518 = vperm.xlu0 %517, %v234
        %v519 = vpop.permute.xlu0 %518
        %520 = vset.pattern.permute.xlu0 1
        %521 = vperm.xlu0 %520, %v235
        %v522 = vpop.permute.xlu0 %521
        %523 = vset.pattern.permute.xlu0 1
        %524 = vperm.xlu0 %523, %v236
        %v525 = vpop.permute.xlu0 %524
        %526 = vset.pattern.permute.xlu0 1
        %527 = vperm.xlu0 %526, %v237
        %v528 = vpop.permute.xlu0 %527
        %529 = vset.pattern.permute.xlu0 1
        %530 = vperm.xlu0 %529, %v238
        %v531 = vpop.permute.xlu0 %530
        %532 = vset.pattern.permute.xlu0 1
        %533 = vperm.xlu0 %532, %v239
        %v534 = vpop.permute.xlu0 %533
        %535 = vset.pattern.permute.xlu0 1
        %536 = vperm.xlu0 %535, %v240
        %v537 = vpop.permute.xlu0 %536
        %538 = vset.pattern.permute.xlu0 1
        %539 = vperm.xlu0 %538, %v241
        %v540 = vpop.permute.xlu0 %539
        %vm541 = vcmp.eq.s32.totalorder %v259, %v495
        %vm542 = vcmp.eq.s32.totalorder %v259, %v498
        %vm543 = vcmp.eq.s32.totalorder %v259, %v501
        %vm544 = vcmp.eq.s32.totalorder %v259, %v504
        %vm545 = vcmp.eq.s32.totalorder %v259, %v507
        %vm546 = vcmp.eq.s32.totalorder %v259, %v510
        %vm547 = vcmp.eq.s32.totalorder %v259, %v513
        %vm548 = vcmp.eq.s32.totalorder %v259, %v516
        %vm549 = vcmp.eq.s32.totalorder %v259, %v519
        %vm550 = vcmp.eq.s32.totalorder %v259, %v522
        %vm551 = vcmp.eq.s32.totalorder %v259, %v525
        %vm552 = vcmp.eq.s32.totalorder %v259, %v528
        %vm553 = vcmp.eq.s32.totalorder %v259, %v531
        %vm554 = vcmp.eq.s32.totalorder %v259, %v534
        %vm555 = vcmp.eq.s32.totalorder %v259, %v537
        %vm556 = vcmp.eq.s32.totalorder %v259, %v540
        %v557 = vsel %vm541, 1.0, 0.0
        %v558 = vsel %vm542, 1.0, 0.0
        %v559 = vsel %vm543, 1.0, 0.0
        %v560 = vsel %vm544, 1.0, 0.0
        %v561 = vsel %vm545, 1.0, 0.0
        %v562 = vsel %vm546, 1.0, 0.0
        %v563 = vsel %vm547, 1.0, 0.0
        %v564 = vsel %vm548, 1.0, 0.0
        %v565 = vsel %vm549, 1.0, 0.0
        %v566 = vsel %vm550, 1.0, 0.0
        %v567 = vsel %vm551, 1.0, 0.0
        %v568 = vsel %vm552, 1.0, 0.0
        %v569 = vsel %vm553, 1.0, 0.0
        %v570 = vsel %vm554, 1.0, 0.0
        %v571 = vsel %vm555, 1.0, 0.0
        %v572 = vsel %vm556, 1.0, 0.0
        %v573 = vpack.c.bf16 %v558, %v557
        %v574 = vpack.c.bf16 %v560, %v559
        %v575 = vpack.c.bf16 %v562, %v561
        %v576 = vpack.c.bf16 %v564, %v563
        %v577 = vpack.c.bf16 %v566, %v565
        %v578 = vpack.c.bf16 %v568, %v567
        %v579 = vpack.c.bf16 %v570, %v569
        %v580 = vpack.c.bf16 %v572, %v571
        %581 = vmatprep.subr.bf16.mxu0 0
        %582 = vmatpush1.bf16.msra.mxu0 %v380
        %583 = vmatprep.subr.bf16.mxu0 0
        %584 = vmatpush1.bf16.msra.mxu0 %v381
        %585 = vmatprep.subr.bf16.mxu0 0
        %586 = vmatpush1.bf16.msra.mxu0 %v382
        %587 = vmatprep.subr.bf16.mxu0 0
        %588 = vmatpush1.bf16.msra.mxu0 %v383
        %589 = vmatprep.subr.bf16.mxu0 0
        %590 = vmatpush1.bf16.msra.mxu0 %v384
        %591 = vmatprep.subr.bf16.mxu0 0
        %592 = vmatpush1.bf16.msra.mxu0 %v385
        %593 = vmatprep.subr.bf16.mxu0 0
        %594 = vmatpush1.bf16.msra.mxu0 %v386
        %595 = vmatprep.subr.bf16.mxu0 0
        %596 = vmatpush1.bf16.msra.mxu0 %v387
        %597 = vmatprep.subr.bf16.mxu0 0
        %598 = vmatpush1.bf16.msra.mxu0 0
        %599 = vmatprep.subr.bf16.mxu0 0
        %600 = vmatpush1.bf16.msra.mxu0 0
        %601 = vmatprep.subr.bf16.mxu0 0
        %602 = vmatpush1.bf16.msra.mxu0 0
        %603 = vmatprep.subr.bf16.mxu0 0
        %604 = vmatpush1.bf16.msra.mxu0 0
        %605 = vmatprep.subr.bf16.mxu0 0
        %606 = vmatpush1.bf16.msra.mxu0 0
        %607 = vmatprep.subr.bf16.mxu0 0
        %608 = vmatpush1.bf16.msra.mxu0 0
        %609 = vmatprep.subr.bf16.mxu0 0
        %610 = vmatpush1.bf16.msra.mxu0 0
        %611 = vmatprep.subr.bf16.mxu0 0
        %612 = vmatpush1.bf16.msra.mxu0 0
        %613 = vmatprep.mubr.bf16.mxu0 0
        %614 = vmatmul.mubr.bf16.gmra.mrb[0].mxu0 %v573
        %v615 = vpop.f32.mrb[0].mxu0
        %v616 = vadd.f32 0.0, %v615
        %v617 = vpop.f32.mrb[0].mxu0
        %v618 = vpop.f32.mrb[0].mxu0
        %v619 = vadd.f32 0.0, %v618
        %v620 = vpop.f32.mrb[0].mxu0
        %621 = vmatprep.mubr.bf16.mxu0 0
        %622 = vmatmul.mubr.bf16.gmra.mrb[0].mxu0 %v574
        %v623 = vpop.f32.mrb[0].mxu0
        %v624 = vadd.f32 0.0, %v623
        %v625 = vpop.f32.mrb[0].mxu0
        %v626 = vpop.f32.mrb[0].mxu0
        %v627 = vadd.f32 0.0, %v626
        %v628 = vpop.f32.mrb[0].mxu0
        %629 = vmatprep.mubr.bf16.mxu0 0
        %630 = vmatmul.mubr.bf16.gmra.mrb[0].mxu0 %v575
        %v631 = vpop.f32.mrb[0].mxu0
        %v632 = vadd.f32 0.0, %v631
        %v633 = vpop.f32.mrb[0].mxu0
        %v634 = vpop.f32.mrb[0].mxu0
        %v635 = vadd.f32 0.0, %v634
        %v636 = vpop.f32.mrb[0].mxu0
        %637 = vmatprep.mubr.bf16.mxu0 0
        %638 = vmatmul.mubr.bf16.gmra.mrb[0].mxu0 %v576
        %v639 = vpop.f32.mrb[0].mxu0
        %v640 = vadd.f32 0.0, %v639
        %v641 = vpop.f32.mrb[0].mxu0
        %v642 = vpop.f32.mrb[0].mxu0
        %v643 = vadd.f32 0.0, %v642
        %v644 = vpop.f32.mrb[0].mxu0
        %645 = vmatprep.mubr.bf16.mxu0 0
        %646 = vmatmul.mubr.bf16.gmra.mrb[0].mxu0 %v577
        %v647 = vpop.f32.mrb[0].mxu0
        %v648 = vadd.f32 0.0, %v647
        %v649 = vpop.f32.mrb[0].mxu0
        %v650 = vpop.f32.mrb[0].mxu0
        %v651 = vadd.f32 0.0, %v650
        %v652 = vpop.f32.mrb[0].mxu0
        %653 = vmatprep.mubr.bf16.mxu0 0
        %654 = vmatmul.mubr.bf16.gmra.mrb[0].mxu0 %v578
        %v655 = vpop.f32.mrb[0].mxu0
        %v656 = vadd.f32 0.0, %v655
        %v657 = vpop.f32.mrb[0].mxu0
        %v658 = vpop.f32.mrb[0].mxu0
        %v659 = vadd.f32 0.0, %v658
        %v660 = vpop.f32.mrb[0].mxu0
        %661 = vmatprep.mubr.bf16.mxu0 0
        %662 = vmatmul.mubr.bf16.gmra.mrb[0].mxu0 %v579
        %v663 = vpop.f32.mrb[0].mxu0
        %v664 = vadd.f32 0.0, %v663
        %v665 = vpop.f32.mrb[0].mxu0
        %v666 = vpop.f32.mrb[0].mxu0
        %v667 = vadd.f32 0.0, %v666
        %v668 = vpop.f32.mrb[0].mxu0
        %669 = vmatprep.mubr.bf16.mxu0 0
        %670 = vmatmul.mubr.bf16.gmra.mrb[0].mxu0 %v580
        %v671 = vpop.f32.mrb[0].mxu0
        %v672 = vadd.f32 0.0, %v671
        %v673 = vpop.f32.mrb[0].mxu0
        %v674 = vpop.f32.mrb[0].mxu0
        %v675 = vadd.f32 0.0, %v674
        %v676 = vpop.f32.mrb[0].mxu0
        %677 = vdwg.mxu0
        %678 = vset.pattern.permute.xlu0 2
        %679 = vperm.xlu0 %678, %v226
        %v680 = vpop.permute.xlu0 %679
        %681 = vset.pattern.permute.xlu0 2
        %682 = vperm.xlu0 %681, %v227
        %v683 = vpop.permute.xlu0 %682
        %684 = vset.pattern.permute.xlu0 2
        %685 = vperm.xlu0 %684, %v228
        %v686 = vpop.permute.xlu0 %685
        %687 = vset.pattern.permute.xlu0 2
        %688 = vperm.xlu0 %687, %v229
        %v689 = vpop.permute.xlu0 %688
        %690 = vset.pattern.permute.xlu0 2
        %691 = vperm.xlu0 %690, %v230
        %v692 = vpop.permute.xlu0 %691
        %693 = vset.pattern.permute.xlu0 2
        %694 = vperm.xlu0 %693, %v231
        %v695 = vpop.permute.xlu0 %694
        %696 = vset.pattern.permute.xlu0 2
        %697 = vperm.xlu0 %696, %v232
        %v698 = vpop.permute.xlu0 %697
        %699 = vset.pattern.permute.xlu0 2
        %700 = vperm.xlu0 %699, %v233
        %v701 = vpop.permute.xlu0 %700
        %702 = vset.pattern.permute.xlu0 2
        %703 = vperm.xlu0 %702, %v234
        %v704 = vpop.permute.xlu0 %703
        %705 = vset.pattern.permute.xlu0 2
        %706 = vperm.xlu0 %705, %v235
        %v707 = vpop.permute.xlu0 %706
        %708 = vset.pattern.permute.xlu0 2
        %709 = vperm.xlu0 %708, %v236
        %v710 = vpop.permute.xlu0 %709
        %711 = vset.pattern.permute.xlu0 2
        %712 = vperm.xlu0 %711, %v237
        %v713 = vpop.permute.xlu0 %712
        %714 = vset.pattern.permute.xlu0 2
        %715 = vperm.xlu0 %714, %v238
        %v716 = vpop.permute.xlu0 %715
        %717 = vset.pattern.permute.xlu0 2
        %718 = vperm.xlu0 %717, %v239
        %v719 = vpop.permute.xlu0 %718
        %720 = vset.pattern.permute.xlu0 2
        %721 = vperm.xlu0 %720, %v240
        %v722 = vpop.permute.xlu0 %721
        %723 = vset.pattern.permute.xlu0 2
        %724 = vperm.xlu0 %723, %v241
        %v725 = vpop.permute.xlu0 %724
        %vm726 = vcmp.eq.s32.totalorder %v259, %v680
        %vm727 = vcmp.eq.s32.totalorder %v259, %v683
        %vm728 = vcmp.eq.s32.totalorder %v259, %v686
        %vm729 = vcmp.eq.s32.totalorder %v259, %v689
        %vm730 = vcmp.eq.s32.totalorder %v259, %v692
        %vm731 = vcmp.eq.s32.totalorder %v259, %v695
        %vm732 = vcmp.eq.s32.totalorder %v259, %v698
        %vm733 = vcmp.eq.s32.totalorder %v259, %v701
        %vm734 = vcmp.eq.s32.totalorder %v259, %v704
        %vm735 = vcmp.eq.s32.totalorder %v259, %v707
        %vm736 = vcmp.eq.s32.totalorder %v259, %v710
        %vm737 = vcmp.eq.s32.totalorder %v259, %v713
        %vm738 = vcmp.eq.s32.totalorder %v259, %v716
        %vm739 = vcmp.eq.s32.totalorder %v259, %v719
        %vm740 = vcmp.eq.s32.totalorder %v259, %v722
        %vm741 = vcmp.eq.s32.totalorder %v259, %v725
        %v742 = vsel %vm726, 1.0, 0.0
        %v743 = vsel %vm727, 1.0, 0.0
        %v744 = vsel %vm728, 1.0, 0.0
        %v745 = vsel %vm729, 1.0, 0.0
        %v746 = vsel %vm730, 1.0, 0.0
        %v747 = vsel %vm731, 1.0, 0.0
        %v748 = vsel %vm732, 1.0, 0.0
        %v749 = vsel %vm733, 1.0, 0.0
        %v750 = vsel %vm734, 1.0, 0.0
        %v751 = vsel %vm735, 1.0, 0.0
        %v752 = vsel %vm736, 1.0, 0.0
        %v753 = vsel %vm737, 1.0, 0.0
        %v754 = vsel %vm738, 1.0, 0.0
        %v755 = vsel %vm739, 1.0, 0.0
        %v756 = vsel %vm740, 1.0, 0.0
        %v757 = vsel %vm741, 1.0, 0.0
        %v758 = vpack.c.bf16 %v743, %v742
        %v759 = vpack.c.bf16 %v745, %v744
        %v760 = vpack.c.bf16 %v747, %v746
        %v761 = vpack.c.bf16 %v749, %v748
        %v762 = vpack.c.bf16 %v751, %v750
        %v763 = vpack.c.bf16 %v753, %v752
        %v764 = vpack.c.bf16 %v755, %v754
        %v765 = vpack.c.bf16 %v757, %v756
        %766 = vmatprep.subr.bf16.mxu0 0
        %767 = vmatpush1.bf16.msra.mxu0 %v380
        %768 = vmatprep.subr.bf16.mxu0 0
        %769 = vmatpush1.bf16.msra.mxu0 %v381
        %770 = vmatprep.subr.bf16.mxu0 0
        %771 = vmatpush1.bf16.msra.mxu0 %v382
        %772 = vmatprep.subr.bf16.mxu0 0
        %773 = vmatpush1.bf16.msra.mxu0 %v383
        %774 = vmatprep.subr.bf16.mxu0 0
        %775 = vmatpush1.bf16.msra.mxu0 %v384
        %776 = vmatprep.subr.bf16.mxu0 0
        %777 = vmatpush1.bf16.msra.mxu0 %v385
        %778 = vmatprep.subr.bf16.mxu0 0
        %779 = vmatpush1.bf16.msra.mxu0 %v386
        %780 = vmatprep.subr.bf16.mxu0 0
        %781 = vmatpush1.bf16.msra.mxu0 %v387
        %782 = vmatprep.subr.bf16.mxu0 0
        %783 = vmatpush1.bf16.msra.mxu0 0
        %784 = vmatprep.subr.bf16.mxu0 0
        %785 = vmatpush1.bf16.msra.mxu0 0
        %786 = vmatprep.subr.bf16.mxu0 0
        %787 = vmatpush1.bf16.msra.mxu0 0
        %788 = vmatprep.subr.bf16.mxu0 0
        %789 = vmatpush1.bf16.msra.mxu0 0
        %790 = vmatprep.subr.bf16.mxu0 0
        %791 = vmatpush1.bf16.msra.mxu0 0
        %792 = vmatprep.subr.bf16.mxu0 0
        %793 = vmatpush1.bf16.msra.mxu0 0
        %794 = vmatprep.subr.bf16.mxu0 0
        %795 = vmatpush1.bf16.msra.mxu0 0
        %796 = vmatprep.subr.bf16.mxu0 0
        %797 = vmatpush1.bf16.msra.mxu0 0
        %798 = vmatprep.mubr.bf16.mxu0 0
        %799 = vmatmul.mubr.bf16.gmra.mrb[0].mxu0 %v758
        %v800 = vpop.f32.mrb[0].mxu0
        %v801 = vadd.f32 0.0, %v800
        %v802 = vpop.f32.mrb[0].mxu0
        %v803 = vpop.f32.mrb[0].mxu0
        %v804 = vadd.f32 0.0, %v803
        %v805 = vpop.f32.mrb[0].mxu0
        %806 = vmatprep.mubr.bf16.mxu0 0
        %807 = vmatmul.mubr.bf16.gmra.mrb[0].mxu0 %v759
        %v808 = vpop.f32.mrb[0].mxu0
        %v809 = vadd.f32 0.0, %v808
        %v810 = vpop.f32.mrb[0].mxu0
        %v811 = vpop.f32.mrb[0].mxu0
        %v812 = vadd.f32 0.0, %v811
        %v813 = vpop.f32.mrb[0].mxu0
        %814 = vmatprep.mubr.bf16.mxu0 0
        %815 = vmatmul.mubr.bf16.gmra.mrb[0].mxu0 %v760
        %v816 = vpop.f32.mrb[0].mxu0
        %v817 = vadd.f32 0.0, %v816
        %v818 = vpop.f32.mrb[0].mxu0
        %v819 = vpop.f32.mrb[0].mxu0
        %v820 = vadd.f32 0.0, %v819
        %v821 = vpop.f32.mrb[0].mxu0
        %822 = vmatprep.mubr.bf16.mxu0 0
        %823 = vmatmul.mubr.bf16.gmra.mrb[0].mxu0 %v761
        %v824 = vpop.f32.mrb[0].mxu0
        %v825 = vadd.f32 0.0, %v824
        %v826 = vpop.f32.mrb[0].mxu0
        %v827 = vpop.f32.mrb[0].mxu0
        %v828 = vadd.f32 0.0, %v827
        %v829 = vpop.f32.mrb[0].mxu0
        %830 = vmatprep.mubr.bf16.mxu0 0
        %831 = vmatmul.mubr.bf16.gmra.mrb[0].mxu0 %v762
        %v832 = vpop.f32.mrb[0].mxu0
        %v833 = vadd.f32 0.0, %v832
        %v834 = vpop.f32.mrb[0].mxu0
        %v835 = vpop.f32.mrb[0].mxu0
        %v836 = vadd.f32 0.0, %v835
        %v837 = vpop.f32.mrb[0].mxu0
        %838 = vmatprep.mubr.bf16.mxu0 0
        %839 = vmatmul.mubr.bf16.gmra.mrb[0].mxu0 %v763
        %v840 = vpop.f32.mrb[0].mxu0
        %v841 = vadd.f32 0.0, %v840
        %v842 = vpop.f32.mrb[0].mxu0
        %v843 = vpop.f32.mrb[0].mxu0
        %v844 = vadd.f32 0.0, %v843
        %v845 = vpop.f32.mrb[0].mxu0
        %846 = vmatprep.mubr.bf16.mxu0 0
        %847 = vmatmul.mubr.bf16.gmra.mrb[0].mxu0 %v764
        %v848 = vpop.f32.mrb[0].mxu0
        %v849 = vadd.f32 0.0, %v848
        %v850 = vpop.f32.mrb[0].mxu0
        %v851 = vpop.f32.mrb[0].mxu0
        %v852 = vadd.f32 0.0, %v851
        %v853 = vpop.f32.mrb[0].mxu0
        %854 = vmatprep.mubr.bf16.mxu0 0
        %855 = vmatmul.mubr.bf16.gmra.mrb[0].mxu0 %v765
        %v856 = vpop.f32.mrb[0].mxu0
        %v857 = vadd.f32 0.0, %v856
        %v858 = vpop.f32.mrb[0].mxu0
        %v859 = vpop.f32.mrb[0].mxu0
        %v860 = vadd.f32 0.0, %v859
        %v861 = vpop.f32.mrb[0].mxu0
        %862 = vdwg.mxu0
        %863 = vset.pattern.permute.xlu0 3
        %864 = vperm.xlu0 %863, %v226
        %v865 = vpop.permute.xlu0 %864
        %866 = vset.pattern.permute.xlu0 3
        %867 = vperm.xlu0 %866, %v227
        %v868 = vpop.permute.xlu0 %867
        %869 = vset.pattern.permute.xlu0 3
        %870 = vperm.xlu0 %869, %v228
        %v871 = vpop.permute.xlu0 %870
        %872 = vset.pattern.permute.xlu0 3
        %873 = vperm.xlu0 %872, %v229
        %v874 = vpop.permute.xlu0 %873
        %875 = vset.pattern.permute.xlu0 3
        %876 = vperm.xlu0 %875, %v230
        %v877 = vpop.permute.xlu0 %876
        %878 = vset.pattern.permute.xlu0 3
        %879 = vperm.xlu0 %878, %v231
        %v880 = vpop.permute.xlu0 %879
        %881 = vset.pattern.permute.xlu0 3
        %882 = vperm.xlu0 %881, %v232
        %v883 = vpop.permute.xlu0 %882
        %884 = vset.pattern.permute.xlu0 3
        %885 = vperm.xlu0 %884, %v233
        %v886 = vpop.permute.xlu0 %885
        %887 = vset.pattern.permute.xlu0 3
        %888 = vperm.xlu0 %887, %v234
        %v889 = vpop.permute.xlu0 %888
        %890 = vset.pattern.permute.xlu0 3
        %891 = vperm.xlu0 %890, %v235
        %v892 = vpop.permute.xlu0 %891
        %893 = vset.pattern.permute.xlu0 3
        %894 = vperm.xlu0 %893, %v236
        %v895 = vpop.permute.xlu0 %894
        %896 = vset.pattern.permute.xlu0 3
        %897 = vperm.xlu0 %896, %v237
        %v898 = vpop.permute.xlu0 %897
        %899 = vset.pattern.permute.xlu0 3
        %900 = vperm.xlu0 %899, %v238
        %v901 = vpop.permute.xlu0 %900
        %902 = vset.pattern.permute.xlu0 3
        %903 = vperm.xlu0 %902, %v239
        %v904 = vpop.permute.xlu0 %903
        %905 = vset.pattern.permute.xlu0 3
        %906 = vperm.xlu0 %905, %v240
        %v907 = vpop.permute.xlu0 %906
        %908 = vset.pattern.permute.xlu0 3
        %909 = vperm.xlu0 %908, %v241
        %v910 = vpop.permute.xlu0 %909
        %vm911 = vcmp.eq.s32.totalorder %v259, %v865
        %vm912 = vcmp.eq.s32.totalorder %v259, %v868
        %vm913 = vcmp.eq.s32.totalorder %v259, %v871
        %vm914 = vcmp.eq.s32.totalorder %v259, %v874
        %vm915 = vcmp.eq.s32.totalorder %v259, %v877
        %vm916 = vcmp.eq.s32.totalorder %v259, %v880
        %vm917 = vcmp.eq.s32.totalorder %v259, %v883
        %vm918 = vcmp.eq.s32.totalorder %v259, %v886
        %vm919 = vcmp.eq.s32.totalorder %v259, %v889
        %vm920 = vcmp.eq.s32.totalorder %v259, %v892
        %vm921 = vcmp.eq.s32.totalorder %v259, %v895
        %vm922 = vcmp.eq.s32.totalorder %v259, %v898
        %vm923 = vcmp.eq.s32.totalorder %v259, %v901
        %vm924 = vcmp.eq.s32.totalorder %v259, %v904
        %vm925 = vcmp.eq.s32.totalorder %v259, %v907
        %vm926 = vcmp.eq.s32.totalorder %v259, %v910
        %v927 = vsel %vm911, 1.0, 0.0
        %v928 = vsel %vm912, 1.0, 0.0
        %v929 = vsel %vm913, 1.0, 0.0
        %v930 = vsel %vm914, 1.0, 0.0
        %v931 = vsel %vm915, 1.0, 0.0
        %v932 = vsel %vm916, 1.0, 0.0
        %v933 = vsel %vm917, 1.0, 0.0
        %v934 = vsel %vm918, 1.0, 0.0
        %v935 = vsel %vm919, 1.0, 0.0
        %v936 = vsel %vm920, 1.0, 0.0
        %v937 = vsel %vm921, 1.0, 0.0
        %v938 = vsel %vm922, 1.0, 0.0
        %v939 = vsel %vm923, 1.0, 0.0
        %v940 = vsel %vm924, 1.0, 0.0
        %v941 = vsel %vm925, 1.0, 0.0
        %v942 = vsel %vm926, 1.0, 0.0
        %v943 = vpack.c.bf16 %v928, %v927
        %v944 = vpack.c.bf16 %v930, %v929
        %v945 = vpack.c.bf16 %v932, %v931
        %v946 = vpack.c.bf16 %v934, %v933
        %v947 = vpack.c.bf16 %v936, %v935
        %v948 = vpack.c.bf16 %v938, %v937
        %v949 = vpack.c.bf16 %v940, %v939
        %v950 = vpack.c.bf16 %v942, %v941
        %951 = vmatprep.subr.bf16.mxu0 0
        %952 = vmatpush1.bf16.msra.mxu0 %v380
        %953 = vmatprep.subr.bf16.mxu0 0
        %954 = vmatpush1.bf16.msra.mxu0 %v381
        %955 = vmatprep.subr.bf16.mxu0 0
        %956 = vmatpush1.bf16.msra.mxu0 %v382
        %957 = vmatprep.subr.bf16.mxu0 0
        %958 = vmatpush1.bf16.msra.mxu0 %v383
        %959 = vmatprep.subr.bf16.mxu0 0
        %960 = vmatpush1.bf16.msra.mxu0 %v384
        %961 = vmatprep.subr.bf16.mxu0 0
        %962 = vmatpush1.bf16.msra.mxu0 %v385
        %963 = vmatprep.subr.bf16.mxu0 0
        %964 = vmatpush1.bf16.msra.mxu0 %v386
        %965 = vmatprep.subr.bf16.mxu0 0
        %966 = vmatpush1.bf16.msra.mxu0 %v387
        %967 = vmatprep.subr.bf16.mxu0 0
        %968 = vmatpush1.bf16.msra.mxu0 0
        %969 = vmatprep.subr.bf16.mxu0 0
        %970 = vmatpush1.bf16.msra.mxu0 0
        %971 = vmatprep.subr.bf16.mxu0 0
        %972 = vmatpush1.bf16.msra.mxu0 0
        %973 = vmatprep.subr.bf16.mxu0 0
        %974 = vmatpush1.bf16.msra.mxu0 0
        %975 = vmatprep.subr.bf16.mxu0 0
        %976 = vmatpush1.bf16.msra.mxu0 0
        %977 = vmatprep.subr.bf16.mxu0 0
        %978 = vmatpush1.bf16.msra.mxu0 0
        %979 = vmatprep.subr.bf16.mxu0 0
        %980 = vmatpush1.bf16.msra.mxu0 0
        %981 = vmatprep.subr.bf16.mxu0 0
        %982 = vmatpush1.bf16.msra.mxu0 0
        %983 = vmatprep.mubr.bf16.mxu0 0
        %984 = vmatmul.mubr.bf16.gmra.mrb[0].mxu0 %v943
        %v985 = vpop.f32.mrb[0].mxu0
        %v986 = vadd.f32 0.0, %v985
        %v987 = vpop.f32.mrb[0].mxu0
        %v988 = vpop.f32.mrb[0].mxu0
        %v989 = vadd.f32 0.0, %v988
        %v990 = vpop.f32.mrb[0].mxu0
        %991 = vmatprep.mubr.bf16.mxu0 0
        %992 = vmatmul.mubr.bf16.gmra.mrb[0].mxu0 %v944
        %v993 = vpop.f32.mrb[0].mxu0
        %v994 = vadd.f32 0.0, %v993
        %v995 = vpop.f32.mrb[0].mxu0
        %v996 = vpop.f32.mrb[0].mxu0
        %v997 = vadd.f32 0.0, %v996
        %v998 = vpop.f32.mrb[0].mxu0
        %999 = vmatprep.mubr.bf16.mxu0 0
        %1000 = vmatmul.mubr.bf16.gmra.mrb[0].mxu0 %v945
        %v1001 = vpop.f32.mrb[0].mxu0
        %v1002 = vadd.f32 0.0, %v1001
        %v1003 = vpop.f32.mrb[0].mxu0
        %v1004 = vpop.f32.mrb[0].mxu0
        %v1005 = vadd.f32 0.0, %v1004
        %v1006 = vpop.f32.mrb[0].mxu0
        %1007 = vmatprep.mubr.bf16.mxu0 0
        %1008 = vmatmul.mubr.bf16.gmra.mrb[0].mxu0 %v946
        %v1009 = vpop.f32.mrb[0].mxu0
        %v1010 = vadd.f32 0.0, %v1009
        %v1011 = vpop.f32.mrb[0].mxu0
        %v1012 = vpop.f32.mrb[0].mxu0
        %v1013 = vadd.f32 0.0, %v1012
        %v1014 = vpop.f32.mrb[0].mxu0
        %1015 = vmatprep.mubr.bf16.mxu0 0
        %1016 = vmatmul.mubr.bf16.gmra.mrb[0].mxu0 %v947
        %v1017 = vpop.f32.mrb[0].mxu0
        %v1018 = vadd.f32 0.0, %v1017
        %v1019 = vpop.f32.mrb[0].mxu0
        %v1020 = vpop.f32.mrb[0].mxu0
        %v1021 = vadd.f32 0.0, %v1020
        %v1022 = vpop.f32.mrb[0].mxu0
        %1023 = vmatprep.mubr.bf16.mxu0 0
        %1024 = vmatmul.mubr.bf16.gmra.mrb[0].mxu0 %v948
        %v1025 = vpop.f32.mrb[0].mxu0
        %v1026 = vadd.f32 0.0, %v1025
        %v1027 = vpop.f32.mrb[0].mxu0
        %v1028 = vpop.f32.mrb[0].mxu0
        %v1029 = vadd.f32 0.0, %v1028
        %v1030 = vpop.f32.mrb[0].mxu0
        %1031 = vmatprep.mubr.bf16.mxu0 0
        %1032 = vmatmul.mubr.bf16.gmra.mrb[0].mxu0 %v949
        %v1033 = vpop.f32.mrb[0].mxu0
        %v1034 = vadd.f32 0.0, %v1033
        %v1035 = vpop.f32.mrb[0].mxu0
        %v1036 = vpop.f32.mrb[0].mxu0
        %v1037 = vadd.f32 0.0, %v1036
        %v1038 = vpop.f32.mrb[0].mxu0
        %1039 = vmatprep.mubr.bf16.mxu0 0
        %1040 = vmatmul.mubr.bf16.gmra.mrb[0].mxu0 %v950
        %v1041 = vpop.f32.mrb[0].mxu0
        %v1042 = vadd.f32 0.0, %v1041
        %v1043 = vpop.f32.mrb[0].mxu0
        %v1044 = vpop.f32.mrb[0].mxu0
        %v1045 = vadd.f32 0.0, %v1044
        %v1046 = vpop.f32.mrb[0].mxu0
        %1047 = vdwg.mxu0
        %1048 = vset.pattern.permute.xlu0 4
        %1049 = vperm.xlu0 %1048, %v226
        %v1050 = vpop.permute.xlu0 %1049
        %1051 = vset.pattern.permute.xlu0 4
        %1052 = vperm.xlu0 %1051, %v227
        %v1053 = vpop.permute.xlu0 %1052
        %1054 = vset.pattern.permute.xlu0 4
        %1055 = vperm.xlu0 %1054, %v228
        %v1056 = vpop.permute.xlu0 %1055
        %1057 = vset.pattern.permute.xlu0 4
        %1058 = vperm.xlu0 %1057, %v229
        %v1059 = vpop.permute.xlu0 %1058
        %1060 = vset.pattern.permute.xlu0 4
        %1061 = vperm.xlu0 %1060, %v230
        %v1062 = vpop.permute.xlu0 %1061
        %1063 = vset.pattern.permute.xlu0 4
        %1064 = vperm.xlu0 %1063, %v231
        %v1065 = vpop.permute.xlu0 %1064
        %1066 = vset.pattern.permute.xlu0 4
        %1067 = vperm.xlu0 %1066, %v232
        %v1068 = vpop.permute.xlu0 %1067
        %1069 = vset.pattern.permute.xlu0 4
        %1070 = vperm.xlu0 %1069, %v233
        %v1071 = vpop.permute.xlu0 %1070
        %1072 = vset.pattern.permute.xlu0 4
        %1073 = vperm.xlu0 %1072, %v234
        %v1074 = vpop.permute.xlu0 %1073
        %1075 = vset.pattern.permute.xlu0 4
        %1076 = vperm.xlu0 %1075, %v235
        %v1077 = vpop.permute.xlu0 %1076
        %1078 = vset.pattern.permute.xlu0 4
        %1079 = vperm.xlu0 %1078, %v236
        %v1080 = vpop.permute.xlu0 %1079
        %1081 = vset.pattern.permute.xlu0 4
        %1082 = vperm.xlu0 %1081, %v237
        %v1083 = vpop.permute.xlu0 %1082
        %1084 = vset.pattern.permute.xlu0 4
        %1085 = vperm.xlu0 %1084, %v238
        %v1086 = vpop.permute.xlu0 %1085
        %1087 = vset.pattern.permute.xlu0 4
        %1088 = vperm.xlu0 %1087, %v239
        %v1089 = vpop.permute.xlu0 %1088
        %1090 = vset.pattern.permute.xlu0 4
        %1091 = vperm.xlu0 %1090, %v240
        %v1092 = vpop.permute.xlu0 %1091
        %1093 = vset.pattern.permute.xlu0 4
        %1094 = vperm.xlu0 %1093, %v241
        %v1095 = vpop.permute.xlu0 %1094
        %vm1096 = vcmp.eq.s32.totalorder %v259, %v1050
        %vm1097 = vcmp.eq.s32.totalorder %v259, %v1053
        %vm1098 = vcmp.eq.s32.totalorder %v259, %v1056
        %vm1099 = vcmp.eq.s32.totalorder %v259, %v1059
        %vm1100 = vcmp.eq.s32.totalorder %v259, %v1062
        %vm1101 = vcmp.eq.s32.totalorder %v259, %v1065
        %vm1102 = vcmp.eq.s32.totalorder %v259, %v1068
        %vm1103 = vcmp.eq.s32.totalorder %v259, %v1071
        %vm1104 = vcmp.eq.s32.totalorder %v259, %v1074
        %vm1105 = vcmp.eq.s32.totalorder %v259, %v1077
        %vm1106 = vcmp.eq.s32.totalorder %v259, %v1080
        %vm1107 = vcmp.eq.s32.totalorder %v259, %v1083
        %vm1108 = vcmp.eq.s32.totalorder %v259, %v1086
        %vm1109 = vcmp.eq.s32.totalorder %v259, %v1089
        %vm1110 = vcmp.eq.s32.totalorder %v259, %v1092
        %vm1111 = vcmp.eq.s32.totalorder %v259, %v1095
        %v1112 = vsel %vm1096, 1.0, 0.0
        %v1113 = vsel %vm1097, 1.0, 0.0
        %v1114 = vsel %vm1098, 1.0, 0.0
        %v1115 = vsel %vm1099, 1.0, 0.0
        %v1116 = vsel %vm1100, 1.0, 0.0
        %v1117 = vsel %vm1101, 1.0, 0.0
        %v1118 = vsel %vm1102, 1.0, 0.0
        %v1119 = vsel %vm1103, 1.0, 0.0
        %v1120 = vsel %vm1104, 1.0, 0.0
        %v1121 = vsel %vm1105, 1.0, 0.0
        %v1122 = vsel %vm1106, 1.0, 0.0
        %v1123 = vsel %vm1107, 1.0, 0.0
        %v1124 = vsel %vm1108, 1.0, 0.0
        %v1125 = vsel %vm1109, 1.0, 0.0
        %v1126 = vsel %vm1110, 1.0, 0.0
        %v1127 = vsel %vm1111, 1.0, 0.0
        %v1128 = vpack.c.bf16 %v1113, %v1112
        %v1129 = vpack.c.bf16 %v1115, %v1114
        %v1130 = vpack.c.bf16 %v1117, %v1116
        %v1131 = vpack.c.bf16 %v1119, %v1118
        %v1132 = vpack.c.bf16 %v1121, %v1120
        %v1133 = vpack.c.bf16 %v1123, %v1122
        %v1134 = vpack.c.bf16 %v1125, %v1124
        %v1135 = vpack.c.bf16 %v1127, %v1126
        %1136 = vmatprep.subr.bf16.mxu0 0
        %1137 = vmatpush1.bf16.msra.mxu0 %v380
        %1138 = vmatprep.subr.bf16.mxu0 0
        %1139 = vmatpush1.bf16.msra.mxu0 %v381
        %1140 = vmatprep.subr.bf16.mxu0 0
        %1141 = vmatpush1.bf16.msra.mxu0 %v382
        %1142 = vmatprep.subr.bf16.mxu0 0
        %1143 = vmatpush1.bf16.msra.mxu0 %v383
        %1144 = vmatprep.subr.bf16.mxu0 0
        %1145 = vmatpush1.bf16.msra.mxu0 %v384
        %1146 = vmatprep.subr.bf16.mxu0 0
        %1147 = vmatpush1.bf16.msra.mxu0 %v385
        %1148 = vmatprep.subr.bf16.mxu0 0
        %1149 = vmatpush1.bf16.msra.mxu0 %v386
        %1150 = vmatprep.subr.bf16.mxu0 0
        %1151 = vmatpush1.bf16.msra.mxu0 %v387
        %1152 = vmatprep.subr.bf16.mxu0 0
        %1153 = vmatpush1.bf16.msra.mxu0 0
        %1154 = vmatprep.subr.bf16.mxu0 0
        %1155 = vmatpush1.bf16.msra.mxu0 0
        %1156 = vmatprep.subr.bf16.mxu0 0
        %1157 = vmatpush1.bf16.msra.mxu0 0
        %1158 = vmatprep.subr.bf16.mxu0 0
        %1159 = vmatpush1.bf16.msra.mxu0 0
        %1160 = vmatprep.subr.bf16.mxu0 0
        %1161 = vmatpush1.bf16.msra.mxu0 0
        %1162 = vmatprep.subr.bf16.mxu0 0
        %1163 = vmatpush1.bf16.msra.mxu0 0
        %1164 = vmatprep.subr.bf16.mxu0 0
        %1165 = vmatpush1.bf16.msra.mxu0 0
        %1166 = vmatprep.subr.bf16.mxu0 0
        %1167 = vmatpush1.bf16.msra.mxu0 0
        %1168 = vmatprep.mubr.bf16.mxu0 0
        %1169 = vmatmul.mubr.bf16.gmra.mrb[0].mxu0 %v1128
        %v1170 = vpop.f32.mrb[0].mxu0
        %v1171 = vadd.f32 0.0, %v1170
        %v1172 = vpop.f32.mrb[0].mxu0
        %v1173 = vpop.f32.mrb[0].mxu0
        %v1174 = vadd.f32 0.0, %v1173
        %v1175 = vpop.f32.mrb[0].mxu0
        %1176 = vmatprep.mubr.bf16.mxu0 0
        %1177 = vmatmul.mubr.bf16.gmra.mrb[0].mxu0 %v1129
        %v1178 = vpop.f32.mrb[0].mxu0
        %v1179 = vadd.f32 0.0, %v1178
        %v1180 = vpop.f32.mrb[0].mxu0
        %v1181 = vpop.f32.mrb[0].mxu0
        %v1182 = vadd.f32 0.0, %v1181
        %v1183 = vpop.f32.mrb[0].mxu0
        %1184 = vmatprep.mubr.bf16.mxu0 0
        %1185 = vmatmul.mubr.bf16.gmra.mrb[0].mxu0 %v1130
        %v1186 = vpop.f32.mrb[0].mxu0
        %v1187 = vadd.f32 0.0, %v1186
        %v1188 = vpop.f32.mrb[0].mxu0
        %v1189 = vpop.f32.mrb[0].mxu0
        %v1190 = vadd.f32 0.0, %v1189
        %v1191 = vpop.f32.mrb[0].mxu0
        %1192 = vmatprep.mubr.bf16.mxu0 0
        %1193 = vmatmul.mubr.bf16.gmra.mrb[0].mxu0 %v1131
        %v1194 = vpop.f32.mrb[0].mxu0
        %v1195 = vadd.f32 0.0, %v1194
        %v1196 = vpop.f32.mrb[0].mxu0
        %v1197 = vpop.f32.mrb[0].mxu0
        %v1198 = vadd.f32 0.0, %v1197
        %v1199 = vpop.f32.mrb[0].mxu0
        %1200 = vmatprep.mubr.bf16.mxu0 0
        %1201 = vmatmul.mubr.bf16.gmra.mrb[0].mxu0 %v1132
        %v1202 = vpop.f32.mrb[0].mxu0
        %v1203 = vadd.f32 0.0, %v1202
        %v1204 = vpop.f32.mrb[0].mxu0
        %v1205 = vpop.f32.mrb[0].mxu0
        %v1206 = vadd.f32 0.0, %v1205
        %v1207 = vpop.f32.mrb[0].mxu0
        %1208 = vmatprep.mubr.bf16.mxu0 0
        %1209 = vmatmul.mubr.bf16.gmra.mrb[0].mxu0 %v1133
        %v1210 = vpop.f32.mrb[0].mxu0
        %v1211 = vadd.f32 0.0, %v1210
        %v1212 = vpop.f32.mrb[0].mxu0
        %v1213 = vpop.f32.mrb[0].mxu0
        %v1214 = vadd.f32 0.0, %v1213
        %v1215 = vpop.f32.mrb[0].mxu0
        %1216 = vmatprep.mubr.bf16.mxu0 0
        %1217 = vmatmul.mubr.bf16.gmra.mrb[0].mxu0 %v1134
        %v1218 = vpop.f32.mrb[0].mxu0
        %v1219 = vadd.f32 0.0, %v1218
        %v1220 = vpop.f32.mrb[0].mxu0
        %v1221 = vpop.f32.mrb[0].mxu0
        %v1222 = vadd.f32 0.0, %v1221
        %v1223 = vpop.f32.mrb[0].mxu0
        %1224 = vmatprep.mubr.bf16.mxu0 0
        %1225 = vmatmul.mubr.bf16.gmra.mrb[0].mxu0 %v1135
        %v1226 = vpop.f32.mrb[0].mxu0
        %v1227 = vadd.f32 0.0, %v1226
        %v1228 = vpop.f32.mrb[0].mxu0
        %v1229 = vpop.f32.mrb[0].mxu0
        %v1230 = vadd.f32 0.0, %v1229
        %v1231 = vpop.f32.mrb[0].mxu0
        %1232 = vdwg.mxu0
        %1233 = vset.pattern.permute.xlu0 5
        %1234 = vperm.xlu0 %1233, %v226
        %v1235 = vpop.permute.xlu0 %1234
        %1236 = vset.pattern.permute.xlu0 5
        %1237 = vperm.xlu0 %1236, %v227
        %v1238 = vpop.permute.xlu0 %1237
        %1239 = vset.pattern.permute.xlu0 5
        %1240 = vperm.xlu0 %1239, %v228
        %v1241 = vpop.permute.xlu0 %1240
        %1242 = vset.pattern.permute.xlu0 5
        %1243 = vperm.xlu0 %1242, %v229
        %v1244 = vpop.permute.xlu0 %1243
        %1245 = vset.pattern.permute.xlu0 5
        %1246 = vperm.xlu0 %1245, %v230
        %v1247 = vpop.permute.xlu0 %1246
        %1248 = vset.pattern.permute.xlu0 5
        %1249 = vperm.xlu0 %1248, %v231
        %v1250 = vpop.permute.xlu0 %1249
        %1251 = vset.pattern.permute.xlu0 5
        %1252 = vperm.xlu0 %1251, %v232
        %v1253 = vpop.permute.xlu0 %1252
        %1254 = vset.pattern.permute.xlu0 5
        %1255 = vperm.xlu0 %1254, %v233
        %v1256 = vpop.permute.xlu0 %1255
        %1257 = vset.pattern.permute.xlu0 5
        %1258 = vperm.xlu0 %1257, %v234
        %v1259 = vpop.permute.xlu0 %1258
        %1260 = vset.pattern.permute.xlu0 5
        %1261 = vperm.xlu0 %1260, %v235
        %v1262 = vpop.permute.xlu0 %1261
        %1263 = vset.pattern.permute.xlu0 5
        %1264 = vperm.xlu0 %1263, %v236
        %v1265 = vpop.permute.xlu0 %1264
        %1266 = vset.pattern.permute.xlu0 5
        %1267 = vperm.xlu0 %1266, %v237
        %v1268 = vpop.permute.xlu0 %1267
        %1269 = vset.pattern.permute.xlu0 5
        %1270 = vperm.xlu0 %1269, %v238
        %v1271 = vpop.permute.xlu0 %1270
        %1272 = vset.pattern.permute.xlu0 5
        %1273 = vperm.xlu0 %1272, %v239
        %v1274 = vpop.permute.xlu0 %1273
        %1275 = vset.pattern.permute.xlu0 5
        %1276 = vperm.xlu0 %1275, %v240
        %v1277 = vpop.permute.xlu0 %1276
        %1278 = vset.pattern.permute.xlu0 5
        %1279 = vperm.xlu0 %1278, %v241
        %v1280 = vpop.permute.xlu0 %1279
        %vm1281 = vcmp.eq.s32.totalorder %v259, %v1235
        %vm1282 = vcmp.eq.s32.totalorder %v259, %v1238
        %vm1283 = vcmp.eq.s32.totalorder %v259, %v1241
        %vm1284 = vcmp.eq.s32.totalorder %v259, %v1244
        %vm1285 = vcmp.eq.s32.totalorder %v259, %v1247
        %vm1286 = vcmp.eq.s32.totalorder %v259, %v1250
        %vm1287 = vcmp.eq.s32.totalorder %v259, %v1253
        %vm1288 = vcmp.eq.s32.totalorder %v259, %v1256
        %vm1289 = vcmp.eq.s32.totalorder %v259, %v1259
        %vm1290 = vcmp.eq.s32.totalorder %v259, %v1262
        %vm1291 = vcmp.eq.s32.totalorder %v259, %v1265
        %vm1292 = vcmp.eq.s32.totalorder %v259, %v1268
        %vm1293 = vcmp.eq.s32.totalorder %v259, %v1271
        %vm1294 = vcmp.eq.s32.totalorder %v259, %v1274
        %vm1295 = vcmp.eq.s32.totalorder %v259, %v1277
        %vm1296 = vcmp.eq.s32.totalorder %v259, %v1280
        %v1297 = vsel %vm1281, 1.0, 0.0
        %v1298 = vsel %vm1282, 1.0, 0.0
        %v1299 = vsel %vm1283, 1.0, 0.0
        %v1300 = vsel %vm1284, 1.0, 0.0
        %v1301 = vsel %vm1285, 1.0, 0.0
        %v1302 = vsel %vm1286, 1.0, 0.0
        %v1303 = vsel %vm1287, 1.0, 0.0
        %v1304 = vsel %vm1288, 1.0, 0.0
        %v1305 = vsel %vm1289, 1.0, 0.0
        %v1306 = vsel %vm1290, 1.0, 0.0
        %v1307 = vsel %vm1291, 1.0, 0.0
        %v1308 = vsel %vm1292, 1.0, 0.0
        %v1309 = vsel %vm1293, 1.0, 0.0
        %v1310 = vsel %vm1294, 1.0, 0.0
        %v1311 = vsel %vm1295, 1.0, 0.0
        %v1312 = vsel %vm1296, 1.0, 0.0
        %v1313 = vpack.c.bf16 %v1298, %v1297
        %v1314 = vpack.c.bf16 %v1300, %v1299
        %v1315 = vpack.c.bf16 %v1302, %v1301
        %v1316 = vpack.c.bf16 %v1304, %v1303
        %v1317 = vpack.c.bf16 %v1306, %v1305
        %v1318 = vpack.c.bf16 %v1308, %v1307
        %v1319 = vpack.c.bf16 %v1310, %v1309
        %v1320 = vpack.c.bf16 %v1312, %v1311
        %1321 = vmatprep.subr.bf16.mxu0 0
        %1322 = vmatpush1.bf16.msra.mxu0 %v380
        %1323 = vmatprep.subr.bf16.mxu0 0
        %1324 = vmatpush1.bf16.msra.mxu0 %v381
        %1325 = vmatprep.subr.bf16.mxu0 0
        %1326 = vmatpush1.bf16.msra.mxu0 %v382
        %1327 = vmatprep.subr.bf16.mxu0 0
        %1328 = vmatpush1.bf16.msra.mxu0 %v383
        %1329 = vmatprep.subr.bf16.mxu0 0
        %1330 = vmatpush1.bf16.msra.mxu0 %v384
        %1331 = vmatprep.subr.bf16.mxu0 0
        %1332 = vmatpush1.bf16.msra.mxu0 %v385
        %1333 = vmatprep.subr.bf16.mxu0 0
        %1334 = vmatpush1.bf16.msra.mxu0 %v386
        %1335 = vmatprep.subr.bf16.mxu0 0
        %1336 = vmatpush1.bf16.msra.mxu0 %v387
        %1337 = vmatprep.subr.bf16.mxu0 0
        %1338 = vmatpush1.bf16.msra.mxu0 0
        %1339 = vmatprep.subr.bf16.mxu0 0
        %1340 = vmatpush1.bf16.msra.mxu0 0
        %1341 = vmatprep.subr.bf16.mxu0 0
        %1342 = vmatpush1.bf16.msra.mxu0 0
        %1343 = vmatprep.subr.bf16.mxu0 0
        %1344 = vmatpush1.bf16.msra.mxu0 0
        %1345 = vmatprep.subr.bf16.mxu0 0
        %1346 = vmatpush1.bf16.msra.mxu0 0
        %1347 = vmatprep.subr.bf16.mxu0 0
        %1348 = vmatpush1.bf16.msra.mxu0 0
        %1349 = vmatprep.subr.bf16.mxu0 0
        %1350 = vmatpush1.bf16.msra.mxu0 0
        %1351 = vmatprep.subr.bf16.mxu0 0
        %1352 = vmatpush1.bf16.msra.mxu0 0
        %1353 = vmatprep.mubr.bf16.mxu0 0
        %1354 = vmatmul.mubr.bf16.gmra.mrb[0].mxu0 %v1313
        %v1355 = vpop.f32.mrb[0].mxu0
        %v1356 = vadd.f32 0.0, %v1355
        %v1357 = vpop.f32.mrb[0].mxu0
        %v1358 = vpop.f32.mrb[0].mxu0
        %v1359 = vadd.f32 0.0, %v1358
        %v1360 = vpop.f32.mrb[0].mxu0
        %1361 = vmatprep.mubr.bf16.mxu0 0
        %1362 = vmatmul.mubr.bf16.gmra.mrb[0].mxu0 %v1314
        %v1363 = vpop.f32.mrb[0].mxu0
        %v1364 = vadd.f32 0.0, %v1363
        %v1365 = vpop.f32.mrb[0].mxu0
        %v1366 = vpop.f32.mrb[0].mxu0
        %v1367 = vadd.f32 0.0, %v1366
        %v1368 = vpop.f32.mrb[0].mxu0
        %1369 = vmatprep.mubr.bf16.mxu0 0
        %1370 = vmatmul.mubr.bf16.gmra.mrb[0].mxu0 %v1315
        %v1371 = vpop.f32.mrb[0].mxu0
        %v1372 = vadd.f32 0.0, %v1371
        %v1373 = vpop.f32.mrb[0].mxu0
        %v1374 = vpop.f32.mrb[0].mxu0
        %v1375 = vadd.f32 0.0, %v1374
        %v1376 = vpop.f32.mrb[0].mxu0
        %1377 = vmatprep.mubr.bf16.mxu0 0
        %1378 = vmatmul.mubr.bf16.gmra.mrb[0].mxu0 %v1316
        %v1379 = vpop.f32.mrb[0].mxu0
        %v1380 = vadd.f32 0.0, %v1379
        %v1381 = vpop.f32.mrb[0].mxu0
        %v1382 = vpop.f32.mrb[0].mxu0
        %v1383 = vadd.f32 0.0, %v1382
        %v1384 = vpop.f32.mrb[0].mxu0
        %1385 = vmatprep.mubr.bf16.mxu0 0
        %1386 = vmatmul.mubr.bf16.gmra.mrb[0].mxu0 %v1317
        %v1387 = vpop.f32.mrb[0].mxu0
        %v1388 = vadd.f32 0.0, %v1387
        %v1389 = vpop.f32.mrb[0].mxu0
        %v1390 = vpop.f32.mrb[0].mxu0
        %v1391 = vadd.f32 0.0, %v1390
        %v1392 = vpop.f32.mrb[0].mxu0
        %1393 = vmatprep.mubr.bf16.mxu0 0
        %1394 = vmatmul.mubr.bf16.gmra.mrb[0].mxu0 %v1318
        %v1395 = vpop.f32.mrb[0].mxu0
        %v1396 = vadd.f32 0.0, %v1395
        %v1397 = vpop.f32.mrb[0].mxu0
        %v1398 = vpop.f32.mrb[0].mxu0
        %v1399 = vadd.f32 0.0, %v1398
        %v1400 = vpop.f32.mrb[0].mxu0
        %1401 = vmatprep.mubr.bf16.mxu0 0
        %1402 = vmatmul.mubr.bf16.gmra.mrb[0].mxu0 %v1319
        %v1403 = vpop.f32.mrb[0].mxu0
        %v1404 = vadd.f32 0.0, %v1403
        %v1405 = vpop.f32.mrb[0].mxu0
        %v1406 = vpop.f32.mrb[0].mxu0
        %v1407 = vadd.f32 0.0, %v1406
        %v1408 = vpop.f32.mrb[0].mxu0
        %1409 = vmatprep.mubr.bf16.mxu0 0
        %1410 = vmatmul.mubr.bf16.gmra.mrb[0].mxu0 %v1320
        %v1411 = vpop.f32.mrb[0].mxu0
        %v1412 = vadd.f32 0.0, %v1411
        %v1413 = vpop.f32.mrb[0].mxu0
        %v1414 = vpop.f32.mrb[0].mxu0
        %v1415 = vadd.f32 0.0, %v1414
        %v1416 = vpop.f32.mrb[0].mxu0
        %1417 = vdwg.mxu0
        %1418 = vset.pattern.permute.xlu0 6
        %1419 = vperm.xlu0 %1418, %v226
        %v1420 = vpop.permute.xlu0 %1419
        %1421 = vset.pattern.permute.xlu0 6
        %1422 = vperm.xlu0 %1421, %v227
        %v1423 = vpop.permute.xlu0 %1422
        %1424 = vset.pattern.permute.xlu0 6
        %1425 = vperm.xlu0 %1424, %v228
        %v1426 = vpop.permute.xlu0 %1425
        %1427 = vset.pattern.permute.xlu0 6
        %1428 = vperm.xlu0 %1427, %v229
        %v1429 = vpop.permute.xlu0 %1428
        %1430 = vset.pattern.permute.xlu0 6
        %1431 = vperm.xlu0 %1430, %v230
        %v1432 = vpop.permute.xlu0 %1431
        %1433 = vset.pattern.permute.xlu0 6
        %1434 = vperm.xlu0 %1433, %v231
        %v1435 = vpop.permute.xlu0 %1434
        %1436 = vset.pattern.permute.xlu0 6
        %1437 = vperm.xlu0 %1436, %v232
        %v1438 = vpop.permute.xlu0 %1437
        %1439 = vset.pattern.permute.xlu0 6
        %1440 = vperm.xlu0 %1439, %v233
        %v1441 = vpop.permute.xlu0 %1440
        %1442 = vset.pattern.permute.xlu0 6
        %1443 = vperm.xlu0 %1442, %v234
        %v1444 = vpop.permute.xlu0 %1443
        %1445 = vset.pattern.permute.xlu0 6
        %1446 = vperm.xlu0 %1445, %v235
        %v1447 = vpop.permute.xlu0 %1446
        %1448 = vset.pattern.permute.xlu0 6
        %1449 = vperm.xlu0 %1448, %v236
        %v1450 = vpop.permute.xlu0 %1449
        %1451 = vset.pattern.permute.xlu0 6
        %1452 = vperm.xlu0 %1451, %v237
        %v1453 = vpop.permute.xlu0 %1452
        %1454 = vset.pattern.permute.xlu0 6
        %1455 = vperm.xlu0 %1454, %v238
        %v1456 = vpop.permute.xlu0 %1455
        %1457 = vset.pattern.permute.xlu0 6
        %1458 = vperm.xlu0 %1457, %v239
        %v1459 = vpop.permute.xlu0 %1458
        %1460 = vset.pattern.permute.xlu0 6
        %1461 = vperm.xlu0 %1460, %v240
        %v1462 = vpop.permute.xlu0 %1461
        %1463 = vset.pattern.permute.xlu0 6
        %1464 = vperm.xlu0 %1463, %v241
        %v1465 = vpop.permute.xlu0 %1464
        %vm1466 = vcmp.eq.s32.totalorder %v259, %v1420
        %vm1467 = vcmp.eq.s32.totalorder %v259, %v1423
        %vm1468 = vcmp.eq.s32.totalorder %v259, %v1426
        %vm1469 = vcmp.eq.s32.totalorder %v259, %v1429
        %vm1470 = vcmp.eq.s32.totalorder %v259, %v1432
        %vm1471 = vcmp.eq.s32.totalorder %v259, %v1435
        %vm1472 = vcmp.eq.s32.totalorder %v259, %v1438
        %vm1473 = vcmp.eq.s32.totalorder %v259, %v1441
        %vm1474 = vcmp.eq.s32.totalorder %v259, %v1444
        %vm1475 = vcmp.eq.s32.totalorder %v259, %v1447
        %vm1476 = vcmp.eq.s32.totalorder %v259, %v1450
        %vm1477 = vcmp.eq.s32.totalorder %v259, %v1453
        %vm1478 = vcmp.eq.s32.totalorder %v259, %v1456
        %vm1479 = vcmp.eq.s32.totalorder %v259, %v1459
        %vm1480 = vcmp.eq.s32.totalorder %v259, %v1462
        %vm1481 = vcmp.eq.s32.totalorder %v259, %v1465
        %v1482 = vsel %vm1466, 1.0, 0.0
        %v1483 = vsel %vm1467, 1.0, 0.0
        %v1484 = vsel %vm1468, 1.0, 0.0
        %v1485 = vsel %vm1469, 1.0, 0.0
        %v1486 = vsel %vm1470, 1.0, 0.0
        %v1487 = vsel %vm1471, 1.0, 0.0
        %v1488 = vsel %vm1472, 1.0, 0.0
        %v1489 = vsel %vm1473, 1.0, 0.0
        %v1490 = vsel %vm1474, 1.0, 0.0
        %v1491 = vsel %vm1475, 1.0, 0.0
        %v1492 = vsel %vm1476, 1.0, 0.0
        %v1493 = vsel %vm1477, 1.0, 0.0
        %v1494 = vsel %vm1478, 1.0, 0.0
        %v1495 = vsel %vm1479, 1.0, 0.0
        %v1496 = vsel %vm1480, 1.0, 0.0
        %v1497 = vsel %vm1481, 1.0, 0.0
        %v1498 = vpack.c.bf16 %v1483, %v1482
        %v1499 = vpack.c.bf16 %v1485, %v1484
        %v1500 = vpack.c.bf16 %v1487, %v1486
        %v1501 = vpack.c.bf16 %v1489, %v1488
        %v1502 = vpack.c.bf16 %v1491, %v1490
        %v1503 = vpack.c.bf16 %v1493, %v1492
        %v1504 = vpack.c.bf16 %v1495, %v1494
        %v1505 = vpack.c.bf16 %v1497, %v1496
        %1506 = vmatprep.subr.bf16.mxu0 0
        %1507 = vmatpush1.bf16.msra.mxu0 %v380
        %1508 = vmatprep.subr.bf16.mxu0 0
        %1509 = vmatpush1.bf16.msra.mxu0 %v381
        %1510 = vmatprep.subr.bf16.mxu0 0
        %1511 = vmatpush1.bf16.msra.mxu0 %v382
        %1512 = vmatprep.subr.bf16.mxu0 0
        %1513 = vmatpush1.bf16.msra.mxu0 %v383
        %1514 = vmatprep.subr.bf16.mxu0 0
        %1515 = vmatpush1.bf16.msra.mxu0 %v384
        %1516 = vmatprep.subr.bf16.mxu0 0
        %1517 = vmatpush1.bf16.msra.mxu0 %v385
        %1518 = vmatprep.subr.bf16.mxu0 0
        %1519 = vmatpush1.bf16.msra.mxu0 %v386
        %1520 = vmatprep.subr.bf16.mxu0 0
        %1521 = vmatpush1.bf16.msra.mxu0 %v387
        %1522 = vmatprep.subr.bf16.mxu0 0
        %1523 = vmatpush1.bf16.msra.mxu0 0
        %1524 = vmatprep.subr.bf16.mxu0 0
        %1525 = vmatpush1.bf16.msra.mxu0 0
        %1526 = vmatprep.subr.bf16.mxu0 0
        %1527 = vmatpush1.bf16.msra.mxu0 0
        %1528 = vmatprep.subr.bf16.mxu0 0
        %1529 = vmatpush1.bf16.msra.mxu0 0
        %1530 = vmatprep.subr.bf16.mxu0 0
        %1531 = vmatpush1.bf16.msra.mxu0 0
        %1532 = vmatprep.subr.bf16.mxu0 0
        %1533 = vmatpush1.bf16.msra.mxu0 0
        %1534 = vmatprep.subr.bf16.mxu0 0
        %1535 = vmatpush1.bf16.msra.mxu0 0
        %1536 = vmatprep.subr.bf16.mxu0 0
        %1537 = vmatpush1.bf16.msra.mxu0 0
        %1538 = vmatprep.mubr.bf16.mxu0 0
        %1539 = vmatmul.mubr.bf16.gmra.mrb[0].mxu0 %v1498
        %v1540 = vpop.f32.mrb[0].mxu0
        %v1541 = vadd.f32 0.0, %v1540
        %v1542 = vpop.f32.mrb[0].mxu0
        %v1543 = vpop.f32.mrb[0].mxu0
        %v1544 = vadd.f32 0.0, %v1543
        %v1545 = vpop.f32.mrb[0].mxu0
        %1546 = vmatprep.mubr.bf16.mxu0 0
        %1547 = vmatmul.mubr.bf16.gmra.mrb[0].mxu0 %v1499
        %v1548 = vpop.f32.mrb[0].mxu0
        %v1549 = vadd.f32 0.0, %v1548
        %v1550 = vpop.f32.mrb[0].mxu0
        %v1551 = vpop.f32.mrb[0].mxu0
        %v1552 = vadd.f32 0.0, %v1551
        %v1553 = vpop.f32.mrb[0].mxu0
        %1554 = vmatprep.mubr.bf16.mxu0 0
        %1555 = vmatmul.mubr.bf16.gmra.mrb[0].mxu0 %v1500
        %v1556 = vpop.f32.mrb[0].mxu0
        %v1557 = vadd.f32 0.0, %v1556
        %v1558 = vpop.f32.mrb[0].mxu0
        %v1559 = vpop.f32.mrb[0].mxu0
        %v1560 = vadd.f32 0.0, %v1559
        %v1561 = vpop.f32.mrb[0].mxu0
        %1562 = vmatprep.mubr.bf16.mxu0 0
        %1563 = vmatmul.mubr.bf16.gmra.mrb[0].mxu0 %v1501
        %v1564 = vpop.f32.mrb[0].mxu0
        %v1565 = vadd.f32 0.0, %v1564
        %v1566 = vpop.f32.mrb[0].mxu0
        %v1567 = vpop.f32.mrb[0].mxu0
        %v1568 = vadd.f32 0.0, %v1567
        %v1569 = vpop.f32.mrb[0].mxu0
        %1570 = vmatprep.mubr.bf16.mxu0 0
        %1571 = vmatmul.mubr.bf16.gmra.mrb[0].mxu0 %v1502
        %v1572 = vpop.f32.mrb[0].mxu0
        %v1573 = vadd.f32 0.0, %v1572
        %v1574 = vpop.f32.mrb[0].mxu0
        %v1575 = vpop.f32.mrb[0].mxu0
        %v1576 = vadd.f32 0.0, %v1575
        %v1577 = vpop.f32.mrb[0].mxu0
        %1578 = vmatprep.mubr.bf16.mxu0 0
        %1579 = vmatmul.mubr.bf16.gmra.mrb[0].mxu0 %v1503
        %v1580 = vpop.f32.mrb[0].mxu0
        %v1581 = vadd.f32 0.0, %v1580
        %v1582 = vpop.f32.mrb[0].mxu0
        %v1583 = vpop.f32.mrb[0].mxu0
        %v1584 = vadd.f32 0.0, %v1583
        %v1585 = vpop.f32.mrb[0].mxu0
        %1586 = vmatprep.mubr.bf16.mxu0 0
        %1587 = vmatmul.mubr.bf16.gmra.mrb[0].mxu0 %v1504
        %v1588 = vpop.f32.mrb[0].mxu0
        %v1589 = vadd.f32 0.0, %v1588
        %v1590 = vpop.f32.mrb[0].mxu0
        %v1591 = vpop.f32.mrb[0].mxu0
        %v1592 = vadd.f32 0.0, %v1591
        %v1593 = vpop.f32.mrb[0].mxu0
        %1594 = vmatprep.mubr.bf16.mxu0 0
        %1595 = vmatmul.mubr.bf16.gmra.mrb[0].mxu0 %v1505
        %v1596 = vpop.f32.mrb[0].mxu0
        %v1597 = vadd.f32 0.0, %v1596
        %v1598 = vpop.f32.mrb[0].mxu0
        %v1599 = vpop.f32.mrb[0].mxu0
        %v1600 = vadd.f32 0.0, %v1599
        %v1601 = vpop.f32.mrb[0].mxu0
        %1602 = vdwg.mxu0
        %1603 = vset.pattern.permute.xlu0 7
        %1604 = vperm.xlu0 %1603, %v226
        %v1605 = vpop.permute.xlu0 %1604
        %1606 = vset.pattern.permute.xlu0 7
        %1607 = vperm.xlu0 %1606, %v227
        %v1608 = vpop.permute.xlu0 %1607
        %1609 = vset.pattern.permute.xlu0 7
        %1610 = vperm.xlu0 %1609, %v228
        %v1611 = vpop.permute.xlu0 %1610
        %1612 = vset.pattern.permute.xlu0 7
        %1613 = vperm.xlu0 %1612, %v229
        %v1614 = vpop.permute.xlu0 %1613
        %1615 = vset.pattern.permute.xlu0 7
        %1616 = vperm.xlu0 %1615, %v230
        %v1617 = vpop.permute.xlu0 %1616
        %1618 = vset.pattern.permute.xlu0 7
        %1619 = vperm.xlu0 %1618, %v231
        %v1620 = vpop.permute.xlu0 %1619
        %1621 = vset.pattern.permute.xlu0 7
        %1622 = vperm.xlu0 %1621, %v232
        %v1623 = vpop.permute.xlu0 %1622
        %1624 = vset.pattern.permute.xlu0 7
        %1625 = vperm.xlu0 %1624, %v233
        %v1626 = vpop.permute.xlu0 %1625
        %1627 = vset.pattern.permute.xlu0 7
        %1628 = vperm.xlu0 %1627, %v234
        %v1629 = vpop.permute.xlu0 %1628
        %1630 = vset.pattern.permute.xlu0 7
        %1631 = vperm.xlu0 %1630, %v235
        %v1632 = vpop.permute.xlu0 %1631
        %1633 = vset.pattern.permute.xlu0 7
        %1634 = vperm.xlu0 %1633, %v236
        %v1635 = vpop.permute.xlu0 %1634
        %1636 = vset.pattern.permute.xlu0 7
        %1637 = vperm.xlu0 %1636, %v237
        %v1638 = vpop.permute.xlu0 %1637
        %1639 = vset.pattern.permute.xlu0 7
        %1640 = vperm.xlu0 %1639, %v238
        %v1641 = vpop.permute.xlu0 %1640
        %1642 = vset.pattern.permute.xlu0 7
        %1643 = vperm.xlu0 %1642, %v239
        %v1644 = vpop.permute.xlu0 %1643
        %1645 = vset.pattern.permute.xlu0 7
        %1646 = vperm.xlu0 %1645, %v240
        %v1647 = vpop.permute.xlu0 %1646
        %1648 = vset.pattern.permute.xlu0 7
        %1649 = vperm.xlu0 %1648, %v241
        %v1650 = vpop.permute.xlu0 %1649
        %vm1651 = vcmp.eq.s32.totalorder %v259, %v1605
        %vm1652 = vcmp.eq.s32.totalorder %v259, %v1608
        %vm1653 = vcmp.eq.s32.totalorder %v259, %v1611
        %vm1654 = vcmp.eq.s32.totalorder %v259, %v1614
        %vm1655 = vcmp.eq.s32.totalorder %v259, %v1617
        %vm1656 = vcmp.eq.s32.totalorder %v259, %v1620
        %vm1657 = vcmp.eq.s32.totalorder %v259, %v1623
        %vm1658 = vcmp.eq.s32.totalorder %v259, %v1626
        %vm1659 = vcmp.eq.s32.totalorder %v259, %v1629
        %vm1660 = vcmp.eq.s32.totalorder %v259, %v1632
        %vm1661 = vcmp.eq.s32.totalorder %v259, %v1635
        %vm1662 = vcmp.eq.s32.totalorder %v259, %v1638
        %vm1663 = vcmp.eq.s32.totalorder %v259, %v1641
        %vm1664 = vcmp.eq.s32.totalorder %v259, %v1644
        %vm1665 = vcmp.eq.s32.totalorder %v259, %v1647
        %vm1666 = vcmp.eq.s32.totalorder %v259, %v1650
        %v1667 = vsel %vm1651, 1.0, 0.0
        %v1668 = vsel %vm1652, 1.0, 0.0
        %v1669 = vsel %vm1653, 1.0, 0.0
        %v1670 = vsel %vm1654, 1.0, 0.0
        %v1671 = vsel %vm1655, 1.0, 0.0
        %v1672 = vsel %vm1656, 1.0, 0.0
        %v1673 = vsel %vm1657, 1.0, 0.0
        %v1674 = vsel %vm1658, 1.0, 0.0
        %v1675 = vsel %vm1659, 1.0, 0.0
        %v1676 = vsel %vm1660, 1.0, 0.0
        %v1677 = vsel %vm1661, 1.0, 0.0
        %v1678 = vsel %vm1662, 1.0, 0.0
        %v1679 = vsel %vm1663, 1.0, 0.0
        %v1680 = vsel %vm1664, 1.0, 0.0
        %v1681 = vsel %vm1665, 1.0, 0.0
        %v1682 = vsel %vm1666, 1.0, 0.0
        %v1683 = vpack.c.bf16 %v1668, %v1667
        %v1684 = vpack.c.bf16 %v1670, %v1669
        %v1685 = vpack.c.bf16 %v1672, %v1671
        %v1686 = vpack.c.bf16 %v1674, %v1673
        %v1687 = vpack.c.bf16 %v1676, %v1675
        %v1688 = vpack.c.bf16 %v1678, %v1677
        %v1689 = vpack.c.bf16 %v1680, %v1679
        %v1690 = vpack.c.bf16 %v1682, %v1681
        %1691 = vmatprep.subr.bf16.mxu0 0
        %1692 = vmatpush1.bf16.msra.mxu0 %v380
        %1693 = vmatprep.subr.bf16.mxu0 0
        %1694 = vmatpush1.bf16.msra.mxu0 %v381
        %1695 = vmatprep.subr.bf16.mxu0 0
        %1696 = vmatpush1.bf16.msra.mxu0 %v382
        %1697 = vmatprep.subr.bf16.mxu0 0
        %1698 = vmatpush1.bf16.msra.mxu0 %v383
        %1699 = vmatprep.subr.bf16.mxu0 0
        %1700 = vmatpush1.bf16.msra.mxu0 %v384
        %1701 = vmatprep.subr.bf16.mxu0 0
        %1702 = vmatpush1.bf16.msra.mxu0 %v385
        %1703 = vmatprep.subr.bf16.mxu0 0
        %1704 = vmatpush1.bf16.msra.mxu0 %v386
        %1705 = vmatprep.subr.bf16.mxu0 0
        %1706 = vmatpush1.bf16.msra.mxu0 %v387
        %1707 = vmatprep.subr.bf16.mxu0 0
        %1708 = vmatpush1.bf16.msra.mxu0 0
        %1709 = vmatprep.subr.bf16.mxu0 0
        %1710 = vmatpush1.bf16.msra.mxu0 0
        %1711 = vmatprep.subr.bf16.mxu0 0
        %1712 = vmatpush1.bf16.msra.mxu0 0
        %1713 = vmatprep.subr.bf16.mxu0 0
        %1714 = vmatpush1.bf16.msra.mxu0 0
        %1715 = vmatprep.subr.bf16.mxu0 0
        %1716 = vmatpush1.bf16.msra.mxu0 0
        %1717 = vmatprep.subr.bf16.mxu0 0
        %1718 = vmatpush1.bf16.msra.mxu0 0
        %1719 = vmatprep.subr.bf16.mxu0 0
        %1720 = vmatpush1.bf16.msra.mxu0 0
        %1721 = vmatprep.subr.bf16.mxu0 0
        %1722 = vmatpush1.bf16.msra.mxu0 0
        %1723 = vmatprep.mubr.bf16.mxu0 0
        %1724 = vmatmul.mubr.bf16.gmra.mrb[0].mxu0 %v1683
        %v1725 = vpop.f32.mrb[0].mxu0
        %v1726 = vadd.f32 0.0, %v1725
        %v1727 = vpop.f32.mrb[0].mxu0
        %v1728 = vpop.f32.mrb[0].mxu0
        %v1729 = vadd.f32 0.0, %v1728
        %v1730 = vpop.f32.mrb[0].mxu0
        %1731 = vmatprep.mubr.bf16.mxu0 0
        %1732 = vmatmul.mubr.bf16.gmra.mrb[0].mxu0 %v1684
        %v1733 = vpop.f32.mrb[0].mxu0
        %v1734 = vadd.f32 0.0, %v1733
        %v1735 = vpop.f32.mrb[0].mxu0
        %v1736 = vpop.f32.mrb[0].mxu0
        %v1737 = vadd.f32 0.0, %v1736
        %v1738 = vpop.f32.mrb[0].mxu0
        %1739 = vmatprep.mubr.bf16.mxu0 0
        %1740 = vmatmul.mubr.bf16.gmra.mrb[0].mxu0 %v1685
        %v1741 = vpop.f32.mrb[0].mxu0
        %v1742 = vadd.f32 0.0, %v1741
        %v1743 = vpop.f32.mrb[0].mxu0
        %v1744 = vpop.f32.mrb[0].mxu0
        %v1745 = vadd.f32 0.0, %v1744
        %v1746 = vpop.f32.mrb[0].mxu0
        %1747 = vmatprep.mubr.bf16.mxu0 0
        %1748 = vmatmul.mubr.bf16.gmra.mrb[0].mxu0 %v1686
        %v1749 = vpop.f32.mrb[0].mxu0
        %v1750 = vadd.f32 0.0, %v1749
        %v1751 = vpop.f32.mrb[0].mxu0
        %v1752 = vpop.f32.mrb[0].mxu0
        %v1753 = vadd.f32 0.0, %v1752
        %v1754 = vpop.f32.mrb[0].mxu0
        %1755 = vmatprep.mubr.bf16.mxu0 0
        %1756 = vmatmul.mubr.bf16.gmra.mrb[0].mxu0 %v1687
        %v1757 = vpop.f32.mrb[0].mxu0
        %v1758 = vadd.f32 0.0, %v1757
        %v1759 = vpop.f32.mrb[0].mxu0
        %v1760 = vpop.f32.mrb[0].mxu0
        %v1761 = vadd.f32 0.0, %v1760
        %v1762 = vpop.f32.mrb[0].mxu0
        %1763 = vmatprep.mubr.bf16.mxu0 0
        %1764 = vmatmul.mubr.bf16.gmra.mrb[0].mxu0 %v1688
        %v1765 = vpop.f32.mrb[0].mxu0
        %v1766 = vadd.f32 0.0, %v1765
        %v1767 = vpop.f32.mrb[0].mxu0
        %v1768 = vpop.f32.mrb[0].mxu0
        %v1769 = vadd.f32 0.0, %v1768
        %v1770 = vpop.f32.mrb[0].mxu0
        %1771 = vmatprep.mubr.bf16.mxu0 0
        %1772 = vmatmul.mubr.bf16.gmra.mrb[0].mxu0 %v1689
        %v1773 = vpop.f32.mrb[0].mxu0
        %v1774 = vadd.f32 0.0, %v1773
        %v1775 = vpop.f32.mrb[0].mxu0
        %v1776 = vpop.f32.mrb[0].mxu0
        %v1777 = vadd.f32 0.0, %v1776
        %v1778 = vpop.f32.mrb[0].mxu0
        %1779 = vmatprep.mubr.bf16.mxu0 0
        %1780 = vmatmul.mubr.bf16.gmra.mrb[0].mxu0 %v1690
        %v1781 = vpop.f32.mrb[0].mxu0
        %v1782 = vadd.f32 0.0, %v1781
        %v1783 = vpop.f32.mrb[0].mxu0
        %v1784 = vpop.f32.mrb[0].mxu0
        %v1785 = vadd.f32 0.0, %v1784
        %v1786 = vpop.f32.mrb[0].mxu0
        %1787 = vdwg.mxu0
        %v1788 = vld [vmem:[%s2] sm:$0x1]
        %v1790 = vlaneseq
        %v1791 = vshrl.u32 %v1790, 7
        %v1792 = vsub.s32 0, %v1791
        %v1793 = vrot.slane %v1788, %v1792
        %1811 = vrot.lane.b32.xlu0 %v616, 112
        %v1812 = vpop.permute.xlu0 %1811
        %1813 = vrot.lane.b32.xlu0 %v619, 112
        %v1814 = vpop.permute.xlu0 %1813
        %1815 = vrot.lane.b32.xlu0 %v624, 112
        %v1816 = vpop.permute.xlu0 %1815
        %1817 = vrot.lane.b32.xlu0 %v627, 112
        %v1818 = vpop.permute.xlu0 %1817
        %1819 = vrot.lane.b32.xlu0 %v632, 112
        %v1820 = vpop.permute.xlu0 %1819
        %1821 = vrot.lane.b32.xlu0 %v635, 112
        %v1822 = vpop.permute.xlu0 %1821
        %1823 = vrot.lane.b32.xlu0 %v640, 112
        %v1824 = vpop.permute.xlu0 %1823
        %1825 = vrot.lane.b32.xlu0 %v643, 112
        %v1826 = vpop.permute.xlu0 %1825
        %1827 = vrot.lane.b32.xlu0 %v648, 112
        %v1828 = vpop.permute.xlu0 %1827
        %1829 = vrot.lane.b32.xlu0 %v651, 112
        %v1830 = vpop.permute.xlu0 %1829
        %1831 = vrot.lane.b32.xlu0 %v656, 112
        %v1832 = vpop.permute.xlu0 %1831
        %1833 = vrot.lane.b32.xlu0 %v659, 112
        %v1834 = vpop.permute.xlu0 %1833
        %1835 = vrot.lane.b32.xlu0 %v664, 112
        %v1836 = vpop.permute.xlu0 %1835
        %1837 = vrot.lane.b32.xlu0 %v667, 112
        %v1838 = vpop.permute.xlu0 %1837
        %1839 = vrot.lane.b32.xlu0 %v672, 112
        %v1840 = vpop.permute.xlu0 %1839
        %1841 = vrot.lane.b32.xlu0 %v675, 112
        %v1842 = vpop.permute.xlu0 %1841
        %v1859 = vadd.f32 %v431, %v1812
        %v1860 = vadd.f32 %v434, %v1814
        %v1861 = vadd.f32 %v439, %v1816
        %v1862 = vadd.f32 %v442, %v1818
        %v1863 = vadd.f32 %v447, %v1820
        %v1864 = vadd.f32 %v450, %v1822
        %v1865 = vadd.f32 %v455, %v1824
        %v1866 = vadd.f32 %v458, %v1826
        %v1867 = vadd.f32 %v463, %v1828
        %v1868 = vadd.f32 %v466, %v1830
        %v1869 = vadd.f32 %v471, %v1832
        %v1870 = vadd.f32 %v474, %v1834
        %v1871 = vadd.f32 %v479, %v1836
        %v1872 = vadd.f32 %v482, %v1838
        %v1873 = vadd.f32 %v487, %v1840
        %v1874 = vadd.f32 %v490, %v1842
        %1891 = vrot.lane.b32.xlu0 %v801, 96
        %v1892 = vpop.permute.xlu0 %1891
        %1893 = vrot.lane.b32.xlu0 %v804, 96
        %v1894 = vpop.permute.xlu0 %1893
        %1895 = vrot.lane.b32.xlu0 %v809, 96
        %v1896 = vpop.permute.xlu0 %1895
        %1897 = vrot.lane.b32.xlu0 %v812, 96
        %v1898 = vpop.permute.xlu0 %1897
        %1899 = vrot.lane.b32.xlu0 %v817, 96
        %v1900 = vpop.permute.xlu0 %1899
        %1901 = vrot.lane.b32.xlu0 %v820, 96
        %v1902 = vpop.permute.xlu0 %1901
        %1903 = vrot.lane.b32.xlu0 %v825, 96
        %v1904 = vpop.permute.xlu0 %1903
        %1905 = vrot.lane.b32.xlu0 %v828, 96
        %v1906 = vpop.permute.xlu0 %1905
        %1907 = vrot.lane.b32.xlu0 %v833, 96
        %v1908 = vpop.permute.xlu0 %1907
        %1909 = vrot.lane.b32.xlu0 %v836, 96
        %v1910 = vpop.permute.xlu0 %1909
        %1911 = vrot.lane.b32.xlu0 %v841, 96
        %v1912 = vpop.permute.xlu0 %1911
        %1913 = vrot.lane.b32.xlu0 %v844, 96
        %v1914 = vpop.permute.xlu0 %1913
        %1915 = vrot.lane.b32.xlu0 %v849, 96
        %v1916 = vpop.permute.xlu0 %1915
        %1917 = vrot.lane.b32.xlu0 %v852, 96
        %v1918 = vpop.permute.xlu0 %1917
        %1919 = vrot.lane.b32.xlu0 %v857, 96
        %v1920 = vpop.permute.xlu0 %1919
        %1921 = vrot.lane.b32.xlu0 %v860, 96
        %v1922 = vpop.permute.xlu0 %1921
        %v1939 = vadd.f32 %v1859, %v1892
        %v1940 = vadd.f32 %v1860, %v1894
        %v1941 = vadd.f32 %v1861, %v1896
        %v1942 = vadd.f32 %v1862, %v1898
        %v1943 = vadd.f32 %v1863, %v1900
        %v1944 = vadd.f32 %v1864, %v1902
        %v1945 = vadd.f32 %v1865, %v1904
        %v1946 = vadd.f32 %v1866, %v1906
        %v1947 = vadd.f32 %v1867, %v1908
        %v1948 = vadd.f32 %v1868, %v1910
        %v1949 = vadd.f32 %v1869, %v1912
        %v1950 = vadd.f32 %v1870, %v1914
        %v1951 = vadd.f32 %v1871, %v1916
        %v1952 = vadd.f32 %v1872, %v1918
        %v1953 = vadd.f32 %v1873, %v1920
        %v1954 = vadd.f32 %v1874, %v1922
        %1971 = vrot.lane.b32.xlu0 %v986, 80
        %v1972 = vpop.permute.xlu0 %1971
        %1973 = vrot.lane.b32.xlu0 %v989, 80
        %v1974 = vpop.permute.xlu0 %1973
        %1975 = vrot.lane.b32.xlu0 %v994, 80
        %v1976 = vpop.permute.xlu0 %1975
        %1977 = vrot.lane.b32.xlu0 %v997, 80
        %v1978 = vpop.permute.xlu0 %1977
        %1979 = vrot.lane.b32.xlu0 %v1002, 80
        %v1980 = vpop.permute.xlu0 %1979
        %1981 = vrot.lane.b32.xlu0 %v1005, 80
        %v1982 = vpop.permute.xlu0 %1981
        %1983 = vrot.lane.b32.xlu0 %v1010, 80
        %v1984 = vpop.permute.xlu0 %1983
        %1985 = vrot.lane.b32.xlu0 %v1013, 80
        %v1986 = vpop.permute.xlu0 %1985
        %1987 = vrot.lane.b32.xlu0 %v1018, 80
        %v1988 = vpop.permute.xlu0 %1987
        %1989 = vrot.lane.b32.xlu0 %v1021, 80
        %v1990 = vpop.permute.xlu0 %1989
        %1991 = vrot.lane.b32.xlu0 %v1026, 80
        %v1992 = vpop.permute.xlu0 %1991
        %1993 = vrot.lane.b32.xlu0 %v1029, 80
        %v1994 = vpop.permute.xlu0 %1993
        %1995 = vrot.lane.b32.xlu0 %v1034, 80
        %v1996 = vpop.permute.xlu0 %1995
        %1997 = vrot.lane.b32.xlu0 %v1037, 80
        %v1998 = vpop.permute.xlu0 %1997
        %1999 = vrot.lane.b32.xlu0 %v1042, 80
        %v2000 = vpop.permute.xlu0 %1999
        %2001 = vrot.lane.b32.xlu0 %v1045, 80
        %v2002 = vpop.permute.xlu0 %2001
        %v2019 = vadd.f32 %v1939, %v1972
        %v2020 = vadd.f32 %v1940, %v1974
        %v2021 = vadd.f32 %v1941, %v1976
        %v2022 = vadd.f32 %v1942, %v1978
        %v2023 = vadd.f32 %v1943, %v1980
        %v2024 = vadd.f32 %v1944, %v1982
        %v2025 = vadd.f32 %v1945, %v1984
        %v2026 = vadd.f32 %v1946, %v1986
        %v2027 = vadd.f32 %v1947, %v1988
        %v2028 = vadd.f32 %v1948, %v1990
        %v2029 = vadd.f32 %v1949, %v1992
        %v2030 = vadd.f32 %v1950, %v1994
        %v2031 = vadd.f32 %v1951, %v1996
        %v2032 = vadd.f32 %v1952, %v1998
        %v2033 = vadd.f32 %v1953, %v2000
        %v2034 = vadd.f32 %v1954, %v2002
        %v2035 = vadd.f32 %v2019, %v1793
        %v2036 = vadd.f32 %v2020, %v1793
        %v2037 = vadd.f32 %v2021, %v1793
        %v2038 = vadd.f32 %v2022, %v1793
        %v2039 = vadd.f32 %v2023, %v1793
        %v2040 = vadd.f32 %v2024, %v1793
        %v2041 = vadd.f32 %v2025, %v1793
        %v2042 = vadd.f32 %v2026, %v1793
        %v2043 = vadd.f32 %v2027, %v1793
        %v2044 = vadd.f32 %v2028, %v1793
        %v2045 = vadd.f32 %v2029, %v1793
        %v2046 = vadd.f32 %v2030, %v1793
        %v2047 = vadd.f32 %v2031, %v1793
        %v2048 = vadd.f32 %v2032, %v1793
        %v2049 = vadd.f32 %v2033, %v1793
        %v2050 = vadd.f32 %v2034, %v1793
        %v2051 = vmax.f32 %v2035, 0.0
        %v2052 = vmax.f32 %v2036, 0.0
        %v2053 = vmax.f32 %v2037, 0.0
        %v2054 = vmax.f32 %v2038, 0.0
        %v2055 = vmax.f32 %v2039, 0.0
        %v2056 = vmax.f32 %v2040, 0.0
        %v2057 = vmax.f32 %v2041, 0.0
        %v2058 = vmax.f32 %v2042, 0.0
        %v2059 = vmax.f32 %v2043, 0.0
        %v2060 = vmax.f32 %v2044, 0.0
        %v2061 = vmax.f32 %v2045, 0.0
        %v2062 = vmax.f32 %v2046, 0.0
        %v2063 = vmax.f32 %v2047, 0.0
        %v2064 = vmax.f32 %v2048, 0.0
        %v2065 = vmax.f32 %v2049, 0.0
        %v2066 = vmax.f32 %v2050, 0.0
        %2067 = vrot.lane.b32.xlu0 %v801, 112
        %v2068 = vpop.permute.xlu0 %2067
        %2069 = vrot.lane.b32.xlu0 %v804, 112
        %v2070 = vpop.permute.xlu0 %2069
        %2071 = vrot.lane.b32.xlu0 %v809, 112
        %v2072 = vpop.permute.xlu0 %2071
        %2073 = vrot.lane.b32.xlu0 %v812, 112
        %v2074 = vpop.permute.xlu0 %2073
        %2075 = vrot.lane.b32.xlu0 %v817, 112
        %v2076 = vpop.permute.xlu0 %2075
        %2077 = vrot.lane.b32.xlu0 %v820, 112
        %v2078 = vpop.permute.xlu0 %2077
        %2079 = vrot.lane.b32.xlu0 %v825, 112
        %v2080 = vpop.permute.xlu0 %2079
        %2081 = vrot.lane.b32.xlu0 %v828, 112
        %v2082 = vpop.permute.xlu0 %2081
        %2083 = vrot.lane.b32.xlu0 %v833, 112
        %v2084 = vpop.permute.xlu0 %2083
        %2085 = vrot.lane.b32.xlu0 %v836, 112
        %v2086 = vpop.permute.xlu0 %2085
        %2087 = vrot.lane.b32.xlu0 %v841, 112
        %v2088 = vpop.permute.xlu0 %2087
        %2089 = vrot.lane.b32.xlu0 %v844, 112
        %v2090 = vpop.permute.xlu0 %2089
        %2091 = vrot.lane.b32.xlu0 %v849, 112
        %v2092 = vpop.permute.xlu0 %2091
        %2093 = vrot.lane.b32.xlu0 %v852, 112
        %v2094 = vpop.permute.xlu0 %2093
        %2095 = vrot.lane.b32.xlu0 %v857, 112
        %v2096 = vpop.permute.xlu0 %2095
        %2097 = vrot.lane.b32.xlu0 %v860, 112
        %v2098 = vpop.permute.xlu0 %2097
        %v2115 = vadd.f32 %v616, %v2068
        %v2116 = vadd.f32 %v619, %v2070
        %v2117 = vadd.f32 %v624, %v2072
        %v2118 = vadd.f32 %v627, %v2074
        %v2119 = vadd.f32 %v632, %v2076
        %v2120 = vadd.f32 %v635, %v2078
        %v2121 = vadd.f32 %v640, %v2080
        %v2122 = vadd.f32 %v643, %v2082
        %v2123 = vadd.f32 %v648, %v2084
        %v2124 = vadd.f32 %v651, %v2086
        %v2125 = vadd.f32 %v656, %v2088
        %v2126 = vadd.f32 %v659, %v2090
        %v2127 = vadd.f32 %v664, %v2092
        %v2128 = vadd.f32 %v667, %v2094
        %v2129 = vadd.f32 %v672, %v2096
        %v2130 = vadd.f32 %v675, %v2098
        %2131 = vrot.lane.b32.xlu0 %v986, 96
        %v2132 = vpop.permute.xlu0 %2131
        %2133 = vrot.lane.b32.xlu0 %v989, 96
        %v2134 = vpop.permute.xlu0 %2133
        %2135 = vrot.lane.b32.xlu0 %v994, 96
        %v2136 = vpop.permute.xlu0 %2135
        %2137 = vrot.lane.b32.xlu0 %v997, 96
        %v2138 = vpop.permute.xlu0 %2137
        %2139 = vrot.lane.b32.xlu0 %v1002, 96
        %v2140 = vpop.permute.xlu0 %2139
        %2141 = vrot.lane.b32.xlu0 %v1005, 96
        %v2142 = vpop.permute.xlu0 %2141
        %2143 = vrot.lane.b32.xlu0 %v1010, 96
        %v2144 = vpop.permute.xlu0 %2143
        %2145 = vrot.lane.b32.xlu0 %v1013, 96
        %v2146 = vpop.permute.xlu0 %2145
        %2147 = vrot.lane.b32.xlu0 %v1018, 96
        %v2148 = vpop.permute.xlu0 %2147
        %2149 = vrot.lane.b32.xlu0 %v1021, 96
        %v2150 = vpop.permute.xlu0 %2149
        %2151 = vrot.lane.b32.xlu0 %v1026, 96
        %v2152 = vpop.permute.xlu0 %2151
        %2153 = vrot.lane.b32.xlu0 %v1029, 96
        %v2154 = vpop.permute.xlu0 %2153
        %2155 = vrot.lane.b32.xlu0 %v1034, 96
        %v2156 = vpop.permute.xlu0 %2155
        %2157 = vrot.lane.b32.xlu0 %v1037, 96
        %v2158 = vpop.permute.xlu0 %2157
        %2159 = vrot.lane.b32.xlu0 %v1042, 96
        %v2160 = vpop.permute.xlu0 %2159
        %2161 = vrot.lane.b32.xlu0 %v1045, 96
        %v2162 = vpop.permute.xlu0 %2161
        %v2179 = vadd.f32 %v2115, %v2132
        %v2180 = vadd.f32 %v2116, %v2134
        %v2181 = vadd.f32 %v2117, %v2136
        %v2182 = vadd.f32 %v2118, %v2138
        %v2183 = vadd.f32 %v2119, %v2140
        %v2184 = vadd.f32 %v2120, %v2142
        %v2185 = vadd.f32 %v2121, %v2144
        %v2186 = vadd.f32 %v2122, %v2146
        %v2187 = vadd.f32 %v2123, %v2148
        %v2188 = vadd.f32 %v2124, %v2150
        %v2189 = vadd.f32 %v2125, %v2152
        %v2190 = vadd.f32 %v2126, %v2154
        %v2191 = vadd.f32 %v2127, %v2156
        %v2192 = vadd.f32 %v2128, %v2158
        %v2193 = vadd.f32 %v2129, %v2160
        %v2194 = vadd.f32 %v2130, %v2162
        %2211 = vrot.lane.b32.xlu0 %v1171, 80
        %v2212 = vpop.permute.xlu0 %2211
        %2213 = vrot.lane.b32.xlu0 %v1174, 80
        %v2214 = vpop.permute.xlu0 %2213
        %2215 = vrot.lane.b32.xlu0 %v1179, 80
        %v2216 = vpop.permute.xlu0 %2215
        %2217 = vrot.lane.b32.xlu0 %v1182, 80
        %v2218 = vpop.permute.xlu0 %2217
        %2219 = vrot.lane.b32.xlu0 %v1187, 80
        %v2220 = vpop.permute.xlu0 %2219
        %2221 = vrot.lane.b32.xlu0 %v1190, 80
        %v2222 = vpop.permute.xlu0 %2221
        %2223 = vrot.lane.b32.xlu0 %v1195, 80
        %v2224 = vpop.permute.xlu0 %2223
        %2225 = vrot.lane.b32.xlu0 %v1198, 80
        %v2226 = vpop.permute.xlu0 %2225
        %2227 = vrot.lane.b32.xlu0 %v1203, 80
        %v2228 = vpop.permute.xlu0 %2227
        %2229 = vrot.lane.b32.xlu0 %v1206, 80
        %v2230 = vpop.permute.xlu0 %2229
        %2231 = vrot.lane.b32.xlu0 %v1211, 80
        %v2232 = vpop.permute.xlu0 %2231
        %2233 = vrot.lane.b32.xlu0 %v1214, 80
        %v2234 = vpop.permute.xlu0 %2233
        %2235 = vrot.lane.b32.xlu0 %v1219, 80
        %v2236 = vpop.permute.xlu0 %2235
        %2237 = vrot.lane.b32.xlu0 %v1222, 80
        %v2238 = vpop.permute.xlu0 %2237
        %2239 = vrot.lane.b32.xlu0 %v1227, 80
        %v2240 = vpop.permute.xlu0 %2239
        %2241 = vrot.lane.b32.xlu0 %v1230, 80
        %v2242 = vpop.permute.xlu0 %2241
        %v2259 = vadd.f32 %v2179, %v2212
        %v2260 = vadd.f32 %v2180, %v2214
        %v2261 = vadd.f32 %v2181, %v2216
        %v2262 = vadd.f32 %v2182, %v2218
        %v2263 = vadd.f32 %v2183, %v2220
        %v2264 = vadd.f32 %v2184, %v2222
        %v2265 = vadd.f32 %v2185, %v2224
        %v2266 = vadd.f32 %v2186, %v2226
        %v2267 = vadd.f32 %v2187, %v2228
        %v2268 = vadd.f32 %v2188, %v2230
        %v2269 = vadd.f32 %v2189, %v2232
        %v2270 = vadd.f32 %v2190, %v2234
        %v2271 = vadd.f32 %v2191, %v2236
        %v2272 = vadd.f32 %v2192, %v2238
        %v2273 = vadd.f32 %v2193, %v2240
        %v2274 = vadd.f32 %v2194, %v2242
        %v2275 = vadd.f32 %v2259, %v1793
        %v2276 = vadd.f32 %v2260, %v1793
        %v2277 = vadd.f32 %v2261, %v1793
        %v2278 = vadd.f32 %v2262, %v1793
        %v2279 = vadd.f32 %v2263, %v1793
        %v2280 = vadd.f32 %v2264, %v1793
        %v2281 = vadd.f32 %v2265, %v1793
        %v2282 = vadd.f32 %v2266, %v1793
        %v2283 = vadd.f32 %v2267, %v1793
        %v2284 = vadd.f32 %v2268, %v1793
        %v2285 = vadd.f32 %v2269, %v1793
        %v2286 = vadd.f32 %v2270, %v1793
        %v2287 = vadd.f32 %v2271, %v1793
        %v2288 = vadd.f32 %v2272, %v1793
        %v2289 = vadd.f32 %v2273, %v1793
        %v2290 = vadd.f32 %v2274, %v1793
        %v2291 = vmax.f32 %v2275, 0.0
        %v2292 = vmax.f32 %v2276, 0.0
        %v2293 = vmax.f32 %v2277, 0.0
        %v2294 = vmax.f32 %v2278, 0.0
        %v2295 = vmax.f32 %v2279, 0.0
        %v2296 = vmax.f32 %v2280, 0.0
        %v2297 = vmax.f32 %v2281, 0.0
        %v2298 = vmax.f32 %v2282, 0.0
        %v2299 = vmax.f32 %v2283, 0.0
        %v2300 = vmax.f32 %v2284, 0.0
        %v2301 = vmax.f32 %v2285, 0.0
        %v2302 = vmax.f32 %v2286, 0.0
        %v2303 = vmax.f32 %v2287, 0.0
        %v2304 = vmax.f32 %v2288, 0.0
        %v2305 = vmax.f32 %v2289, 0.0
        %v2306 = vmax.f32 %v2290, 0.0
        %v2307 = vmax.f32 %v2051, %v2291
        %v2308 = vmax.f32 %v2052, %v2292
        %v2309 = vmax.f32 %v2053, %v2293
        %v2310 = vmax.f32 %v2054, %v2294
        %v2311 = vmax.f32 %v2055, %v2295
        %v2312 = vmax.f32 %v2056, %v2296
        %v2313 = vmax.f32 %v2057, %v2297
        %v2314 = vmax.f32 %v2058, %v2298
        %v2315 = vmax.f32 %v2059, %v2299
        %v2316 = vmax.f32 %v2060, %v2300
        %v2317 = vmax.f32 %v2061, %v2301
        %v2318 = vmax.f32 %v2062, %v2302
        %v2319 = vmax.f32 %v2063, %v2303
        %v2320 = vmax.f32 %v2064, %v2304
        %v2321 = vmax.f32 %v2065, %v2305
        %v2322 = vmax.f32 %v2066, %v2306
        %2323 = vrot.lane.b32.xlu0 %v986, 112
        %v2324 = vpop.permute.xlu0 %2323
        %2325 = vrot.lane.b32.xlu0 %v989, 112
        %v2326 = vpop.permute.xlu0 %2325
        %2327 = vrot.lane.b32.xlu0 %v994, 112
        %v2328 = vpop.permute.xlu0 %2327
        %2329 = vrot.lane.b32.xlu0 %v997, 112
        %v2330 = vpop.permute.xlu0 %2329
        %2331 = vrot.lane.b32.xlu0 %v1002, 112
        %v2332 = vpop.permute.xlu0 %2331
        %2333 = vrot.lane.b32.xlu0 %v1005, 112
        %v2334 = vpop.permute.xlu0 %2333
        %2335 = vrot.lane.b32.xlu0 %v1010, 112
        %v2336 = vpop.permute.xlu0 %2335
        %2337 = vrot.lane.b32.xlu0 %v1013, 112
        %v2338 = vpop.permute.xlu0 %2337
        %2339 = vrot.lane.b32.xlu0 %v1018, 112
        %v2340 = vpop.permute.xlu0 %2339
        %2341 = vrot.lane.b32.xlu0 %v1021, 112
        %v2342 = vpop.permute.xlu0 %2341
        %2343 = vrot.lane.b32.xlu0 %v1026, 112
        %v2344 = vpop.permute.xlu0 %2343
        %2345 = vrot.lane.b32.xlu0 %v1029, 112
        %v2346 = vpop.permute.xlu0 %2345
        %2347 = vrot.lane.b32.xlu0 %v1034, 112
        %v2348 = vpop.permute.xlu0 %2347
        %2349 = vrot.lane.b32.xlu0 %v1037, 112
        %v2350 = vpop.permute.xlu0 %2349
        %2351 = vrot.lane.b32.xlu0 %v1042, 112
        %v2352 = vpop.permute.xlu0 %2351
        %2353 = vrot.lane.b32.xlu0 %v1045, 112
        %v2354 = vpop.permute.xlu0 %2353
        %v2371 = vadd.f32 %v801, %v2324
        %v2372 = vadd.f32 %v804, %v2326
        %v2373 = vadd.f32 %v809, %v2328
        %v2374 = vadd.f32 %v812, %v2330
        %v2375 = vadd.f32 %v817, %v2332
        %v2376 = vadd.f32 %v820, %v2334
        %v2377 = vadd.f32 %v825, %v2336
        %v2378 = vadd.f32 %v828, %v2338
        %v2379 = vadd.f32 %v833, %v2340
        %v2380 = vadd.f32 %v836, %v2342
        %v2381 = vadd.f32 %v841, %v2344
        %v2382 = vadd.f32 %v844, %v2346
        %v2383 = vadd.f32 %v849, %v2348
        %v2384 = vadd.f32 %v852, %v2350
        %v2385 = vadd.f32 %v857, %v2352
        %v2386 = vadd.f32 %v860, %v2354
        %2387 = vrot.lane.b32.xlu0 %v1171, 96
        %v2388 = vpop.permute.xlu0 %2387
        %2389 = vrot.lane.b32.xlu0 %v1174, 96
        %v2390 = vpop.permute.xlu0 %2389
        %2391 = vrot.lane.b32.xlu0 %v1179, 96
        %v2392 = vpop.permute.xlu0 %2391
        %2393 = vrot.lane.b32.xlu0 %v1182, 96
        %v2394 = vpop.permute.xlu0 %2393
        %2395 = vrot.lane.b32.xlu0 %v1187, 96
        %v2396 = vpop.permute.xlu0 %2395
        %2397 = vrot.lane.b32.xlu0 %v1190, 96
        %v2398 = vpop.permute.xlu0 %2397
        %2399 = vrot.lane.b32.xlu0 %v1195, 96
        %v2400 = vpop.permute.xlu0 %2399
        %2401 = vrot.lane.b32.xlu0 %v1198, 96
        %v2402 = vpop.permute.xlu0 %2401
        %2403 = vrot.lane.b32.xlu0 %v1203, 96
        %v2404 = vpop.permute.xlu0 %2403
        %2405 = vrot.lane.b32.xlu0 %v1206, 96
        %v2406 = vpop.permute.xlu0 %2405
        %2407 = vrot.lane.b32.xlu0 %v1211, 96
        %v2408 = vpop.permute.xlu0 %2407
        %2409 = vrot.lane.b32.xlu0 %v1214, 96
        %v2410 = vpop.permute.xlu0 %2409
        %2411 = vrot.lane.b32.xlu0 %v1219, 96
        %v2412 = vpop.permute.xlu0 %2411
        %2413 = vrot.lane.b32.xlu0 %v1222, 96
        %v2414 = vpop.permute.xlu0 %2413
        %2415 = vrot.lane.b32.xlu0 %v1227, 96
        %v2416 = vpop.permute.xlu0 %2415
        %2417 = vrot.lane.b32.xlu0 %v1230, 96
        %v2418 = vpop.permute.xlu0 %2417
        %v2435 = vadd.f32 %v2371, %v2388
        %v2436 = vadd.f32 %v2372, %v2390
        %v2437 = vadd.f32 %v2373, %v2392
        %v2438 = vadd.f32 %v2374, %v2394
        %v2439 = vadd.f32 %v2375, %v2396
        %v2440 = vadd.f32 %v2376, %v2398
        %v2441 = vadd.f32 %v2377, %v2400
        %v2442 = vadd.f32 %v2378, %v2402
        %v2443 = vadd.f32 %v2379, %v2404
        %v2444 = vadd.f32 %v2380, %v2406
        %v2445 = vadd.f32 %v2381, %v2408
        %v2446 = vadd.f32 %v2382, %v2410
        %v2447 = vadd.f32 %v2383, %v2412
        %v2448 = vadd.f32 %v2384, %v2414
        %v2449 = vadd.f32 %v2385, %v2416
        %v2450 = vadd.f32 %v2386, %v2418
        %2467 = vrot.lane.b32.xlu0 %v1356, 80
        %v2468 = vpop.permute.xlu0 %2467
        %2469 = vrot.lane.b32.xlu0 %v1359, 80
        %v2470 = vpop.permute.xlu0 %2469
        %2471 = vrot.lane.b32.xlu0 %v1364, 80
        %v2472 = vpop.permute.xlu0 %2471
        %2473 = vrot.lane.b32.xlu0 %v1367, 80
        %v2474 = vpop.permute.xlu0 %2473
        %2475 = vrot.lane.b32.xlu0 %v1372, 80
        %v2476 = vpop.permute.xlu0 %2475
        %2477 = vrot.lane.b32.xlu0 %v1375, 80
        %v2478 = vpop.permute.xlu0 %2477
        %2479 = vrot.lane.b32.xlu0 %v1380, 80
        %v2480 = vpop.permute.xlu0 %2479
        %2481 = vrot.lane.b32.xlu0 %v1383, 80
        %v2482 = vpop.permute.xlu0 %2481
        %2483 = vrot.lane.b32.xlu0 %v1388, 80
        %v2484 = vpop.permute.xlu0 %2483
        %2485 = vrot.lane.b32.xlu0 %v1391, 80
        %v2486 = vpop.permute.xlu0 %2485
        %2487 = vrot.lane.b32.xlu0 %v1396, 80
        %v2488 = vpop.permute.xlu0 %2487
        %2489 = vrot.lane.b32.xlu0 %v1399, 80
        %v2490 = vpop.permute.xlu0 %2489
        %2491 = vrot.lane.b32.xlu0 %v1404, 80
        %v2492 = vpop.permute.xlu0 %2491
        %2493 = vrot.lane.b32.xlu0 %v1407, 80
        %v2494 = vpop.permute.xlu0 %2493
        %2495 = vrot.lane.b32.xlu0 %v1412, 80
        %v2496 = vpop.permute.xlu0 %2495
        %2497 = vrot.lane.b32.xlu0 %v1415, 80
        %v2498 = vpop.permute.xlu0 %2497
        %v2515 = vadd.f32 %v2435, %v2468
        %v2516 = vadd.f32 %v2436, %v2470
        %v2517 = vadd.f32 %v2437, %v2472
        %v2518 = vadd.f32 %v2438, %v2474
        %v2519 = vadd.f32 %v2439, %v2476
        %v2520 = vadd.f32 %v2440, %v2478
        %v2521 = vadd.f32 %v2441, %v2480
        %v2522 = vadd.f32 %v2442, %v2482
        %v2523 = vadd.f32 %v2443, %v2484
        %v2524 = vadd.f32 %v2444, %v2486
        %v2525 = vadd.f32 %v2445, %v2488
        %v2526 = vadd.f32 %v2446, %v2490
        %v2527 = vadd.f32 %v2447, %v2492
        %v2528 = vadd.f32 %v2448, %v2494
        %v2529 = vadd.f32 %v2449, %v2496
        %v2530 = vadd.f32 %v2450, %v2498
        %v2531 = vadd.f32 %v2515, %v1793
        %v2532 = vadd.f32 %v2516, %v1793
        %v2533 = vadd.f32 %v2517, %v1793
        %v2534 = vadd.f32 %v2518, %v1793
        %v2535 = vadd.f32 %v2519, %v1793
        %v2536 = vadd.f32 %v2520, %v1793
        %v2537 = vadd.f32 %v2521, %v1793
        %v2538 = vadd.f32 %v2522, %v1793
        %v2539 = vadd.f32 %v2523, %v1793
        %v2540 = vadd.f32 %v2524, %v1793
        %v2541 = vadd.f32 %v2525, %v1793
        %v2542 = vadd.f32 %v2526, %v1793
        %v2543 = vadd.f32 %v2527, %v1793
        %v2544 = vadd.f32 %v2528, %v1793
        %v2545 = vadd.f32 %v2529, %v1793
        %v2546 = vadd.f32 %v2530, %v1793
        %v2547 = vmax.f32 %v2531, 0.0
        %v2548 = vmax.f32 %v2532, 0.0
        %v2549 = vmax.f32 %v2533, 0.0
        %v2550 = vmax.f32 %v2534, 0.0
        %v2551 = vmax.f32 %v2535, 0.0
        %v2552 = vmax.f32 %v2536, 0.0
        %v2553 = vmax.f32 %v2537, 0.0
        %v2554 = vmax.f32 %v2538, 0.0
        %v2555 = vmax.f32 %v2539, 0.0
        %v2556 = vmax.f32 %v2540, 0.0
        %v2557 = vmax.f32 %v2541, 0.0
        %v2558 = vmax.f32 %v2542, 0.0
        %v2559 = vmax.f32 %v2543, 0.0
        %v2560 = vmax.f32 %v2544, 0.0
        %v2561 = vmax.f32 %v2545, 0.0
        %v2562 = vmax.f32 %v2546, 0.0
        %v2563 = vmax.f32 %v2307, %v2547
        %v2564 = vmax.f32 %v2308, %v2548
        %v2565 = vmax.f32 %v2309, %v2549
        %v2566 = vmax.f32 %v2310, %v2550
        %v2567 = vmax.f32 %v2311, %v2551
        %v2568 = vmax.f32 %v2312, %v2552
        %v2569 = vmax.f32 %v2313, %v2553
        %v2570 = vmax.f32 %v2314, %v2554
        %v2571 = vmax.f32 %v2315, %v2555
        %v2572 = vmax.f32 %v2316, %v2556
        %v2573 = vmax.f32 %v2317, %v2557
        %v2574 = vmax.f32 %v2318, %v2558
        %v2575 = vmax.f32 %v2319, %v2559
        %v2576 = vmax.f32 %v2320, %v2560
        %v2577 = vmax.f32 %v2321, %v2561
        %v2578 = vmax.f32 %v2322, %v2562
        %2579 = vrot.lane.b32.xlu0 %v1171, 112
        %v2580 = vpop.permute.xlu0 %2579
        %2581 = vrot.lane.b32.xlu0 %v1174, 112
        %v2582 = vpop.permute.xlu0 %2581
        %2583 = vrot.lane.b32.xlu0 %v1179, 112
        %v2584 = vpop.permute.xlu0 %2583
        %2585 = vrot.lane.b32.xlu0 %v1182, 112
        %v2586 = vpop.permute.xlu0 %2585
        %2587 = vrot.lane.b32.xlu0 %v1187, 112
        %v2588 = vpop.permute.xlu0 %2587
        %2589 = vrot.lane.b32.xlu0 %v1190, 112
        %v2590 = vpop.permute.xlu0 %2589
        %2591 = vrot.lane.b32.xlu0 %v1195, 112
        %v2592 = vpop.permute.xlu0 %2591
        %2593 = vrot.lane.b32.xlu0 %v1198, 112
        %v2594 = vpop.permute.xlu0 %2593
        %2595 = vrot.lane.b32.xlu0 %v1203, 112
        %v2596 = vpop.permute.xlu0 %2595
        %2597 = vrot.lane.b32.xlu0 %v1206, 112
        %v2598 = vpop.permute.xlu0 %2597
        %2599 = vrot.lane.b32.xlu0 %v1211, 112
        %v2600 = vpop.permute.xlu0 %2599
        %2601 = vrot.lane.b32.xlu0 %v1214, 112
        %v2602 = vpop.permute.xlu0 %2601
        %2603 = vrot.lane.b32.xlu0 %v1219, 112
        %v2604 = vpop.permute.xlu0 %2603
        %2605 = vrot.lane.b32.xlu0 %v1222, 112
        %v2606 = vpop.permute.xlu0 %2605
        %2607 = vrot.lane.b32.xlu0 %v1227, 112
        %v2608 = vpop.permute.xlu0 %2607
        %2609 = vrot.lane.b32.xlu0 %v1230, 112
        %v2610 = vpop.permute.xlu0 %2609
        %v2627 = vadd.f32 %v986, %v2580
        %v2628 = vadd.f32 %v989, %v2582
        %v2629 = vadd.f32 %v994, %v2584
        %v2630 = vadd.f32 %v997, %v2586
        %v2631 = vadd.f32 %v1002, %v2588
        %v2632 = vadd.f32 %v1005, %v2590
        %v2633 = vadd.f32 %v1010, %v2592
        %v2634 = vadd.f32 %v1013, %v2594
        %v2635 = vadd.f32 %v1018, %v2596
        %v2636 = vadd.f32 %v1021, %v2598
        %v2637 = vadd.f32 %v1026, %v2600
        %v2638 = vadd.f32 %v1029, %v2602
        %v2639 = vadd.f32 %v1034, %v2604
        %v2640 = vadd.f32 %v1037, %v2606
        %v2641 = vadd.f32 %v1042, %v2608
        %v2642 = vadd.f32 %v1045, %v2610
        %2643 = vrot.lane.b32.xlu0 %v1356, 96
        %v2644 = vpop.permute.xlu0 %2643
        %2645 = vrot.lane.b32.xlu0 %v1359, 96
        %v2646 = vpop.permute.xlu0 %2645
        %2647 = vrot.lane.b32.xlu0 %v1364, 96
        %v2648 = vpop.permute.xlu0 %2647
        %2649 = vrot.lane.b32.xlu0 %v1367, 96
        %v2650 = vpop.permute.xlu0 %2649
        %2651 = vrot.lane.b32.xlu0 %v1372, 96
        %v2652 = vpop.permute.xlu0 %2651
        %2653 = vrot.lane.b32.xlu0 %v1375, 96
        %v2654 = vpop.permute.xlu0 %2653
        %2655 = vrot.lane.b32.xlu0 %v1380, 96
        %v2656 = vpop.permute.xlu0 %2655
        %2657 = vrot.lane.b32.xlu0 %v1383, 96
        %v2658 = vpop.permute.xlu0 %2657
        %2659 = vrot.lane.b32.xlu0 %v1388, 96
        %v2660 = vpop.permute.xlu0 %2659
        %2661 = vrot.lane.b32.xlu0 %v1391, 96
        %v2662 = vpop.permute.xlu0 %2661
        %2663 = vrot.lane.b32.xlu0 %v1396, 96
        %v2664 = vpop.permute.xlu0 %2663
        %2665 = vrot.lane.b32.xlu0 %v1399, 96
        %v2666 = vpop.permute.xlu0 %2665
        %2667 = vrot.lane.b32.xlu0 %v1404, 96
        %v2668 = vpop.permute.xlu0 %2667
        %2669 = vrot.lane.b32.xlu0 %v1407, 96
        %v2670 = vpop.permute.xlu0 %2669
        %2671 = vrot.lane.b32.xlu0 %v1412, 96
        %v2672 = vpop.permute.xlu0 %2671
        %2673 = vrot.lane.b32.xlu0 %v1415, 96
        %v2674 = vpop.permute.xlu0 %2673
        %v2691 = vadd.f32 %v2627, %v2644
        %v2692 = vadd.f32 %v2628, %v2646
        %v2693 = vadd.f32 %v2629, %v2648
        %v2694 = vadd.f32 %v2630, %v2650
        %v2695 = vadd.f32 %v2631, %v2652
        %v2696 = vadd.f32 %v2632, %v2654
        %v2697 = vadd.f32 %v2633, %v2656
        %v2698 = vadd.f32 %v2634, %v2658
        %v2699 = vadd.f32 %v2635, %v2660
        %v2700 = vadd.f32 %v2636, %v2662
        %v2701 = vadd.f32 %v2637, %v2664
        %v2702 = vadd.f32 %v2638, %v2666
        %v2703 = vadd.f32 %v2639, %v2668
        %v2704 = vadd.f32 %v2640, %v2670
        %v2705 = vadd.f32 %v2641, %v2672
        %v2706 = vadd.f32 %v2642, %v2674
        %2723 = vrot.lane.b32.xlu0 %v1541, 80
        %v2724 = vpop.permute.xlu0 %2723
        %2725 = vrot.lane.b32.xlu0 %v1544, 80
        %v2726 = vpop.permute.xlu0 %2725
        %2727 = vrot.lane.b32.xlu0 %v1549, 80
        %v2728 = vpop.permute.xlu0 %2727
        %2729 = vrot.lane.b32.xlu0 %v1552, 80
        %v2730 = vpop.permute.xlu0 %2729
        %2731 = vrot.lane.b32.xlu0 %v1557, 80
        %v2732 = vpop.permute.xlu0 %2731
        %2733 = vrot.lane.b32.xlu0 %v1560, 80
        %v2734 = vpop.permute.xlu0 %2733
        %2735 = vrot.lane.b32.xlu0 %v1565, 80
        %v2736 = vpop.permute.xlu0 %2735
        %2737 = vrot.lane.b32.xlu0 %v1568, 80
        %v2738 = vpop.permute.xlu0 %2737
        %2739 = vrot.lane.b32.xlu0 %v1573, 80
        %v2740 = vpop.permute.xlu0 %2739
        %2741 = vrot.lane.b32.xlu0 %v1576, 80
        %v2742 = vpop.permute.xlu0 %2741
        %2743 = vrot.lane.b32.xlu0 %v1581, 80
        %v2744 = vpop.permute.xlu0 %2743
        %2745 = vrot.lane.b32.xlu0 %v1584, 80
        %v2746 = vpop.permute.xlu0 %2745
        %2747 = vrot.lane.b32.xlu0 %v1589, 80
        %v2748 = vpop.permute.xlu0 %2747
        %2749 = vrot.lane.b32.xlu0 %v1592, 80
        %v2750 = vpop.permute.xlu0 %2749
        %2751 = vrot.lane.b32.xlu0 %v1597, 80
        %v2752 = vpop.permute.xlu0 %2751
        %2753 = vrot.lane.b32.xlu0 %v1600, 80
        %v2754 = vpop.permute.xlu0 %2753
        %v2771 = vadd.f32 %v2691, %v2724
        %v2772 = vadd.f32 %v2692, %v2726
        %v2773 = vadd.f32 %v2693, %v2728
        %v2774 = vadd.f32 %v2694, %v2730
        %v2775 = vadd.f32 %v2695, %v2732
        %v2776 = vadd.f32 %v2696, %v2734
        %v2777 = vadd.f32 %v2697, %v2736
        %v2778 = vadd.f32 %v2698, %v2738
        %v2779 = vadd.f32 %v2699, %v2740
        %v2780 = vadd.f32 %v2700, %v2742
        %v2781 = vadd.f32 %v2701, %v2744
        %v2782 = vadd.f32 %v2702, %v2746
        %v2783 = vadd.f32 %v2703, %v2748
        %v2784 = vadd.f32 %v2704, %v2750
        %v2785 = vadd.f32 %v2705, %v2752
        %v2786 = vadd.f32 %v2706, %v2754
        %v2787 = vadd.f32 %v2771, %v1793
        %v2788 = vadd.f32 %v2772, %v1793
        %v2789 = vadd.f32 %v2773, %v1793
        %v2790 = vadd.f32 %v2774, %v1793
        %v2791 = vadd.f32 %v2775, %v1793
        %v2792 = vadd.f32 %v2776, %v1793
        %v2793 = vadd.f32 %v2777, %v1793
        %v2794 = vadd.f32 %v2778, %v1793
        %v2795 = vadd.f32 %v2779, %v1793
        %v2796 = vadd.f32 %v2780, %v1793
        %v2797 = vadd.f32 %v2781, %v1793
        %v2798 = vadd.f32 %v2782, %v1793
        %v2799 = vadd.f32 %v2783, %v1793
        %v2800 = vadd.f32 %v2784, %v1793
        %v2801 = vadd.f32 %v2785, %v1793
        %v2802 = vadd.f32 %v2786, %v1793
        %v2803 = vmax.f32 %v2787, 0.0
        %v2804 = vmax.f32 %v2788, 0.0
        %v2805 = vmax.f32 %v2789, 0.0
        %v2806 = vmax.f32 %v2790, 0.0
        %v2807 = vmax.f32 %v2791, 0.0
        %v2808 = vmax.f32 %v2792, 0.0
        %v2809 = vmax.f32 %v2793, 0.0
        %v2810 = vmax.f32 %v2794, 0.0
        %v2811 = vmax.f32 %v2795, 0.0
        %v2812 = vmax.f32 %v2796, 0.0
        %v2813 = vmax.f32 %v2797, 0.0
        %v2814 = vmax.f32 %v2798, 0.0
        %v2815 = vmax.f32 %v2799, 0.0
        %v2816 = vmax.f32 %v2800, 0.0
        %v2817 = vmax.f32 %v2801, 0.0
        %v2818 = vmax.f32 %v2802, 0.0
        %v2819 = vmax.f32 %v2563, %v2803
        %v2820 = vmax.f32 %v2564, %v2804
        %v2821 = vmax.f32 %v2565, %v2805
        %v2822 = vmax.f32 %v2566, %v2806
        %v2823 = vmax.f32 %v2567, %v2807
        %v2824 = vmax.f32 %v2568, %v2808
        %v2825 = vmax.f32 %v2569, %v2809
        %v2826 = vmax.f32 %v2570, %v2810
        %v2827 = vmax.f32 %v2571, %v2811
        %v2828 = vmax.f32 %v2572, %v2812
        %v2829 = vmax.f32 %v2573, %v2813
        %v2830 = vmax.f32 %v2574, %v2814
        %v2831 = vmax.f32 %v2575, %v2815
        %v2832 = vmax.f32 %v2576, %v2816
        %v2833 = vmax.f32 %v2577, %v2817
        %v2834 = vmax.f32 %v2578, %v2818
        %2835 = vrot.lane.b32.xlu0 %v1356, 112
        %v2836 = vpop.permute.xlu0 %2835
        %2837 = vrot.lane.b32.xlu0 %v1359, 112
        %v2838 = vpop.permute.xlu0 %2837
        %2839 = vrot.lane.b32.xlu0 %v1364, 112
        %v2840 = vpop.permute.xlu0 %2839
        %2841 = vrot.lane.b32.xlu0 %v1367, 112
        %v2842 = vpop.permute.xlu0 %2841
        %2843 = vrot.lane.b32.xlu0 %v1372, 112
        %v2844 = vpop.permute.xlu0 %2843
        %2845 = vrot.lane.b32.xlu0 %v1375, 112
        %v2846 = vpop.permute.xlu0 %2845
        %2847 = vrot.lane.b32.xlu0 %v1380, 112
        %v2848 = vpop.permute.xlu0 %2847
        %2849 = vrot.lane.b32.xlu0 %v1383, 112
        %v2850 = vpop.permute.xlu0 %2849
        %2851 = vrot.lane.b32.xlu0 %v1388, 112
        %v2852 = vpop.permute.xlu0 %2851
        %2853 = vrot.lane.b32.xlu0 %v1391, 112
        %v2854 = vpop.permute.xlu0 %2853
        %2855 = vrot.lane.b32.xlu0 %v1396, 112
        %v2856 = vpop.permute.xlu0 %2855
        %2857 = vrot.lane.b32.xlu0 %v1399, 112
        %v2858 = vpop.permute.xlu0 %2857
        %2859 = vrot.lane.b32.xlu0 %v1404, 112
        %v2860 = vpop.permute.xlu0 %2859
        %2861 = vrot.lane.b32.xlu0 %v1407, 112
        %v2862 = vpop.permute.xlu0 %2861
        %2863 = vrot.lane.b32.xlu0 %v1412, 112
        %v2864 = vpop.permute.xlu0 %2863
        %2865 = vrot.lane.b32.xlu0 %v1415, 112
        %v2866 = vpop.permute.xlu0 %2865
        %v2883 = vadd.f32 %v1171, %v2836
        %v2884 = vadd.f32 %v1174, %v2838
        %v2885 = vadd.f32 %v1179, %v2840
        %v2886 = vadd.f32 %v1182, %v2842
        %v2887 = vadd.f32 %v1187, %v2844
        %v2888 = vadd.f32 %v1190, %v2846
        %v2889 = vadd.f32 %v1195, %v2848
        %v2890 = vadd.f32 %v1198, %v2850
        %v2891 = vadd.f32 %v1203, %v2852
        %v2892 = vadd.f32 %v1206, %v2854
        %v2893 = vadd.f32 %v1211, %v2856
        %v2894 = vadd.f32 %v1214, %v2858
        %v2895 = vadd.f32 %v1219, %v2860
        %v2896 = vadd.f32 %v1222, %v2862
        %v2897 = vadd.f32 %v1227, %v2864
        %v2898 = vadd.f32 %v1230, %v2866
        %2899 = vrot.lane.b32.xlu0 %v1541, 96
        %v2900 = vpop.permute.xlu0 %2899
        %2901 = vrot.lane.b32.xlu0 %v1544, 96
        %v2902 = vpop.permute.xlu0 %2901
        %2903 = vrot.lane.b32.xlu0 %v1549, 96
        %v2904 = vpop.permute.xlu0 %2903
        %2905 = vrot.lane.b32.xlu0 %v1552, 96
        %v2906 = vpop.permute.xlu0 %2905
        %2907 = vrot.lane.b32.xlu0 %v1557, 96
        %v2908 = vpop.permute.xlu0 %2907
        %2909 = vrot.lane.b32.xlu0 %v1560, 96
        %v2910 = vpop.permute.xlu0 %2909
        %2911 = vrot.lane.b32.xlu0 %v1565, 96
        %v2912 = vpop.permute.xlu0 %2911
        %2913 = vrot.lane.b32.xlu0 %v1568, 96
        %v2914 = vpop.permute.xlu0 %2913
        %2915 = vrot.lane.b32.xlu0 %v1573, 96
        %v2916 = vpop.permute.xlu0 %2915
        %2917 = vrot.lane.b32.xlu0 %v1576, 96
        %v2918 = vpop.permute.xlu0 %2917
        %2919 = vrot.lane.b32.xlu0 %v1581, 96
        %v2920 = vpop.permute.xlu0 %2919
        %2921 = vrot.lane.b32.xlu0 %v1584, 96
        %v2922 = vpop.permute.xlu0 %2921
        %2923 = vrot.lane.b32.xlu0 %v1589, 96
        %v2924 = vpop.permute.xlu0 %2923
        %2925 = vrot.lane.b32.xlu0 %v1592, 96
        %v2926 = vpop.permute.xlu0 %2925
        %2927 = vrot.lane.b32.xlu0 %v1597, 96
        %v2928 = vpop.permute.xlu0 %2927
        %2929 = vrot.lane.b32.xlu0 %v1600, 96
        %v2930 = vpop.permute.xlu0 %2929
        %v2947 = vadd.f32 %v2883, %v2900
        %v2948 = vadd.f32 %v2884, %v2902
        %v2949 = vadd.f32 %v2885, %v2904
        %v2950 = vadd.f32 %v2886, %v2906
        %v2951 = vadd.f32 %v2887, %v2908
        %v2952 = vadd.f32 %v2888, %v2910
        %v2953 = vadd.f32 %v2889, %v2912
        %v2954 = vadd.f32 %v2890, %v2914
        %v2955 = vadd.f32 %v2891, %v2916
        %v2956 = vadd.f32 %v2892, %v2918
        %v2957 = vadd.f32 %v2893, %v2920
        %v2958 = vadd.f32 %v2894, %v2922
        %v2959 = vadd.f32 %v2895, %v2924
        %v2960 = vadd.f32 %v2896, %v2926
        %v2961 = vadd.f32 %v2897, %v2928
        %v2962 = vadd.f32 %v2898, %v2930
        %2979 = vrot.lane.b32.xlu0 %v1726, 80
        %v2980 = vpop.permute.xlu0 %2979
        %2981 = vrot.lane.b32.xlu0 %v1729, 80
        %v2982 = vpop.permute.xlu0 %2981
        %2983 = vrot.lane.b32.xlu0 %v1734, 80
        %v2984 = vpop.permute.xlu0 %2983
        %2985 = vrot.lane.b32.xlu0 %v1737, 80
        %v2986 = vpop.permute.xlu0 %2985
        %2987 = vrot.lane.b32.xlu0 %v1742, 80
        %v2988 = vpop.permute.xlu0 %2987
        %2989 = vrot.lane.b32.xlu0 %v1745, 80
        %v2990 = vpop.permute.xlu0 %2989
        %2991 = vrot.lane.b32.xlu0 %v1750, 80
        %v2992 = vpop.permute.xlu0 %2991
        %2993 = vrot.lane.b32.xlu0 %v1753, 80
        %v2994 = vpop.permute.xlu0 %2993
        %2995 = vrot.lane.b32.xlu0 %v1758, 80
        %v2996 = vpop.permute.xlu0 %2995
        %2997 = vrot.lane.b32.xlu0 %v1761, 80
        %v2998 = vpop.permute.xlu0 %2997
        %2999 = vrot.lane.b32.xlu0 %v1766, 80
        %v3000 = vpop.permute.xlu0 %2999
        %3001 = vrot.lane.b32.xlu0 %v1769, 80
        %v3002 = vpop.permute.xlu0 %3001
        %3003 = vrot.lane.b32.xlu0 %v1774, 80
        %v3004 = vpop.permute.xlu0 %3003
        %3005 = vrot.lane.b32.xlu0 %v1777, 80
        %v3006 = vpop.permute.xlu0 %3005
        %3007 = vrot.lane.b32.xlu0 %v1782, 80
        %v3008 = vpop.permute.xlu0 %3007
        %3009 = vrot.lane.b32.xlu0 %v1785, 80
        %v3010 = vpop.permute.xlu0 %3009
        %v3027 = vadd.f32 %v2947, %v2980
        %v3028 = vadd.f32 %v2948, %v2982
        %v3029 = vadd.f32 %v2949, %v2984
        %v3030 = vadd.f32 %v2950, %v2986
        %v3031 = vadd.f32 %v2951, %v2988
        %v3032 = vadd.f32 %v2952, %v2990
        %v3033 = vadd.f32 %v2953, %v2992
        %v3034 = vadd.f32 %v2954, %v2994
        %v3035 = vadd.f32 %v2955, %v2996
        %v3036 = vadd.f32 %v2956, %v2998
        %v3037 = vadd.f32 %v2957, %v3000
        %v3038 = vadd.f32 %v2958, %v3002
        %v3039 = vadd.f32 %v2959, %v3004
        %v3040 = vadd.f32 %v2960, %v3006
        %v3041 = vadd.f32 %v2961, %v3008
        %v3042 = vadd.f32 %v2962, %v3010
        %v3043 = vadd.f32 %v3027, %v1793
        %v3044 = vadd.f32 %v3028, %v1793
        %v3045 = vadd.f32 %v3029, %v1793
        %v3046 = vadd.f32 %v3030, %v1793
        %v3047 = vadd.f32 %v3031, %v1793
        %v3048 = vadd.f32 %v3032, %v1793
        %v3049 = vadd.f32 %v3033, %v1793
        %v3050 = vadd.f32 %v3034, %v1793
        %v3051 = vadd.f32 %v3035, %v1793
        %v3052 = vadd.f32 %v3036, %v1793
        %v3053 = vadd.f32 %v3037, %v1793
        %v3054 = vadd.f32 %v3038, %v1793
        %v3055 = vadd.f32 %v3039, %v1793
        %v3056 = vadd.f32 %v3040, %v1793
        %v3057 = vadd.f32 %v3041, %v1793
        %v3058 = vadd.f32 %v3042, %v1793
        %v3059 = vmax.f32 %v3043, 0.0
        %v3060 = vmax.f32 %v3044, 0.0
        %v3061 = vmax.f32 %v3045, 0.0
        %v3062 = vmax.f32 %v3046, 0.0
        %v3063 = vmax.f32 %v3047, 0.0
        %v3064 = vmax.f32 %v3048, 0.0
        %v3065 = vmax.f32 %v3049, 0.0
        %v3066 = vmax.f32 %v3050, 0.0
        %v3067 = vmax.f32 %v3051, 0.0
        %v3068 = vmax.f32 %v3052, 0.0
        %v3069 = vmax.f32 %v3053, 0.0
        %v3070 = vmax.f32 %v3054, 0.0
        %v3071 = vmax.f32 %v3055, 0.0
        %v3072 = vmax.f32 %v3056, 0.0
        %v3073 = vmax.f32 %v3057, 0.0
        %v3074 = vmax.f32 %v3058, 0.0
        %v3075 = vmax.f32 %v2819, %v3059
        %v3076 = vmax.f32 %v2820, %v3060
        %v3077 = vmax.f32 %v2821, %v3061
        %v3078 = vmax.f32 %v2822, %v3062
        %v3079 = vmax.f32 %v2823, %v3063
        %v3080 = vmax.f32 %v2824, %v3064
        %v3081 = vmax.f32 %v2825, %v3065
        %v3082 = vmax.f32 %v2826, %v3066
        %v3083 = vmax.f32 %v2827, %v3067
        %v3084 = vmax.f32 %v2828, %v3068
        %v3085 = vmax.f32 %v2829, %v3069
        %v3086 = vmax.f32 %v2830, %v3070
        %v3087 = vmax.f32 %v2831, %v3071
        %v3088 = vmax.f32 %v2832, %v3072
        %v3089 = vmax.f32 %v2833, %v3073
        %v3090 = vmax.f32 %v2834, %v3074
        %v3091 = vld [vmem:[%s3] sm:$0x3]
        %v3092 = vld [vmem:[%s4] sm:$0x3]
        %3094 = vset.pattern.permute.xlu0 0
        %3095 = vperm.xlu0 %3094, %v3092
        %v3096 = vpop.permute.xlu0 %3095
        %vm3098 = vcmask 130048
        %v3100 = vsel %vm3098, %v3091, 0
        %v3103 = vsel %vm3098, %v3075, 0
        %v3106 = vsel %vm3098, %v3076, 0
        %v3109 = vsel %vm3098, %v3077, 0
        %v3112 = vsel %vm3098, %v3078, 0
        %v3115 = vsel %vm3098, %v3079, 0
        %v3118 = vsel %vm3098, %v3080, 0
        %v3121 = vsel %vm3098, %v3081, 0
        %v3124 = vsel %vm3098, %v3082, 0
        %v3127 = vsel %vm3098, %v3083, 0
        %v3130 = vsel %vm3098, %v3084, 0
        %v3133 = vsel %vm3098, %v3085, 0
        %v3136 = vsel %vm3098, %v3086, 0
        %v3139 = vsel %vm3098, %v3087, 0
        %v3142 = vsel %vm3098, %v3088, 0
        %v3145 = vsel %vm3098, %v3089, 0
        %v3148 = vsel %vm3098, %v3090, 0
        %3150 = vmatprep.subr.mxu0 0.0
        %3151 = vmatpush1.xpose.msra.mxu0 %v3103
        %3152 = vmatprep.subr.mxu0 0.0
        %3153 = vmatpush1.xpose.msra.mxu0 %v3106
        %3154 = vmatprep.subr.mxu0 0.0
        %3155 = vmatpush1.xpose.msra.mxu0 %v3109
        %3156 = vmatprep.subr.mxu0 0.0
        %3157 = vmatpush1.xpose.msra.mxu0 %v3112
        %3158 = vmatprep.subr.mxu0 0.0
        %3159 = vmatpush1.xpose.msra.mxu0 %v3115
        %3160 = vmatprep.subr.mxu0 0.0
        %3161 = vmatpush1.xpose.msra.mxu0 %v3118
        %3162 = vmatprep.subr.mxu0 0.0
        %3163 = vmatpush1.xpose.msra.mxu0 %v3121
        %3164 = vmatprep.subr.mxu0 0.0
        %3165 = vmatpush1.xpose.msra.mxu0 %v3124
        %3166 = vmatprep.subr.mxu0 0.0
        %3167 = vmatpush1.xpose.msra.mxu0 %v3127
        %3168 = vmatprep.subr.mxu0 0.0
        %3169 = vmatpush1.xpose.msra.mxu0 %v3130
        %3170 = vmatprep.subr.mxu0 0.0
        %3171 = vmatpush1.xpose.msra.mxu0 %v3133
        %3172 = vmatprep.subr.mxu0 0.0
        %3173 = vmatpush1.xpose.msra.mxu0 %v3136
        %3174 = vmatprep.subr.mxu0 0.0
        %3175 = vmatpush1.xpose.msra.mxu0 %v3139
        %3176 = vmatprep.subr.mxu0 0.0
        %3177 = vmatpush1.xpose.msra.mxu0 %v3142
        %3178 = vmatprep.subr.mxu0 0.0
        %3179 = vmatpush1.xpose.msra.mxu0 %v3145
        %3180 = vmatprep.subr.mxu0 0.0
        %3181 = vmatpush1.xpose.msra.mxu0 %v3148
        %3182 = vmatprep.subr.mxu0 0.0
        %3183 = vmatpush1.xpose.msra.mxu0 0.0
        %3184 = vmatprep.subr.mxu0 0.0
        %3185 = vmatpush1.xpose.msra.mxu0 0.0
        %3186 = vmatprep.subr.mxu0 0.0
        %3187 = vmatpush1.xpose.msra.mxu0 0.0
        %3188 = vmatprep.subr.mxu0 0.0
        %3189 = vmatpush1.xpose.msra.mxu0 0.0
        %3190 = vmatprep.subr.mxu0 0.0
        %3191 = vmatpush1.xpose.msra.mxu0 0.0
        %3192 = vmatprep.subr.mxu0 0.0
        %3193 = vmatpush1.xpose.msra.mxu0 0.0
        %3194 = vmatprep.subr.mxu0 0.0
        %3195 = vmatpush1.xpose.msra.mxu0 0.0
        %3196 = vmatprep.subr.mxu0 0.0
        %3197 = vmatpush1.xpose.msra.mxu0 0.0
        %3198 = vmatprep.subr.mxu0 0.0
        %3199 = vmatpush1.xpose.msra.mxu0 0.0
        %3200 = vmatprep.subr.mxu0 0.0
        %3201 = vmatpush1.xpose.msra.mxu0 0.0
        %3202 = vmatprep.subr.mxu0 0.0
        %3203 = vmatpush1.xpose.msra.mxu0 0.0
        %3204 = vmatprep.subr.mxu0 0.0
        %3205 = vmatpush1.xpose.msra.mxu0 0.0
        %3206 = vmatprep.subr.mxu0 0.0
        %3207 = vmatpush1.xpose.msra.mxu0 0.0
        %3208 = vmatprep.subr.mxu0 0.0
        %3209 = vmatpush1.xpose.msra.mxu0 0.0
        %3210 = vmatprep.subr.mxu0 0.0
        %3211 = vmatpush1.xpose.msra.mxu0 0.0
        %3212 = vmatprep.subr.mxu0 0.0
        %3213 = vmatpush1.xpose.msra.mxu0 0.0
        %3214 = vmatprep.mubr.f32.mxu0 0.0
        %3215 = vmatmul.mubr.f32.gmra.mrb[0].mxu0 %v3100
        %v3216 = vpop.f32.mrb[0].mxu0
        %v3217 = vadd.f32 %v3096, %v3216
        %v3218 = vpop.f32.mrb[0].mxu0
        %3219 = vdwg.mxu0
        %3220 = vst [vmem:[%s218] sm:$0x3] %v3217
        %s3221 = sand.u32 %s137, 1
        %s3222 = scalar_lea.sflag [#allocation3], %s3221
        %s3223 = sand.u32 %s137, 1
        %s3224 = smul.addr %s3223, 2
        %s3225 = scalar_lea.vmem [#allocation2], %s3224
        // Predicated region
        $region41: #{tpu_custom_call.1} parent=39 // pred_check
          %p3226 = pneg %p147
        $region42: #{tpu_custom_call.1} parent=39 // pred_check_branch
          %3228 = sbr.rel (%p3226) target = $region44
        $region43: #{tpu_custom_call.1} parent=39 // pred_region
          %s3230 = ssub.s32 32, 32
          %3231 = vsyncadd %s3222, %s3230
          %s3232 = smul.addr %s19, 32
          %s3233 = scalar_lea.hbm %s5, %s3232
          %s3235 = sshll.u32 %s3225, 4
          %s3236 = int_to_ptr.vmem [resolvable:$true] %s3235
          %3238 = dma.vmem_to_hbm [thread:$0]  %s3236, 32, %s3233, %s3222
        $region44: #{tpu_custom_call.1} parent=39 // pred_fallthru
          _
      $region40: #{tpu_custom_call.1} parent=5 // pred_fallthru
        _
      %p3239 = scmp.le.s32.totalorder 2, %s14
      // Predicated region
      $region45: #{tpu_custom_call.1} parent=5 // pred_check
        %p3240 = pneg %p3239
      $region46: #{tpu_custom_call.1} parent=5 // pred_check_branch
        %3242 = sbr.rel (%p3240) target = $region48
      $region47: #{tpu_custom_call.1} parent=5 // pred_region
        %s3243 = ssub.s32 %s14, 2
        // Predicated region
        $region49: #{tpu_custom_call.1} parent=47 // pred_check
          %p3244 = pneg %p153
        $region50: #{tpu_custom_call.1} parent=47 // pred_check_branch
          %3246 = sbr.rel (%p3244) target = $region52
        $region51: #{tpu_custom_call.1} parent=47 // pred_region
          %s3247 = sand.u32 %s138, 1
          %s3248 = scalar_lea.sflag [#allocation3], %s3247
          %s3249 = sand.u32 %s138, 1
          %s3250 = smul.addr %s3249, 2
          %s3251 = scalar_lea.vmem [#allocation2], %s3250
          %3252 = dma.done %s3248, 32
        $region52: #{tpu_custom_call.1} parent=47 // pred_fallthru
          _
      $region48: #{tpu_custom_call.1} parent=5 // pred_fallthru
        _
    $region6: #{tpu_custom_call.1} parent=1 // loop_footer
      %s18 = sadd.s32 1, %s14
    $region7: #{tpu_custom_call.1} parent=1 // loop_footer_branch
      %13 = sbr.rel target = $region3
    $region8: #{tpu_custom_call.1} parent=1 // loop_exit
      _
    %3253 = vsyncpa [#allocation3], 1
    %s3254 = scalar_lea.sflag [#allocation3], 1
    %3255 = vsyncpa %s3254, 1

</llo_original>
